<compile_context>
chip_gen: v7x
topology: tpu7x:2x2x1
jax: 0.10.0
libtpu: 0.0.40
codegen_flags: <defaults>
</compile_context>

<pallas_src>
import math
import jax
import jax.numpy as jnp
from jax.experimental import pallas as pl
from jax.experimental.pallas import tpu as pltpu


def _round_up(x, m):
    return (x + m - 1) // m * m


def _octree_conv_kernel(x_ref, syT_ref, mxk_ref, mask_ref, bias_ref, out_ref):
    """One (column-tile, batch-block) grid step.

    x_ref:    (BT, H, Kpad)     bf16  zero-padded flattened input planes (Kpad = pad128(W*Cin))
    syT_ref:  (size*Hop, H)     bf16  stacked, row-padded transposed row-scatter matrices
    mxk_ref:  (size*Kpad, NT)   bf16  ky-stacked column operator (kx tap-sum folded in)
    mask_ref: (BT, 1, Ho, WoT)  f32   output-leaf mask tile
    bias_ref: (1, NT)           f32   bias pre-tiled over the WoT lanes (zeros if no bias)
    out_ref:  (BT, Ho, NT)      f32/bf16  NT = WoT*Cout, lane-dense flattened output tile
    """
    bt = x_ref.shape[0]
    kpad = x_ref.shape[2]
    ho = out_ref.shape[1]
    nt = out_ref.shape[2]
    size = mxk_ref.shape[0] // kpad
    hop = syT_ref.shape[0] // size
    wot = mask_ref.shape[3]
    cout = nt // wot

    syT = syT_ref[...]                                    # (size*hop, H)   bf16
    mxk = mxk_ref[...]                                    # (size*kpad, nt) bf16
    bias = bias_ref[...]                                  # (1, nt)         f32

    # Stage 1: per-batch stacked row scatter (M = size*hop, one MXU matmul per
    # batch), then move the ky blocks from rows to lanes (tile-aligned static
    # slices + lane concat) so stage 2 becomes a single long-K matmul.
    rows = []
    for b in range(bt):
        zb = jnp.dot(syT, x_ref[b],
                     preferred_element_type=jnp.float32).astype(jnp.bfloat16)  # (size*hop, kpad)
        if size > 1:
            zb = jnp.concatenate(
                [zb[ky * hop:(ky + 1) * hop] for ky in range(size)], axis=1)   # (hop, size*kpad)
        rows.append(zb)
    z = rows[0] if bt == 1 else jnp.concatenate(rows, axis=0)                  # (bt*hop, size*kpad)

    # Stage 2: ONE lane-dense matmul, K = size*Kpad, M = BT*Hop, f32 accumulation
    # held as a value (no scratch round-trips; compiler spills only if needed).
    acc = jnp.dot(z, mxk, preferred_element_type=jnp.float32)                  # (bt*hop, nt)

    # Epilogue (f32): broadcast the mask over the Cout lanes in-kernel; bias is
    # already lane-tiled on the host (grid-constant).
    for b in range(bt):
        m = mask_ref[b, 0]                                                     # (ho, wot)
        m_flat = jnp.broadcast_to(m[:, :, None], (ho, wot, cout)).reshape(ho, nt)
        a = acc[b * hop:b * hop + ho]                                          # (ho, nt)
        out_ref[b] = ((a + m_flat * bias) * m_flat).astype(out_ref.dtype)


def _scatter_matrix(n_in, n_out, offset, stride, inv_stride):
    """0/1 matrix S[i, j] = 1 iff clamp(floor((i*inv_stride + offset)/stride)) == j."""
    idx = jnp.arange(n_in, dtype=jnp.int32)
    tgt = jnp.floor_divide(idx * inv_stride + offset, stride)   # floor div, like torch //
    tgt = jnp.clip(tgt, 0, n_out - 1)                           # clamp == torch max/min
    return (tgt[:, None] == jnp.arange(n_out, dtype=jnp.int32)[None, :]).astype(jnp.float32)


class OctreeConv2DPallas:
    """JAX/Pallas re-implementation of OctreeConv2D's forward pass."""

    def __init__(self, key, size, nin, nout, stride=1, inv_stride=1, with_bias=True,
                 out_dtype=jnp.float32):
        self.size = size
        self.nin = nin
        self.nout = nout
        self.stride = stride
        self.inv_stride = inv_stride
        self.with_bias = with_bias
        self.out_dtype = out_dtype            # bf16 halves output writeback if acceptable
        stdv = 1.0 / math.sqrt(float(size * size * nin))
        k_k, k_b = jax.random.split(key)
        # deterministic synthetic init, same distribution/shapes as the torch module
        self.kernel = jax.random.uniform(
            k_k, (size, size, nin, nout), jnp.float32, minval=-stdv, maxval=stdv)
        self.bias = jax.random.uniform(
            k_b, (nout,), jnp.float32, minval=-stdv, maxval=stdv)
        self._cache = {}
        self._call_cache = {}
        self._single_buffer_ok = None
        # TODO(synk): optional BatchNorm1d / activation hooks of the module are not
        # implemented (module defaults are batch_norm=False, activation=None).

    # ------------------------------------------------------------------ VMEM --
    @staticmethod
    def _vmem_budget_bytes():
        cap = None
        try:
            info = pltpu.get_tpu_info()
            cap = int(getattr(info, "vmem_capacity_bytes", 0)) or None
        except Exception:
            cap = None
        if cap is None:
            cap = 64 * 1024 * 1024           # conservative fallback (v7x-sized per-core VMEM)
        # generation-aware budget: ~80% of per-core VMEM (headroom for compiler
        # scratch), capped at 112 MiB on 128 MiB parts (v5e/v6e); ~51 MiB on v7x.
        budget = min(cap * 4 // 5, 112 * 1024 * 1024)
        return budget, cap

    def _pick_tiles(self, B, H, Ho, Wo, kpad, hop, budget):
        size, cout = self.size, self.nout

        def est(bt, wot):
            nt = wot * cout
            b_mxk = 2 * size * kpad * nt * 2        # assume double-buffered (worst case)
            b_syt = 2 * size * hop * H * 2
            b_x = 2 * bt * H * kpad * 2
            b_out = 2 * bt * Ho * nt * 4
            b_msk = 2 * bt * _round_up(Ho, 8) * max(wot, 128) * 4
            b_bias = 2 * 8 * nt * 4
            vals = (bt * size * hop * kpad * 2      # z (bf16)
                    + size * hop * kpad * 4         # stage-1 f32 temp (one batch at a time)
                    + bt * hop * nt * 4             # acc (f32)
                    + bt * Ho * nt * 4)             # epilogue temporaries
            return b_mxk + b_syt + b_x + b_out + b_msk + b_bias + vals

        # Column tile: largest divisor of Wo with lane-dense NT (wot*cout % 128 == 0)
        # or the full width, that fits the VMEM budget.
        cands = [d for d in range(Wo, 0, -1)
                 if Wo % d == 0 and (d == Wo or (d * cout) % 128 == 0)]
        wot = cands[-1]
        for d in cands:
            if est(1, d) <= budget:
                wot = d
                break
        # Batch block: largest divisor of B that still fits and keeps M reasonable.
        bt = 1
        for d in range(B, 0, -1):
            if B % d == 0 and d * hop <= 2048 and est(d, wot) <= budget:
                bt = d
                break
        return wot, bt, est(bt, wot)

    # --------------------------------------------- cached operator construction --
    def _operators(self, B, H, W, Ho, Wo):
        key = (B, H, W, Ho, Wo)
        if key in self._cache:
            return self._cache[key]
        size, half = self.size, self.size // 2
        cin, cout = self.nin, self.nout
        kdim = W * cin
        kpad = _round_up(kdim, 128)              # lane-dense contraction dim
        hop = _round_up(Ho, 16)                  # bf16 sublane-tile aligned per-ky row blocks
        N = Wo * cout

        # stacked, row-padded S_y^T : (size*hop, H)
        sy_blocks = []
        for ky in range(size):
            s = _scatter_matrix(H, Ho, ky - half, self.stride, self.inv_stride).T   # (Ho, H)
            if hop > Ho:
                s = jnp.pad(s, ((0, hop - Ho), (0, 0)))
            sy_blocks.append(s)
        syT = jnp.concatenate(sy_blocks, axis=0).astype(jnp.bfloat16)

        # ky-stacked column operator: row ky*kpad + (w*cin + ci) -> col wo*cout + co
        mxk_blocks = []
        for ky in range(size):
            m = jnp.zeros((kdim, N), jnp.float32)
            for kx in range(size):
                sx = _scatter_matrix(W, Wo, kx - half, self.stride, self.inv_stride)
                m = m + jnp.kron(sx, self.kernel[ky, kx])
            if kpad > kdim:
                m = jnp.pad(m, ((0, kpad - kdim), (0, 0)))
            mxk_blocks.append(m)
        mxk = jnp.concatenate(mxk_blocks, axis=0).astype(jnp.bfloat16)   # (size*kpad, N)

        # bias pre-tiled over the Wo lanes (grid-constant; no per-step broadcast)
        if self.with_bias:
            bias_flat = jnp.tile(self.bias, (Wo,)).reshape(1, N).astype(jnp.float32)
        else:
            bias_flat = jnp.zeros((1, N), jnp.float32)

        budget, cap = self._vmem_budget_bytes()
        wot, bt, est = self._pick_tiles(B, H, Ho, Wo, kpad, hop, budget)
        vmem_limit = budget if est <= budget else min(est * 5 // 4, cap * 19 // 20)

        ops = (syT, mxk, bias_flat, kpad, hop, wot, bt, int(vmem_limit))
        self._cache[key] = ops
        return ops

    # -------------------------------------------------------- pallas_call build --
    def _build_call(self, H, Ho, kpad, hop, wot, bt, n_col, n_bblk, vmem_limit,
                    single_buffer):
        key = (H, Ho, kpad, hop, wot, bt, n_col, n_bblk, vmem_limit, single_buffer)
        if key in self._call_cache:
            return self._call_cache[key]
        size, cout = self.size, self.nout
        NT = wot * cout
        N = n_col * NT
        B = n_bblk * bt

        def spec(shape, imap, resident):
            # Single-buffer operands that are constant across consecutive grid steps.
            if single_buffer and resident:
                return pl.BlockSpec(shape, imap, pipeline_mode=pl.Buffered(1))
            return pl.BlockSpec(shape, imap)

        in_specs = [
            pl.BlockSpec((bt, H, kpad), lambda j, b: (b, 0, 0)),
            spec((size * hop, H), lambda j, b: (0, 0), True),          # grid-constant
            spec((size * kpad, NT), lambda j, b: (0, j), n_bblk > 1),  # constant over inner batch axis
            pl.BlockSpec((bt, 1, Ho, wot), lambda j, b: (b, j, 0, 0)),
            pl.BlockSpec((1, NT), lambda j, b: (0, j)),
        ]
        out_spec = pl.BlockSpec((bt, Ho, NT), lambda j, b: (b, 0, j))

        grid_spec = pltpu.PrefetchScalarGridSpec(
            num_scalar_prefetch=0,
            grid=(n_col, n_bblk),            # column tiles OUTER, batch blocks INNER
            in_specs=in_specs,
            out_specs=out_spec,
        )
        call = pl.pallas_call(
            _octree_conv_kernel,
            out_shape=jax.ShapeDtypeStruct((B, Ho, N), self.out_dtype),
            grid_spec=grid_spec,
            compiler_params=pltpu.CompilerParams(
                dimension_semantics=("parallel", "arbitrary"),
                vmem_limit_bytes=int(vmem_limit)),
        )
        self._call_cache[key] = call
        return call

    # -------------------------------------------------------------------- call --
    def __call__(self, x_dense, mask_dense):
        if x_dense.shape[-1] != self.nin:
            raise RuntimeError(
                'OctreeConv2D: created with %d channels, received %d channels.'
                % (self.nin, x_dense.shape[-1]))
        B, H, W, nin = x_dense.shape
        Ho = H // self.stride * self.inv_stride
        Wo = W // self.stride * self.inv_stride
        if (B, Ho, Wo) != tuple(mask_dense.shape[:3]):
            raise RuntimeError('OctreeConv2D: output/mask spatial shapes mismatch.')
        cout = self.nout

        syT, mxk, bias_flat, kpad, hop, wot, bt, vmem_limit = self._operators(B, H, W, Ho, Wo)
        n_col = Wo // wot
        n_bblk = B // bt

        # operand prep (layout plumbing only): bf16 matmul inputs, f32 mask.
        x2d = x_dense.reshape(B, H, W * nin)
        if kpad > W * nin:
            x2d = jnp.pad(x2d, ((0, 0), (0, 0), (0, kpad - W * nin)))
        x2d = x2d.astype(jnp.bfloat16)
        # mask re-tiled so each column tile's trailing dims are full dims (always a
        # legal BlockSpec block regardless of wot).
        mask4 = mask_dense.reshape(B, Ho, n_col, wot).transpose(0, 2, 1, 3).astype(jnp.float32)

        tries = (True, False) if self._single_buffer_ok in (None, True) else (False,)
        out_flat = None
        for single_buffer in tries:
            try:
                call = self._build_call(H, Ho, kpad, hop, wot, bt, n_col, n_bblk,
                                        vmem_limit, single_buffer)
                out_flat = call(x2d, syT, mxk, mask4, bias_flat)
                if self._single_buffer_ok is None:
                    out_flat = jax.block_until_ready(out_flat)   # surface lowering/runtime errors now
                    self._single_buffer_ok = single_buffer
                break
            except Exception:
                if not single_buffer:
                    raise
                # pl.Buffered(1) not supported on this build — fall back to defaults.
                self._single_buffer_ok = False
                out_flat = None
        return out_flat.reshape(B, Ho, Wo, cout)


def octree_conv2d_reference(x_dense, mask_dense, kernel, bias, size,
                            stride=1, inv_stride=1, with_bias=True):
    """Pure-JAX dense-equivalent reference of the torch sparse forward (f32)."""
    B, H, W, nin = x_dense.shape
    nout = kernel.shape[-1]
    Ho = H // stride * inv_stride
    Wo = W // stride * inv_stride
    half = size // 2
    out = jnp.zeros((B, Ho, Wo, nout), jnp.float32)
    ys = jnp.arange(H, dtype=jnp.int32)
    xs = jnp.arange(W, dtype=jnp.int32)
    for ky in range(size):
        for kx in range(size):
            vals = jnp.einsum('bhwi,io->bhwo', x_dense, kernel[ky, kx])
            yo = jnp.clip(jnp.floor_divide(ys * inv_stride + (ky - half), stride), 0, Ho - 1)
            xo = jnp.clip(jnp.floor_divide(xs * inv_stride + (kx - half), stride), 0, Wo - 1)
            out = out.at[:, yo[:, None], xo[None, :], :].add(vals)
    if with_bias:
        out = out + mask_dense * bias
    return out * mask_dense


if __name__ == "__main__":
    key = jax.random.PRNGKey(0)
    k_param, k_vals, k_inmask, k_outmask = jax.random.split(key, 4)

    B, H, W = 2, 16, 16
    nin, nout, size = 4, 8, 3          # stride=1, inv_stride=1 (module defaults)

    conv = OctreeConv2DPallas(k_param, size, nin, nout)

    # Synthetic "sparse" input: dense values zeroed where the octree has no leaf.
    values = jax.random.normal(k_vals, (B, H, W, nin), jnp.float32)
    in_mask = (jax.random.uniform(k_inmask, (B, H, W, 1)) < 0.4).astype(jnp.float32)
    x_dense = values * in_mask                                    # (B, H, W, nin)
    mask_dense = (jax.random.uniform(k_outmask, (B, H, W, 1)) < 0.5).astype(jnp.float32)

    out = conv(x_dense, mask_dense)
    out = jax.block_until_ready(out)

    ref = octree_conv2d_reference(x_dense, mask_dense, conv.kernel, conv.bias, size)
    assert out.shape == (B, H, W, nout), out.shape
    max_err = float(jnp.max(jnp.abs(out - ref)))
    # bf16 matmul operands with f32 accumulation -> loosened tolerance vs f32 ref.
    assert jnp.allclose(out, ref, rtol=2e-2, atol=2e-2), max_err
    print("KERNEL_OK")
</pallas_src>

<mosaic_0001>
module attributes {stable_mosaic.version = 11 : i64} {
  func.func @_octree_conv_kernel(%arg0: i32, %arg1: i32, %arg2: memref<2x16x128xbf16, #tpu.memory_space<vmem>>, %arg3: memref<48x16xbf16, #tpu.memory_space<vmem>>, %arg4: memref<384x128xbf16, #tpu.memory_space<vmem>>, %arg5: memref<2x1x16x16xf32, #tpu.memory_space<vmem>>, %arg6: memref<1x128xf32, #tpu.memory_space<vmem>>, %arg7: memref<2x16x128xf32, #tpu.memory_space<vmem>>) attributes {dimension_semantics = [#tpu.dimension_semantics<parallel>, #tpu.dimension_semantics<arbitrary>], iteration_bounds = array<i64: 1, 1>, scalar_prefetch = 0 : i64, scratch_operands = 0 : i64, tpu.core_type = #tpu.core_type<tc>, window_params = [{transform_indices = @transform_0, window_bounds = array<i64: 2, 16, 128>}, {pipeline_mode = #tpu.pipeline_mode<synchronous>, transform_indices = @transform_1, window_bounds = array<i64: 48, 16>}, {transform_indices = @transform_2, window_bounds = array<i64: 384, 128>}, {transform_indices = @transform_3, window_bounds = array<i64: 2, 1, 16, 16>}, {transform_indices = @transform_4, window_bounds = array<i64: 1, 128>}, {transform_indices = @transform_5, window_bounds = array<i64: 2, 16, 128>}]} {
    %c0 = arith.constant 0 : index
    %c0_0 = arith.constant 0 : index
    %0 = vector.load %arg3[%c0, %c0_0] : memref<48x16xbf16, #tpu.memory_space<vmem>>, vector<48x16xbf16>
    %c0_1 = arith.constant 0 : index
    %c0_2 = arith.constant 0 : index
    %1 = vector.load %arg4[%c0_1, %c0_2] : memref<384x128xbf16, #tpu.memory_space<vmem>>, vector<384x128xbf16>
    %c0_3 = arith.constant 0 : index
    %c0_4 = arith.constant 0 : index
    %2 = vector.load %arg6[%c0_3, %c0_4] : memref<1x128xf32, #tpu.memory_space<vmem>>, vector<1x128xf32>
    %c0_5 = arith.constant 0 : index
    %c0_6 = arith.constant 0 : index
    %c0_7 = arith.constant 0 : index
    %3 = vector.load %arg2[%c0_5, %c0_6, %c0_7] : memref<2x16x128xbf16, #tpu.memory_space<vmem>>, vector<1x16x128xbf16>
    %4 = vector.shape_cast %3 : vector<1x16x128xbf16> to vector<16x128xbf16>
    %cst = arith.constant dense<0.000000e+00> : vector<48x128xf32>
    %5 = tpu.matmul %0, %4, %cst {dimension_numbers = #tpu.dot_dimension_numbers<[1], [0], [0], [1], [0, 0, 1, 1], [], []>} : vector<48x16xbf16>, vector<16x128xbf16>, vector<48x128xf32> -> vector<48x128xf32>
    %6 = arith.truncf %5 : vector<48x128xf32> to vector<48x128xbf16>
    %7 = vector.extract_strided_slice %6 {offsets = [0, 0], sizes = [16, 128], strides = [1, 1]} : vector<48x128xbf16> to vector<16x128xbf16>
    %8 = vector.extract_strided_slice %6 {offsets = [16, 0], sizes = [16, 128], strides = [1, 1]} : vector<48x128xbf16> to vector<16x128xbf16>
    %9 = vector.extract_strided_slice %6 {offsets = [32, 0], sizes = [16, 128], strides = [1, 1]} : vector<48x128xbf16> to vector<16x128xbf16>
    %10 = tpu.concatenate %7, %8, %9 in 1 : vector<16x128xbf16>, vector<16x128xbf16>, vector<16x128xbf16> -> vector<16x384xbf16>
    %c1 = arith.constant 1 : index
    %c0_8 = arith.constant 0 : index
    %c0_9 = arith.constant 0 : index
    %11 = vector.load %arg2[%c1, %c0_8, %c0_9] : memref<2x16x128xbf16, #tpu.memory_space<vmem>>, vector<1x16x128xbf16>
    %12 = vector.shape_cast %11 : vector<1x16x128xbf16> to vector<16x128xbf16>
    %cst_10 = arith.constant dense<0.000000e+00> : vector<48x128xf32>
    %13 = tpu.matmul %0, %12, %cst_10 {dimension_numbers = #tpu.dot_dimension_numbers<[1], [0], [0], [1], [0, 0, 1, 1], [], []>} : vector<48x16xbf16>, vector<16x128xbf16>, vector<48x128xf32> -> vector<48x128xf32>
    %14 = arith.truncf %13 : vector<48x128xf32> to vector<48x128xbf16>
    %15 = vector.extract_strided_slice %14 {offsets = [0, 0], sizes = [16, 128], strides = [1, 1]} : vector<48x128xbf16> to vector<16x128xbf16>
    %16 = vector.extract_strided_slice %14 {offsets = [16, 0], sizes = [16, 128], strides = [1, 1]} : vector<48x128xbf16> to vector<16x128xbf16>
    %17 = vector.extract_strided_slice %14 {offsets = [32, 0], sizes = [16, 128], strides = [1, 1]} : vector<48x128xbf16> to vector<16x128xbf16>
    %18 = tpu.concatenate %15, %16, %17 in 1 : vector<16x128xbf16>, vector<16x128xbf16>, vector<16x128xbf16> -> vector<16x384xbf16>
    %19 = tpu.concatenate %10, %18 in 0 : vector<16x384xbf16>, vector<16x384xbf16> -> vector<32x384xbf16>
    %cst_11 = arith.constant dense<0.000000e+00> : vector<32x128xf32>
    %20 = tpu.matmul %19, %1, %cst_11 {dimension_numbers = #tpu.dot_dimension_numbers<[1], [0], [0], [1], [0, 0, 1, 1], [], []>} : vector<32x384xbf16>, vector<384x128xbf16>, vector<32x128xf32> -> vector<32x128xf32>
    %c0_12 = arith.constant 0 : index
    %c0_13 = arith.constant 0 : index
    %c0_14 = arith.constant 0 : index
    %c0_15 = arith.constant 0 : index
    %21 = vector.load %arg5[%c0_12, %c0_13, %c0_14, %c0_15] : memref<2x1x16x16xf32, #tpu.memory_space<vmem>>, vector<1x1x16x16xf32>
    %22 = vector.shape_cast %21 : vector<1x1x16x16xf32> to vector<16x16xf32>
    %23 = vector.shape_cast %22 : vector<16x16xf32> to vector<16x16x1xf32>
    %24 = vector.shape_cast %23 : vector<16x16x1xf32> to vector<16x16x1xf32>
    %25 = vector.broadcast %24 : vector<16x16x1xf32> to vector<16x16x8xf32>
    %26 = vector.shape_cast %25 : vector<16x16x8xf32> to vector<16x128xf32>
    %27 = vector.extract_strided_slice %20 {offsets = [0, 0], sizes = [16, 128], strides = [1, 1]} : vector<32x128xf32> to vector<16x128xf32>
    %28 = vector.broadcast %2 : vector<1x128xf32> to vector<16x128xf32>
    %29 = arith.mulf %26, %28 : vector<16x128xf32>
    %30 = arith.addf %27, %29 : vector<16x128xf32>
    %31 = arith.mulf %30, %26 : vector<16x128xf32>
    %c0_16 = arith.constant 0 : index
    %c0_17 = arith.constant 0 : index
    %c0_18 = arith.constant 0 : index
    %32 = vector.load %arg7[%c0_16, %c0_17, %c0_18] : memref<2x16x128xf32, #tpu.memory_space<vmem>>, vector<1x16x128xf32>
    %33 = vector.shape_cast %32 : vector<1x16x128xf32> to vector<16x128xf32>
    %34 = vector.shape_cast %31 : vector<16x128xf32> to vector<1x16x128xf32>
    tpu.vector_store %arg7[%c0_16, %c0_17, %c0_18], %34 {strides = array<i32>} : memref<2x16x128xf32, #tpu.memory_space<vmem>>, vector<1x16x128xf32>,
    %c1_19 = arith.constant 1 : index
    %c0_20 = arith.constant 0 : index
    %c0_21 = arith.constant 0 : index
    %c0_22 = arith.constant 0 : index
    %35 = vector.load %arg5[%c1_19, %c0_20, %c0_21, %c0_22] : memref<2x1x16x16xf32, #tpu.memory_space<vmem>>, vector<1x1x16x16xf32>
    %36 = vector.shape_cast %35 : vector<1x1x16x16xf32> to vector<16x16xf32>
    %37 = vector.shape_cast %36 : vector<16x16xf32> to vector<16x16x1xf32>
    %38 = vector.shape_cast %37 : vector<16x16x1xf32> to vector<16x16x1xf32>
    %39 = vector.broadcast %38 : vector<16x16x1xf32> to vector<16x16x8xf32>
    %40 = vector.shape_cast %39 : vector<16x16x8xf32> to vector<16x128xf32>
    %41 = vector.extract_strided_slice %20 {offsets = [16, 0], sizes = [16, 128], strides = [1, 1]} : vector<32x128xf32> to vector<16x128xf32>
    %42 = vector.broadcast %2 : vector<1x128xf32> to vector<16x128xf32>
    %43 = arith.mulf %40, %42 : vector<16x128xf32>
    %44 = arith.addf %41, %43 : vector<16x128xf32>
    %45 = arith.mulf %44, %40 : vector<16x128xf32>
    %c1_23 = arith.constant 1 : index
    %c0_24 = arith.constant 0 : index
    %c0_25 = arith.constant 0 : index
    %46 = vector.load %arg7[%c1_23, %c0_24, %c0_25] : memref<2x16x128xf32, #tpu.memory_space<vmem>>, vector<1x16x128xf32>
    %47 = vector.shape_cast %46 : vector<1x16x128xf32> to vector<16x128xf32>
    %48 = vector.shape_cast %45 : vector<16x128xf32> to vector<1x16x128xf32>
    tpu.vector_store %arg7[%c1_23, %c0_24, %c0_25], %48 {strides = array<i32>} : memref<2x16x128xf32, #tpu.memory_space<vmem>>, vector<1x16x128xf32>,
    return
  }
  func.func @transform_0(%arg0: i32, %arg1: i32) -> (i32, i32, i32) {
    %c0_i32 = arith.constant 0 : i32
    %c0_i32_0 = arith.constant 0 : i32
    %c0_i32_1 = arith.constant 0 : i32
    return %arg1, %c0_i32, %c0_i32_0 : i32, i32, i32
  }
  func.func @transform_1(%arg0: i32, %arg1: i32) -> (i32, i32) {
    %c0_i32 = arith.constant 0 : i32
    %c0_i32_0 = arith.constant 0 : i32
    %c0_i32_1 = arith.constant 0 : i32
    return %c0_i32, %c0_i32_0 : i32, i32
  }
  func.func @transform_2(%arg0: i32, %arg1: i32) -> (i32, i32) {
    %c0_i32 = arith.constant 0 : i32
    %c0_i32_0 = arith.constant 0 : i32
    return %c0_i32, %arg0 : i32, i32
  }
  func.func @transform_3(%arg0: i32, %arg1: i32) -> (i32, i32, i32, i32) {
    %c0_i32 = arith.constant 0 : i32
    %c0_i32_0 = arith.constant 0 : i32
    %c0_i32_1 = arith.constant 0 : i32
    return %arg1, %arg0, %c0_i32, %c0_i32_0 : i32, i32, i32, i32
  }
  func.func @transform_4(%arg0: i32, %arg1: i32) -> (i32, i32) {
    %c0_i32 = arith.constant 0 : i32
    %c0_i32_0 = arith.constant 0 : i32
    return %c0_i32, %arg0 : i32, i32
  }
  func.func @transform_5(%arg0: i32, %arg1: i32) -> (i32, i32, i32) {
    %c0_i32 = arith.constant 0 : i32
    %c0_i32_0 = arith.constant 0 : i32
    return %arg1, %c0_i32, %arg0 : i32, i32, i32
  }
}

module attributes {stable_mosaic.version = 11 : i64} {
  func.func @_octree_conv_kernel(%arg0: i32, %arg1: i32, %arg2: memref<2x16x128xbf16, #tpu.memory_space<vmem>>, %arg3: memref<48x16xbf16, #tpu.memory_space<vmem>>, %arg4: memref<384x128xbf16, #tpu.memory_space<vmem>>, %arg5: memref<2x1x16x16xf32, #tpu.memory_space<vmem>>, %arg6: memref<1x128xf32, #tpu.memory_space<vmem>>, %arg7: memref<2x16x128xf32, #tpu.memory_space<vmem>>) attributes {dimension_semantics = [#tpu.dimension_semantics<parallel>, #tpu.dimension_semantics<arbitrary>], iteration_bounds = array<i64: 1, 1>, scalar_prefetch = 0 : i64, scratch_operands = 0 : i64, tpu.core_type = #tpu.core_type<tc>, window_params = [{transform_indices = @transform_0, window_bounds = array<i64: 2, 16, 128>}, {pipeline_mode = #tpu.pipeline_mode<synchronous>, transform_indices = @transform_1, window_bounds = array<i64: 48, 16>}, {transform_indices = @transform_2, window_bounds = array<i64: 384, 128>}, {transform_indices = @transform_3, window_bounds = array<i64: 2, 1, 16, 16>}, {transform_indices = @transform_4, window_bounds = array<i64: 1, 128>}, {transform_indices = @transform_5, window_bounds = array<i64: 2, 16, 128>}]} {
    %c0 = arith.constant 0 : index
    %c0_0 = arith.constant 0 : index
    %0 = vector.load %arg3[%c0, %c0_0] : memref<48x16xbf16, #tpu.memory_space<vmem>>, vector<48x16xbf16>
    %c0_1 = arith.constant 0 : index
    %c0_2 = arith.constant 0 : index
    %1 = vector.load %arg4[%c0_1, %c0_2] : memref<384x128xbf16, #tpu.memory_space<vmem>>, vector<384x128xbf16>
    %c0_3 = arith.constant 0 : index
    %c0_4 = arith.constant 0 : index
    %2 = vector.load %arg6[%c0_3, %c0_4] : memref<1x128xf32, #tpu.memory_space<vmem>>, vector<1x128xf32>
    %c0_5 = arith.constant 0 : index
    %c0_6 = arith.constant 0 : index
    %c0_7 = arith.constant 0 : index
    %3 = vector.load %arg2[%c0_5, %c0_6, %c0_7] : memref<2x16x128xbf16, #tpu.memory_space<vmem>>, vector<1x16x128xbf16>
    %4 = vector.shape_cast %3 : vector<1x16x128xbf16> to vector<16x128xbf16>
    %cst = arith.constant dense<0.000000e+00> : vector<48x128xf32>
    %5 = tpu.matmul %0, %4, %cst {dimension_numbers = #tpu.dot_dimension_numbers<[1], [0], [0], [1], [0, 0, 1, 1], [], []>} : vector<48x16xbf16>, vector<16x128xbf16>, vector<48x128xf32> -> vector<48x128xf32>
    %6 = arith.truncf %5 : vector<48x128xf32> to vector<48x128xbf16>
    %7 = vector.extract_strided_slice %6 {offsets = [0, 0], sizes = [16, 128], strides = [1, 1]} : vector<48x128xbf16> to vector<16x128xbf16>
    %8 = vector.extract_strided_slice %6 {offsets = [16, 0], sizes = [16, 128], strides = [1, 1]} : vector<48x128xbf16> to vector<16x128xbf16>
    %9 = vector.extract_strided_slice %6 {offsets = [32, 0], sizes = [16, 128], strides = [1, 1]} : vector<48x128xbf16> to vector<16x128xbf16>
    %10 = tpu.concatenate %7, %8, %9 in 1 : vector<16x128xbf16>, vector<16x128xbf16>, vector<16x128xbf16> -> vector<16x384xbf16>
    %c1 = arith.constant 1 : index
    %c0_8 = arith.constant 0 : index
    %c0_9 = arith.constant 0 : index
    %11 = vector.load %arg2[%c1, %c0_8, %c0_9] : memref<2x16x128xbf16, #tpu.memory_space<vmem>>, vector<1x16x128xbf16>
    %12 = vector.shape_cast %11 : vector<1x16x128xbf16> to vector<16x128xbf16>
    %cst_10 = arith.constant dense<0.000000e+00> : vector<48x128xf32>
    %13 = tpu.matmul %0, %12, %cst_10 {dimension_numbers = #tpu.dot_dimension_numbers<[1], [0], [0], [1], [0, 0, 1, 1], [], []>} : vector<48x16xbf16>, vector<16x128xbf16>, vector<48x128xf32> -> vector<48x128xf32>
    %14 = arith.truncf %13 : vector<48x128xf32> to vector<48x128xbf16>
    %15 = vector.extract_strided_slice %14 {offsets = [0, 0], sizes = [16, 128], strides = [1, 1]} : vector<48x128xbf16> to vector<16x128xbf16>
    %16 = vector.extract_strided_slice %14 {offsets = [16, 0], sizes = [16, 128], strides = [1, 1]} : vector<48x128xbf16> to vector<16x128xbf16>
    %17 = vector.extract_strided_slice %14 {offsets = [32, 0], sizes = [16, 128], strides = [1, 1]} : vector<48x128xbf16> to vector<16x128xbf16>
    %18 = tpu.concatenate %15, %16, %17 in 1 : vector<16x128xbf16>, vector<16x128xbf16>, vector<16x128xbf16> -> vector<16x384xbf16>
    %19 = tpu.concatenate %10, %18 in 0 : vector<16x384xbf16>, vector<16x384xbf16> -> vector<32x384xbf16>
    %cst_11 = arith.constant dense<0.000000e+00> : vector<32x128xf32>
    %20 = tpu.matmul %19, %1, %cst_11 {dimension_numbers = #tpu.dot_dimension_numbers<[1], [0], [0], [1], [0, 0, 1, 1], [], []>} : vector<32x384xbf16>, vector<384x128xbf16>, vector<32x128xf32> -> vector<32x128xf32>
    %c0_12 = arith.constant 0 : index
    %c0_13 = arith.constant 0 : index
    %c0_14 = arith.constant 0 : index
    %c0_15 = arith.constant 0 : index
    %21 = vector.load %arg5[%c0_12, %c0_13, %c0_14, %c0_15] : memref<2x1x16x16xf32, #tpu.memory_space<vmem>>, vector<1x1x16x16xf32>
    %22 = vector.shape_cast %21 : vector<1x1x16x16xf32> to vector<16x16xf32>
    %23 = vector.shape_cast %22 : vector<16x16xf32> to vector<16x16x1xf32>
    %24 = vector.shape_cast %23 : vector<16x16x1xf32> to vector<16x16x1xf32>
    %25 = vector.broadcast %24 : vector<16x16x1xf32> to vector<16x16x8xf32>
    %26 = vector.shape_cast %25 : vector<16x16x8xf32> to vector<16x128xf32>
    %27 = vector.extract_strided_slice %20 {offsets = [0, 0], sizes = [16, 128], strides = [1, 1]} : vector<32x128xf32> to vector<16x128xf32>
    %28 = vector.broadcast %2 : vector<1x128xf32> to vector<16x128xf32>
    %29 = arith.mulf %26, %28 : vector<16x128xf32>
    %30 = arith.addf %27, %29 : vector<16x128xf32>
    %31 = arith.mulf %30, %26 : vector<16x128xf32>
    %c0_16 = arith.constant 0 : index
    %c0_17 = arith.constant 0 : index
    %c0_18 = arith.constant 0 : index
    %32 = vector.load %arg7[%c0_16, %c0_17, %c0_18] : memref<2x16x128xf32, #tpu.memory_space<vmem>>, vector<1x16x128xf32>
    %33 = vector.shape_cast %32 : vector<1x16x128xf32> to vector<16x128xf32>
    %34 = vector.shape_cast %31 : vector<16x128xf32> to vector<1x16x128xf32>
    tpu.vector_store %arg7[%c0_16, %c0_17, %c0_18], %34 {strides = array<i32>} : memref<2x16x128xf32, #tpu.memory_space<vmem>>, vector<1x16x128xf32>,
    %c1_19 = arith.constant 1 : index
    %c0_20 = arith.constant 0 : index
    %c0_21 = arith.constant 0 : index
    %c0_22 = arith.constant 0 : index
    %35 = vector.load %arg5[%c1_19, %c0_20, %c0_21, %c0_22] : memref<2x1x16x16xf32, #tpu.memory_space<vmem>>, vector<1x1x16x16xf32>
    %36 = vector.shape_cast %35 : vector<1x1x16x16xf32> to vector<16x16xf32>
    %37 = vector.shape_cast %36 : vector<16x16xf32> to vector<16x16x1xf32>
    %38 = vector.shape_cast %37 : vector<16x16x1xf32> to vector<16x16x1xf32>
    %39 = vector.broadcast %38 : vector<16x16x1xf32> to vector<16x16x8xf32>
    %40 = vector.shape_cast %39 : vector<16x16x8xf32> to vector<16x128xf32>
    %41 = vector.extract_strided_slice %20 {offsets = [16, 0], sizes = [16, 128], strides = [1, 1]} : vector<32x128xf32> to vector<16x128xf32>
    %42 = vector.broadcast %2 : vector<1x128xf32> to vector<16x128xf32>
    %43 = arith.mulf %40, %42 : vector<16x128xf32>
    %44 = arith.addf %41, %43 : vector<16x128xf32>
    %45 = arith.mulf %44, %40 : vector<16x128xf32>
    %c1_23 = arith.constant 1 : index
    %c0_24 = arith.constant 0 : index
    %c0_25 = arith.constant 0 : index
    %46 = vector.load %arg7[%c1_23, %c0_24, %c0_25] : memref<2x16x128xf32, #tpu.memory_space<vmem>>, vector<1x16x128xf32>
    %47 = vector.shape_cast %46 : vector<1x16x128xf32> to vector<16x128xf32>
    %48 = vector.shape_cast %45 : vector<16x128xf32> to vector<1x16x128xf32>
    tpu.vector_store %arg7[%c1_23, %c0_24, %c0_25], %48 {strides = array<i32>} : memref<2x16x128xf32, #tpu.memory_space<vmem>>, vector<1x16x128xf32>,
    return
  }
  func.func @transform_0(%arg0: i32, %arg1: i32) -> (i32, i32, i32) {
    %c0_i32 = arith.constant 0 : i32
    %c0_i32_0 = arith.constant 0 : i32
    %c0_i32_1 = arith.constant 0 : i32
    return %arg1, %c0_i32, %c0_i32_0 : i32, i32, i32
  }
  func.func @transform_1(%arg0: i32, %arg1: i32) -> (i32, i32) {
    %c0_i32 = arith.constant 0 : i32
    %c0_i32_0 = arith.constant 0 : i32
    %c0_i32_1 = arith.constant 0 : i32
    return %c0_i32, %c0_i32_0 : i32, i32
  }
  func.func @transform_2(%arg0: i32, %arg1: i32) -> (i32, i32) {
    %c0_i32 = arith.constant 0 : i32
    %c0_i32_0 = arith.constant 0 : i32
    return %c0_i32, %arg0 : i32, i32
  }
  func.func @transform_3(%arg0: i32, %arg1: i32) -> (i32, i32, i32, i32) {
    %c0_i32 = arith.constant 0 : i32
    %c0_i32_0 = arith.constant 0 : i32
    %c0_i32_1 = arith.constant 0 : i32
    return %arg1, %arg0, %c0_i32, %c0_i32_0 : i32, i32, i32, i32
  }
  func.func @transform_4(%arg0: i32, %arg1: i32) -> (i32, i32) {
    %c0_i32 = arith.constant 0 : i32
    %c0_i32_0 = arith.constant 0 : i32
    return %c0_i32, %arg0 : i32, i32
  }
  func.func @transform_5(%arg0: i32, %arg1: i32) -> (i32, i32, i32) {
    %c0_i32 = arith.constant 0 : i32
    %c0_i32_0 = arith.constant 0 : i32
    return %arg1, %c0_i32, %arg0 : i32, i32, i32
  }
}

</mosaic_0001>

<llo_original>
// kernel: tpu_custom_call.1
$region0: #{tpu_custom_call.1}
  #allocation0 [shape = 'u32[]', space=smem, size = 0x4, offset = 0x4, fixed_abs, tag = 'smem constant byte address 0x4 - core index']
  #allocation1 [shape = 'u32[144,128]{1,0:T(1,128)}', space=vmem, size = 0x12000, scoped, tag = 'internal scratch']
  %s0 = inlined_call_operand.hbm [shape: bf16[2,16,128], index: 0, kind: input, shape index: {}]
  %s1 = inlined_call_operand.vmem [shape: bf16[48,16], index: 1, kind: input, shape index: {}]
  %s2 = inlined_call_operand.hbm [shape: bf16[384,128], index: 2, kind: input, shape index: {}]
  %s3 = inlined_call_operand.vmem [shape: f32[2,1,16,16], index: 3, kind: input, shape index: {}]
  %s4 = inlined_call_operand.vmem [shape: f32[1,128], index: 4, kind: input, shape index: {}]
  %s5 = inlined_call_operand.hbm [shape: f32[2,16,128], index: 5, kind: output, shape index: {}]
  %s6 = sld [smem:[#allocation0]]
  $region38: #{tpu_custom_call.1} parent=0
    _
  %s8 = ssub.s32 1, %s6
  %s9 = scalar_select 0, %s8, %s6
  $region1: #{tpu_custom_call.1} parent=0
    #allocation2 [shape = 'u8[8192]{0}', space=vmem, size = 0x2000, scoped, tag = 'input window, operand 0, single buffered']
    #allocation3 [shape = 's32[1]{0}', space=sflag, size = 0x4, scoped, tag = 'scoped memory for tpu_custom_call.1']
    #allocation4 [shape = 's32[1]{0}', space=sflag, size = 0x4, scoped, tag = 'scoped memory for tpu_custom_call.1']
    #allocation5 [shape = 'u8[98304]{0}', space=vmem, size = 0x18000, scoped, tag = 'input window, operand 2, single buffered']
    #allocation6 [shape = 's32[1]{0}', space=sflag, size = 0x4, scoped, tag = 'scoped memory for tpu_custom_call.1']
    #allocation7 [shape = 'u8[16384]{0}', space=vmem, size = 0x4000, scoped, tag = 'output window, operand 0, single buffered']
    %10 = vsyncpa [#allocation3], 0
    %11 = vsyncpa [#allocation6], 0
    %12 = vsyncpa [#allocation4], 0
    // Predicated region
    $region2: #{tpu_custom_call.1} parent=1 // pred_check
      _
    $region3: #{tpu_custom_call.1} parent=1 // pred_check_branch
      %14 = sbr.rel (0) target = $region5
    $region4: #{tpu_custom_call.1} parent=1 // pred_region
      %s16 = ssub.s32 256, 256
      %17 = vsyncadd [#allocation3], %s16
      %s18 = sshll.u32 [#allocation2], 4
      %s19 = int_to_ptr.vmem [resolvable:$true] %s18
      %24 = dma.hbm_to_vmem [thread:$0]  %s0, 256, %s19, [#allocation3], 64, 64, 4
    $region5: #{tpu_custom_call.1} parent=1 // pred_fallthru
      _
    // Predicated region
    $region6: #{tpu_custom_call.1} parent=1 // pred_check
      _
    $region7: #{tpu_custom_call.1} parent=1 // pred_check_branch
      %26 = sbr.rel (0) target = $region9
    $region8: #{tpu_custom_call.1} parent=1 // pred_region
      _
    $region9: #{tpu_custom_call.1} parent=1 // pred_fallthru
      _
    // Predicated region
    $region10: #{tpu_custom_call.1} parent=1 // pred_check
      _
    $region11: #{tpu_custom_call.1} parent=1 // pred_check_branch
      %28 = sbr.rel (0) target = $region13
    $region12: #{tpu_custom_call.1} parent=1 // pred_region
      %s30 = ssub.s32 3072, 3072
      %31 = vsyncadd [#allocation6], %s30
      %s32 = sshll.u32 [#allocation5], 4
      %s33 = int_to_ptr.vmem [resolvable:$true] %s32
      %38 = dma.hbm_to_vmem [thread:$0]  %s2, 3072, %s33, [#allocation6], 64, 64, 4
    $region13: #{tpu_custom_call.1} parent=1 // pred_fallthru
      _
    // Predicated region
    $region14: #{tpu_custom_call.1} parent=1 // pred_check
      _
    $region15: #{tpu_custom_call.1} parent=1 // pred_check_branch
      %40 = sbr.rel (0) target = $region17
    $region16: #{tpu_custom_call.1} parent=1 // pred_region
      _
    $region17: #{tpu_custom_call.1} parent=1 // pred_fallthru
      _
    // Predicated region
    $region18: #{tpu_custom_call.1} parent=1 // pred_check
      _
    $region19: #{tpu_custom_call.1} parent=1 // pred_check_branch
      %42 = sbr.rel (0) target = $region21
    $region20: #{tpu_custom_call.1} parent=1 // pred_region
      _
    $region21: #{tpu_custom_call.1} parent=1 // pred_fallthru
      _
    // Predicated region
    $region22: #{tpu_custom_call.1} parent=1 // pred_check
      _
    $region23: #{tpu_custom_call.1} parent=1 // pred_check_branch
      %44 = sbr.rel (0) target = $region25
    $region24: #{tpu_custom_call.1} parent=1 // pred_region
      %45 = dma.done [#allocation3], 256
    $region25: #{tpu_custom_call.1} parent=1 // pred_fallthru
      _
    // Predicated region
    $region26: #{tpu_custom_call.1} parent=1 // pred_check
      _
    $region27: #{tpu_custom_call.1} parent=1 // pred_check_branch
      %47 = sbr.rel (0) target = $region29
    $region28: #{tpu_custom_call.1} parent=1 // pred_region
      %48 = dma.done [#allocation6], 3072
    $region29: #{tpu_custom_call.1} parent=1 // pred_fallthru
      _
    %v50 = vld [vmem:[%s1] sm:$0xf]
    %v51 = vld [vmem:[%s1 + $0x4] sm:$0xf]
    %v52 = vld [vmem:[%s1 + $0x8] sm:$0xf]
    %v53 = vld [vmem:[%s1 + $0xc] sm:$0xf]
    %v54 = vld [vmem:[%s1 + $0x10] sm:$0xf]
    %v55 = vld [vmem:[%s1 + $0x14] sm:$0xf]
    %v56 = vld [vmem:[#allocation5] sm:$0xf]
    %v57 = vld [vmem:[#allocation5 + $0x4] sm:$0xf]
    %v58 = vld [vmem:[#allocation5 + $0x8] sm:$0xf]
    %v59 = vld [vmem:[#allocation5 + $0xc] sm:$0xf]
    %v60 = vld [vmem:[#allocation5 + $0x10] sm:$0xf]
    %v61 = vld [vmem:[#allocation5 + $0x14] sm:$0xf]
    %v62 = vld [vmem:[#allocation5 + $0x18] sm:$0xf]
    %v63 = vld [vmem:[#allocation5 + $0x1c] sm:$0xf]
    %v64 = vld [vmem:[#allocation5 + $0x20] sm:$0xf]
    %v65 = vld [vmem:[#allocation5 + $0x24] sm:$0xf]
    %v66 = vld [vmem:[#allocation5 + $0x28] sm:$0xf]
    %v67 = vld [vmem:[#allocation5 + $0x2c] sm:$0xf]
    %v68 = vld [vmem:[#allocation5 + $0x30] sm:$0xf]
    %v69 = vld [vmem:[#allocation5 + $0x34] sm:$0xf]
    %v70 = vld [vmem:[#allocation5 + $0x38] sm:$0xf]
    %v71 = vld [vmem:[#allocation5 + $0x3c] sm:$0xf]
    %v72 = vld [vmem:[#allocation5 + $0x40] sm:$0xf]
    %v73 = vld [vmem:[#allocation5 + $0x44] sm:$0xf]
    %v74 = vld [vmem:[#allocation5 + $0x48] sm:$0xf]
    %v75 = vld [vmem:[#allocation5 + $0x4c] sm:$0xf]
    %v76 = vld [vmem:[#allocation5 + $0x50] sm:$0xf]
    %v77 = vld [vmem:[#allocation5 + $0x54] sm:$0xf]
    %v78 = vld [vmem:[#allocation5 + $0x58] sm:$0xf]
    %v79 = vld [vmem:[#allocation5 + $0x5c] sm:$0xf]
    %v80 = vld [vmem:[#allocation5 + $0x60] sm:$0xf]
    %v81 = vld [vmem:[#allocation5 + $0x64] sm:$0xf]
    %v82 = vld [vmem:[#allocation5 + $0x68] sm:$0xf]
    %v83 = vld [vmem:[#allocation5 + $0x6c] sm:$0xf]
    %v84 = vld [vmem:[#allocation5 + $0x70] sm:$0xf]
    %v85 = vld [vmem:[#allocation5 + $0x74] sm:$0xf]
    %v86 = vld [vmem:[#allocation5 + $0x78] sm:$0xf]
    %v87 = vld [vmem:[#allocation5 + $0x7c] sm:$0xf]
    %v88 = vld [vmem:[#allocation5 + $0x80] sm:$0xf]
    %v89 = vld [vmem:[#allocation5 + $0x84] sm:$0xf]
    %v90 = vld [vmem:[#allocation5 + $0x88] sm:$0xf]
    %v91 = vld [vmem:[#allocation5 + $0x8c] sm:$0xf]
    %v92 = vld [vmem:[#allocation5 + $0x90] sm:$0xf]
    %v93 = vld [vmem:[#allocation5 + $0x94] sm:$0xf]
    %v94 = vld [vmem:[#allocation5 + $0x98] sm:$0xf]
    %v95 = vld [vmem:[#allocation5 + $0x9c] sm:$0xf]
    %v96 = vld [vmem:[#allocation5 + $0xa0] sm:$0xf]
    %v97 = vld [vmem:[#allocation5 + $0xa4] sm:$0xf]
    %v98 = vld [vmem:[#allocation5 + $0xa8] sm:$0xf]
    %v99 = vld [vmem:[#allocation5 + $0xac] sm:$0xf]
    %v100 = vld [vmem:[#allocation5 + $0xb0] sm:$0xf]
    %v101 = vld [vmem:[#allocation5 + $0xb4] sm:$0xf]
    %v102 = vld [vmem:[#allocation5 + $0xb8] sm:$0xf]
    %v103 = vld [vmem:[#allocation5 + $0xbc] sm:$0xf]
    %v104 = vld [vmem:[%s4] sm:$0x1]
    %v105 = vld [vmem:[#allocation2] sm:$0xf]
    %v106 = vld [vmem:[#allocation2 + $0x4] sm:$0xf]
    %v113 = vunpack.c.l.b16 %v50
    %v114 = vunpack.c.l.b16 %v51
    %v115 = vunpack.c.l.b16 %v52
    %v116 = vunpack.c.l.b16 %v53
    %v117 = vunpack.c.l.b16 %v54
    %v118 = vunpack.c.l.b16 %v55
    %v119 = vpack.c.b16 %v114, %v113
    %v120 = vpack.c.b16 %v116, %v115
    %v121 = vpack.c.b16 %v118, %v117
    %v124 = vunpack.c.l.b16 %v105
    %v125 = vunpack.c.l.b16 %v106
    %v126 = vpack.c.b16 %v125, %v124
    %vm128 = vcmask 130048
    %v130 = vsel %vm128, %v119, 0
    %v133 = vsel %vm128, %v120, 0
    %v136 = vsel %vm128, %v121, 0
    %138 = vmatprep.subr.bf16.mxu0 0
    %139 = vmatpush1.bf16.msra.mxu0 %v126
    %140 = vmatprep.subr.bf16.mxu0 0
    %141 = vmatpush1.bf16.msra.mxu0 0
    %142 = vmatprep.subr.bf16.mxu0 0
    %143 = vmatpush1.bf16.msra.mxu0 0
    %144 = vmatprep.subr.bf16.mxu0 0
    %145 = vmatpush1.bf16.msra.mxu0 0
    %146 = vmatprep.subr.bf16.mxu0 0
    %147 = vmatpush1.bf16.msra.mxu0 0
    %148 = vmatprep.subr.bf16.mxu0 0
    %149 = vmatpush1.bf16.msra.mxu0 0
    %150 = vmatprep.subr.bf16.mxu0 0
    %151 = vmatpush1.bf16.msra.mxu0 0
    %152 = vmatprep.subr.bf16.mxu0 0
    %153 = vmatpush1.bf16.msra.mxu0 0
    %154 = vmatprep.subr.bf16.mxu0 0
    %155 = vmatpush1.bf16.msra.mxu0 0
    %156 = vmatprep.subr.bf16.mxu0 0
    %157 = vmatpush1.bf16.msra.mxu0 0
    %158 = vmatprep.subr.bf16.mxu0 0
    %159 = vmatpush1.bf16.msra.mxu0 0
    %160 = vmatprep.subr.bf16.mxu0 0
    %161 = vmatpush1.bf16.msra.mxu0 0
    %162 = vmatprep.subr.bf16.mxu0 0
    %163 = vmatpush1.bf16.msra.mxu0 0
    %164 = vmatprep.subr.bf16.mxu0 0
    %165 = vmatpush1.bf16.msra.mxu0 0
    %166 = vmatprep.subr.bf16.mxu0 0
    %167 = vmatpush1.bf16.msra.mxu0 0
    %168 = vmatprep.subr.bf16.mxu0 0
    %169 = vmatpush1.bf16.msra.mxu0 0
    %170 = vmatprep.mubr.bf16.mxu0 0
    %171 = vmatmul.mubr.bf16.gmra.mrb[0].mxu0 %v130
    %v172 = vpop.f32.mrb[0].mxu0
    %v173 = vadd.f32 0.0, %v172
    %v174 = vpop.f32.mrb[0].mxu0
    %v175 = vpop.f32.mrb[0].mxu0
    %v176 = vadd.f32 0.0, %v175
    %v177 = vpop.f32.mrb[0].mxu0
    %178 = vmatprep.mubr.bf16.mxu0 0
    %179 = vmatmul.mubr.bf16.gmra.mrb[0].mxu0 %v133
    %v180 = vpop.f32.mrb[0].mxu0
    %v181 = vadd.f32 0.0, %v180
    %v182 = vpop.f32.mrb[0].mxu0
    %v183 = vpop.f32.mrb[0].mxu0
    %v184 = vadd.f32 0.0, %v183
    %v185 = vpop.f32.mrb[0].mxu0
    %186 = vmatprep.mubr.bf16.mxu0 0
    %187 = vmatmul.mubr.bf16.gmra.mrb[0].mxu0 %v136
    %v188 = vpop.f32.mrb[0].mxu0
    %v189 = vadd.f32 0.0, %v188
    %v190 = vpop.f32.mrb[0].mxu0
    %v191 = vpop.f32.mrb[0].mxu0
    %v192 = vadd.f32 0.0, %v191
    %v193 = vpop.f32.mrb[0].mxu0
    %194 = vdwg.mxu0
    %v195 = vpack.c.bf16 %v176, %v173
    %v196 = vpack.c.bf16 %v184, %v181
    %v197 = vpack.c.bf16 %v192, %v189
    %s198 = scalar_lea.vmem [#allocation2], 8
    %v199 = vld [vmem:[%s198] sm:$0xf]
    %v200 = vld [vmem:[%s198 + $0x4] sm:$0xf]
    %v203 = vunpack.c.l.b16 %v199
    %v204 = vunpack.c.l.b16 %v200
    %v205 = vpack.c.b16 %v204, %v203
    %207 = vmatprep.subr.bf16.mxu0 0
    %208 = vmatpush1.bf16.msra.mxu0 %v205
    %209 = vmatprep.subr.bf16.mxu0 0
    %210 = vmatpush1.bf16.msra.mxu0 0
    %211 = vmatprep.subr.bf16.mxu0 0
    %212 = vmatpush1.bf16.msra.mxu0 0
    %213 = vmatprep.subr.bf16.mxu0 0
    %214 = vmatpush1.bf16.msra.mxu0 0
    %215 = vmatprep.subr.bf16.mxu0 0
    %216 = vmatpush1.bf16.msra.mxu0 0
    %217 = vmatprep.subr.bf16.mxu0 0
    %218 = vmatpush1.bf16.msra.mxu0 0
    %219 = vmatprep.subr.bf16.mxu0 0
    %220 = vmatpush1.bf16.msra.mxu0 0
    %221 = vmatprep.subr.bf16.mxu0 0
    %222 = vmatpush1.bf16.msra.mxu0 0
    %223 = vmatprep.subr.bf16.mxu0 0
    %224 = vmatpush1.bf16.msra.mxu0 0
    %225 = vmatprep.subr.bf16.mxu0 0
    %226 = vmatpush1.bf16.msra.mxu0 0
    %227 = vmatprep.subr.bf16.mxu0 0
    %228 = vmatpush1.bf16.msra.mxu0 0
    %229 = vmatprep.subr.bf16.mxu0 0
    %230 = vmatpush1.bf16.msra.mxu0 0
    %231 = vmatprep.subr.bf16.mxu0 0
    %232 = vmatpush1.bf16.msra.mxu0 0
    %233 = vmatprep.subr.bf16.mxu0 0
    %234 = vmatpush1.bf16.msra.mxu0 0
    %235 = vmatprep.subr.bf16.mxu0 0
    %236 = vmatpush1.bf16.msra.mxu0 0
    %237 = vmatprep.subr.bf16.mxu0 0
    %238 = vmatpush1.bf16.msra.mxu0 0
    %239 = vmatprep.mubr.bf16.mxu0 0
    %240 = vmatmul.mubr.bf16.gmra.mrb[0].mxu0 %v130
    %v241 = vpop.f32.mrb[0].mxu0
    %v242 = vadd.f32 0.0, %v241
    %v243 = vpop.f32.mrb[0].mxu0
    %v244 = vpop.f32.mrb[0].mxu0
    %v245 = vadd.f32 0.0, %v244
    %v246 = vpop.f32.mrb[0].mxu0
    %247 = vmatprep.mubr.bf16.mxu0 0
    %248 = vmatmul.mubr.bf16.gmra.mrb[0].mxu0 %v133
    %v249 = vpop.f32.mrb[0].mxu0
    %v250 = vadd.f32 0.0, %v249
    %v251 = vpop.f32.mrb[0].mxu0
    %v252 = vpop.f32.mrb[0].mxu0
    %v253 = vadd.f32 0.0, %v252
    %v254 = vpop.f32.mrb[0].mxu0
    %255 = vmatprep.mubr.bf16.mxu0 0
    %256 = vmatmul.mubr.bf16.gmra.mrb[0].mxu0 %v136
    %v257 = vpop.f32.mrb[0].mxu0
    %v258 = vadd.f32 0.0, %v257
    %v259 = vpop.f32.mrb[0].mxu0
    %v260 = vpop.f32.mrb[0].mxu0
    %v261 = vadd.f32 0.0, %v260
    %v262 = vpop.f32.mrb[0].mxu0
    %263 = vdwg.mxu0
    %v264 = vpack.c.bf16 %v245, %v242
    %v265 = vpack.c.bf16 %v253, %v250
    %v266 = vpack.c.bf16 %v261, %v258
    %v315 = vunpack.c.l.b16 %v56
    %v316 = vunpack.c.l.b16 %v57
    %v317 = vunpack.c.l.b16 %v58
    %v318 = vunpack.c.l.b16 %v59
    %v319 = vunpack.c.l.b16 %v60
    %v320 = vunpack.c.l.b16 %v61
    %v321 = vunpack.c.l.b16 %v62
    %v322 = vunpack.c.l.b16 %v63
    %v323 = vunpack.c.l.b16 %v64
    %v324 = vunpack.c.l.b16 %v65
    %v325 = vunpack.c.l.b16 %v66
    %v326 = vunpack.c.l.b16 %v67
    %v327 = vunpack.c.l.b16 %v68
    %v328 = vunpack.c.l.b16 %v69
    %v329 = vunpack.c.l.b16 %v70
    %v330 = vunpack.c.l.b16 %v71
    %v331 = vunpack.c.l.b16 %v72
    %v332 = vunpack.c.l.b16 %v73
    %v333 = vunpack.c.l.b16 %v74
    %v334 = vunpack.c.l.b16 %v75
    %v335 = vunpack.c.l.b16 %v76
    %v336 = vunpack.c.l.b16 %v77
    %v337 = vunpack.c.l.b16 %v78
    %v338 = vunpack.c.l.b16 %v79
    %v339 = vunpack.c.l.b16 %v80
    %v340 = vunpack.c.l.b16 %v81
    %v341 = vunpack.c.l.b16 %v82
    %v342 = vunpack.c.l.b16 %v83
    %v343 = vunpack.c.l.b16 %v84
    %v344 = vunpack.c.l.b16 %v85
    %v345 = vunpack.c.l.b16 %v86
    %v346 = vunpack.c.l.b16 %v87
    %v347 = vunpack.c.l.b16 %v88
    %v348 = vunpack.c.l.b16 %v89
    %v349 = vunpack.c.l.b16 %v90
    %v350 = vunpack.c.l.b16 %v91
    %v351 = vunpack.c.l.b16 %v92
    %v352 = vunpack.c.l.b16 %v93
    %v353 = vunpack.c.l.b16 %v94
    %v354 = vunpack.c.l.b16 %v95
    %v355 = vunpack.c.l.b16 %v96
    %v356 = vunpack.c.l.b16 %v97
    %v357 = vunpack.c.l.b16 %v98
    %v358 = vunpack.c.l.b16 %v99
    %v359 = vunpack.c.l.b16 %v100
    %v360 = vunpack.c.l.b16 %v101
    %v361 = vunpack.c.l.b16 %v102
    %v362 = vunpack.c.l.b16 %v103
    %v363 = vpack.c.b16 %v316, %v315
    %v364 = vpack.c.b16 %v318, %v317
    %v365 = vpack.c.b16 %v320, %v319
    %v366 = vpack.c.b16 %v322, %v321
    %v367 = vpack.c.b16 %v324, %v323
    %v368 = vpack.c.b16 %v326, %v325
    %v369 = vpack.c.b16 %v328, %v327
    %v370 = vpack.c.b16 %v330, %v329
    %v371 = vpack.c.b16 %v332, %v331
    %v372 = vpack.c.b16 %v334, %v333
    %v373 = vpack.c.b16 %v336, %v335
    %v374 = vpack.c.b16 %v338, %v337
    %v375 = vpack.c.b16 %v340, %v339
    %v376 = vpack.c.b16 %v342, %v341
    %v377 = vpack.c.b16 %v344, %v343
    %v378 = vpack.c.b16 %v346, %v345
    %v379 = vpack.c.b16 %v348, %v347
    %v380 = vpack.c.b16 %v350, %v349
    %v381 = vpack.c.b16 %v352, %v351
    %v382 = vpack.c.b16 %v354, %v353
    %v383 = vpack.c.b16 %v356, %v355
    %v384 = vpack.c.b16 %v358, %v357
    %v385 = vpack.c.b16 %v360, %v359
    %v386 = vpack.c.b16 %v362, %v361
    %411 = vmatprep.subr.bf16.mxu0 0
    %412 = vmatpush1.bf16.msra.mxu0 %v363
    %413 = vmatprep.subr.bf16.mxu0 0
    %414 = vmatpush1.bf16.msra.mxu0 %v364
    %415 = vmatprep.subr.bf16.mxu0 0
    %416 = vmatpush1.bf16.msra.mxu0 %v365
    %417 = vmatprep.subr.bf16.mxu0 0
    %418 = vmatpush1.bf16.msra.mxu0 %v366
    %419 = vmatprep.subr.bf16.mxu0 0
    %420 = vmatpush1.bf16.msra.mxu0 %v367
    %421 = vmatprep.subr.bf16.mxu0 0
    %422 = vmatpush1.bf16.msra.mxu0 %v368
    %423 = vmatprep.subr.bf16.mxu0 0
    %424 = vmatpush1.bf16.msra.mxu0 %v369
    %425 = vmatprep.subr.bf16.mxu0 0
    %426 = vmatpush1.bf16.msra.mxu0 %v370
    %427 = vmatprep.subr.bf16.mxu0 0
    %428 = vmatpush1.bf16.msra.mxu0 %v371
    %429 = vmatprep.subr.bf16.mxu0 0
    %430 = vmatpush1.bf16.msra.mxu0 %v372
    %431 = vmatprep.subr.bf16.mxu0 0
    %432 = vmatpush1.bf16.msra.mxu0 %v373
    %433 = vmatprep.subr.bf16.mxu0 0
    %434 = vmatpush1.bf16.msra.mxu0 %v374
    %435 = vmatprep.subr.bf16.mxu0 0
    %436 = vmatpush1.bf16.msra.mxu0 %v375
    %437 = vmatprep.subr.bf16.mxu0 0
    %438 = vmatpush1.bf16.msra.mxu0 %v376
    %439 = vmatprep.subr.bf16.mxu0 0
    %440 = vmatpush1.bf16.msra.mxu0 %v377
    %441 = vmatprep.subr.bf16.mxu0 0
    %442 = vmatpush1.bf16.msra.mxu0 %v378
    %443 = vmatprep.mubr.bf16.mxu0 %v196
    %444 = vmatmul.mubr.bf16.gmra.mrb[0].mxu0 %v195
    %v445 = vpop.f32.mrb[0].mxu0
    %v446 = vadd.f32 0.0, %v445
    %v447 = vpop.f32.mrb[0].mxu0
    %v448 = vpop.f32.mrb[0].mxu0
    %v449 = vadd.f32 0.0, %v448
    %v450 = vpop.f32.mrb[0].mxu0
    %451 = vmatprep.mubr.bf16.mxu0 %v265
    %452 = vmatmul.mubr.bf16.gmra.mrb[0].mxu0 %v264
    %v453 = vpop.f32.mrb[0].mxu0
    %v454 = vadd.f32 0.0, %v453
    %v455 = vpop.f32.mrb[0].mxu0
    %v456 = vpop.f32.mrb[0].mxu0
    %v457 = vadd.f32 0.0, %v456
    %v458 = vpop.f32.mrb[0].mxu0
    %459 = vdwg.mxu0
    %460 = vmatprep.subr.bf16.mxu0 0
    %461 = vmatpush1.bf16.msra.mxu0 %v379
    %462 = vmatprep.subr.bf16.mxu0 0
    %463 = vmatpush1.bf16.msra.mxu0 %v380
    %464 = vmatprep.subr.bf16.mxu0 0
    %465 = vmatpush1.bf16.msra.mxu0 %v381
    %466 = vmatprep.subr.bf16.mxu0 0
    %467 = vmatpush1.bf16.msra.mxu0 %v382
    %468 = vmatprep.subr.bf16.mxu0 0
    %469 = vmatpush1.bf16.msra.mxu0 %v383
    %470 = vmatprep.subr.bf16.mxu0 0
    %471 = vmatpush1.bf16.msra.mxu0 %v384
    %472 = vmatprep.subr.bf16.mxu0 0
    %473 = vmatpush1.bf16.msra.mxu0 %v385
    %474 = vmatprep.subr.bf16.mxu0 0
    %475 = vmatpush1.bf16.msra.mxu0 %v386
    %476 = vmatprep.subr.bf16.mxu0 0
    %477 = vmatpush1.bf16.msra.mxu0 0
    %478 = vmatprep.subr.bf16.mxu0 0
    %479 = vmatpush1.bf16.msra.mxu0 0
    %480 = vmatprep.subr.bf16.mxu0 0
    %481 = vmatpush1.bf16.msra.mxu0 0
    %482 = vmatprep.subr.bf16.mxu0 0
    %483 = vmatpush1.bf16.msra.mxu0 0
    %484 = vmatprep.subr.bf16.mxu0 0
    %485 = vmatpush1.bf16.msra.mxu0 0
    %486 = vmatprep.subr.bf16.mxu0 0
    %487 = vmatpush1.bf16.msra.mxu0 0
    %488 = vmatprep.subr.bf16.mxu0 0
    %489 = vmatpush1.bf16.msra.mxu0 0
    %490 = vmatprep.subr.bf16.mxu0 0
    %491 = vmatpush1.bf16.msra.mxu0 0
    %492 = vmatprep.mubr.bf16.mxu0 0
    %493 = vmatmul.mubr.bf16.gmra.mrb[0].mxu0 %v197
    %v494 = vpop.f32.mrb[0].mxu0
    %v495 = vadd.f32 %v446, %v494
    %v496 = vpop.f32.mrb[0].mxu0
    %v497 = vpop.f32.mrb[0].mxu0
    %v498 = vadd.f32 %v449, %v497
    %v499 = vpop.f32.mrb[0].mxu0
    %500 = vmatprep.mubr.bf16.mxu0 0
    %501 = vmatmul.mubr.bf16.gmra.mrb[0].mxu0 %v266
    %v502 = vpop.f32.mrb[0].mxu0
    %v503 = vadd.f32 %v454, %v502
    %v504 = vpop.f32.mrb[0].mxu0
    %v505 = vpop.f32.mrb[0].mxu0
    %v506 = vadd.f32 %v457, %v505
    %v507 = vpop.f32.mrb[0].mxu0
    %508 = vdwg.mxu0
    %v509 = vld [vmem:[%s3] sm:$0xff]
    %v510 = vld [vmem:[%s3 + $0x8] sm:$0xff]
    %v511 = vlaneseq
    %v512 = vshrl.u32 %v511, 7
    %v513 = vsub.s32 0, %v512
    %v514 = vrot.slane %v509, %v513
    %516 = vbcast.lane.b32.xlu0 %v514, 256
    %v517 = vpop.permute.xlu0 %516
    %s519 = sor.u32 256, 8
    %520 = vbcast.lane.b32.xlu0 %v514, %s519
    %v521 = vpop.permute.xlu0 %520
    %v522 = vlaneseq
    %v523 = vshrl.u32 %v522, 7
    %v524 = vsub.s32 1, %v523
    %v525 = vrot.slane %v509, %v524
    %527 = vbcast.lane.b32.xlu0 %v525, 256
    %v528 = vpop.permute.xlu0 %527
    %s530 = sor.u32 256, 8
    %531 = vbcast.lane.b32.xlu0 %v525, %s530
    %v532 = vpop.permute.xlu0 %531
    %v533 = vlaneseq
    %v534 = vshrl.u32 %v533, 7
    %v535 = vsub.s32 2, %v534
    %v536 = vrot.slane %v509, %v535
    %538 = vbcast.lane.b32.xlu0 %v536, 256
    %v539 = vpop.permute.xlu0 %538
    %s541 = sor.u32 256, 8
    %542 = vbcast.lane.b32.xlu0 %v536, %s541
    %v543 = vpop.permute.xlu0 %542
    %v544 = vlaneseq
    %v545 = vshrl.u32 %v544, 7
    %v546 = vsub.s32 3, %v545
    %v547 = vrot.slane %v509, %v546
    %549 = vbcast.lane.b32.xlu0 %v547, 256
    %v550 = vpop.permute.xlu0 %549
    %s552 = sor.u32 256, 8
    %553 = vbcast.lane.b32.xlu0 %v547, %s552
    %v554 = vpop.permute.xlu0 %553
    %v555 = vlaneseq
    %v556 = vshrl.u32 %v555, 7
    %v557 = vsub.s32 4, %v556
    %v558 = vrot.slane %v509, %v557
    %560 = vbcast.lane.b32.xlu0 %v558, 256
    %v561 = vpop.permute.xlu0 %560
    %s563 = sor.u32 256, 8
    %564 = vbcast.lane.b32.xlu0 %v558, %s563
    %v565 = vpop.permute.xlu0 %564
    %v566 = vlaneseq
    %v567 = vshrl.u32 %v566, 7
    %v568 = vsub.s32 5, %v567
    %v569 = vrot.slane %v509, %v568
    %571 = vbcast.lane.b32.xlu0 %v569, 256
    %v572 = vpop.permute.xlu0 %571
    %s574 = sor.u32 256, 8
    %575 = vbcast.lane.b32.xlu0 %v569, %s574
    %v576 = vpop.permute.xlu0 %575
    %v577 = vlaneseq
    %v578 = vshrl.u32 %v577, 7
    %v579 = vsub.s32 6, %v578
    %v580 = vrot.slane %v509, %v579
    %582 = vbcast.lane.b32.xlu0 %v580, 256
    %v583 = vpop.permute.xlu0 %582
    %s585 = sor.u32 256, 8
    %586 = vbcast.lane.b32.xlu0 %v580, %s585
    %v587 = vpop.permute.xlu0 %586
    %v588 = vlaneseq
    %v589 = vshrl.u32 %v588, 7
    %v590 = vsub.s32 7, %v589
    %v591 = vrot.slane %v509, %v590
    %593 = vbcast.lane.b32.xlu0 %v591, 256
    %v594 = vpop.permute.xlu0 %593
    %s596 = sor.u32 256, 8
    %597 = vbcast.lane.b32.xlu0 %v591, %s596
    %v598 = vpop.permute.xlu0 %597
    %v599 = vlaneseq
    %v600 = vshrl.u32 %v599, 7
    %v601 = vsub.s32 0, %v600
    %v602 = vrot.slane %v510, %v601
    %604 = vbcast.lane.b32.xlu0 %v602, 256
    %v605 = vpop.permute.xlu0 %604
    %s607 = sor.u32 256, 8
    %608 = vbcast.lane.b32.xlu0 %v602, %s607
    %v609 = vpop.permute.xlu0 %608
    %v610 = vlaneseq
    %v611 = vshrl.u32 %v610, 7
    %v612 = vsub.s32 1, %v611
    %v613 = vrot.slane %v510, %v612
    %615 = vbcast.lane.b32.xlu0 %v613, 256
    %v616 = vpop.permute.xlu0 %615
    %s618 = sor.u32 256, 8
    %619 = vbcast.lane.b32.xlu0 %v613, %s618
    %v620 = vpop.permute.xlu0 %619
    %v621 = vlaneseq
    %v622 = vshrl.u32 %v621, 7
    %v623 = vsub.s32 2, %v622
    %v624 = vrot.slane %v510, %v623
    %626 = vbcast.lane.b32.xlu0 %v624, 256
    %v627 = vpop.permute.xlu0 %626
    %s629 = sor.u32 256, 8
    %630 = vbcast.lane.b32.xlu0 %v624, %s629
    %v631 = vpop.permute.xlu0 %630
    %v632 = vlaneseq
    %v633 = vshrl.u32 %v632, 7
    %v634 = vsub.s32 3, %v633
    %v635 = vrot.slane %v510, %v634
    %637 = vbcast.lane.b32.xlu0 %v635, 256
    %v638 = vpop.permute.xlu0 %637
    %s640 = sor.u32 256, 8
    %641 = vbcast.lane.b32.xlu0 %v635, %s640
    %v642 = vpop.permute.xlu0 %641
    %v643 = vlaneseq
    %v644 = vshrl.u32 %v643, 7
    %v645 = vsub.s32 4, %v644
    %v646 = vrot.slane %v510, %v645
    %648 = vbcast.lane.b32.xlu0 %v646, 256
    %v649 = vpop.permute.xlu0 %648
    %s651 = sor.u32 256, 8
    %652 = vbcast.lane.b32.xlu0 %v646, %s651
    %v653 = vpop.permute.xlu0 %652
    %v654 = vlaneseq
    %v655 = vshrl.u32 %v654, 7
    %v656 = vsub.s32 5, %v655
    %v657 = vrot.slane %v510, %v656
    %659 = vbcast.lane.b32.xlu0 %v657, 256
    %v660 = vpop.permute.xlu0 %659
    %s662 = sor.u32 256, 8
    %663 = vbcast.lane.b32.xlu0 %v657, %s662
    %v664 = vpop.permute.xlu0 %663
    %v665 = vlaneseq
    %v666 = vshrl.u32 %v665, 7
    %v667 = vsub.s32 6, %v666
    %v668 = vrot.slane %v510, %v667
    %670 = vbcast.lane.b32.xlu0 %v668, 256
    %v671 = vpop.permute.xlu0 %670
    %s673 = sor.u32 256, 8
    %674 = vbcast.lane.b32.xlu0 %v668, %s673
    %v675 = vpop.permute.xlu0 %674
    %v676 = vlaneseq
    %v677 = vshrl.u32 %v676, 7
    %v678 = vsub.s32 7, %v677
    %v679 = vrot.slane %v510, %v678
    %681 = vbcast.lane.b32.xlu0 %v679, 256
    %v682 = vpop.permute.xlu0 %681
    %s684 = sor.u32 256, 8
    %685 = vbcast.lane.b32.xlu0 %v679, %s684
    %v686 = vpop.permute.xlu0 %685
    %v687 = vcombine.low %v517, %v539
    %v688 = vcombine.high %v517, %v539
    %v690 = vunpack.c.l.s4 1983009808
    %v691 = vunpack.c.0.s8 %v690
    %v692 = vlaneseq
    %v693 = vshrl.u32 %v692, 7
    %v694 = vsub.s32 %v691, %v693
    %v695 = vrot.slane %v687, %v694
    %v697 = vunpack.c.l.s4 1983009808
    %v698 = vunpack.c.0.s8 %v697
    %v699 = vlaneseq
    %v700 = vshrl.u32 %v699, 7
    %v701 = vsub.s32 %v698, %v700
    %v702 = vrot.slane %v688, %v701
    %v703 = vcombine.low %v528, %v550
    %v704 = vcombine.high %v528, %v550
    %v706 = vunpack.c.l.s4 1983009808
    %v707 = vunpack.c.0.s8 %v706
    %v708 = vlaneseq
    %v709 = vshrl.u32 %v708, 7
    %v710 = vsub.s32 %v707, %v709
    %v711 = vrot.slane %v703, %v710
    %v713 = vunpack.c.l.s4 1983009808
    %v714 = vunpack.c.0.s8 %v713
    %v715 = vlaneseq
    %v716 = vshrl.u32 %v715, 7
    %v717 = vsub.s32 %v714, %v716
    %v718 = vrot.slane %v704, %v717
    %v719 = vcombine.low %v561, %v583
    %v720 = vcombine.high %v561, %v583
    %v722 = vunpack.c.l.s4 1983009808
    %v723 = vunpack.c.0.s8 %v722
    %v724 = vlaneseq
    %v725 = vshrl.u32 %v724, 7
    %v726 = vsub.s32 %v723, %v725
    %v727 = vrot.slane %v719, %v726
    %v729 = vunpack.c.l.s4 1983009808
    %v730 = vunpack.c.0.s8 %v729
    %v731 = vlaneseq
    %v732 = vshrl.u32 %v731, 7
    %v733 = vsub.s32 %v730, %v732
    %v734 = vrot.slane %v720, %v733
    %v735 = vcombine.low %v572, %v594
    %v736 = vcombine.high %v572, %v594
    %v738 = vunpack.c.l.s4 1983009808
    %v739 = vunpack.c.0.s8 %v738
    %v740 = vlaneseq
    %v741 = vshrl.u32 %v740, 7
    %v742 = vsub.s32 %v739, %v741
    %v743 = vrot.slane %v735, %v742
    %v745 = vunpack.c.l.s4 1983009808
    %v746 = vunpack.c.0.s8 %v745
    %v747 = vlaneseq
    %v748 = vshrl.u32 %v747, 7
    %v749 = vsub.s32 %v746, %v748
    %v750 = vrot.slane %v736, %v749
    %v751 = vcombine.low %v695, %v711
    %v752 = vcombine.high %v695, %v711
    %v754 = vunpack.c.l.s4 1934713408
    %v755 = vunpack.c.0.s8 %v754
    %v756 = vlaneseq
    %v757 = vshrl.u32 %v756, 7
    %v758 = vsub.s32 %v755, %v757
    %v759 = vrot.slane %v751, %v758
    %v761 = vunpack.c.l.s4 1934713408
    %v762 = vunpack.c.0.s8 %v761
    %v763 = vlaneseq
    %v764 = vshrl.u32 %v763, 7
    %v765 = vsub.s32 %v762, %v764
    %v766 = vrot.slane %v752, %v765
    %v767 = vcombine.low %v702, %v718
    %v768 = vcombine.high %v702, %v718
    %v770 = vunpack.c.l.s4 1934713408
    %v771 = vunpack.c.0.s8 %v770
    %v772 = vlaneseq
    %v773 = vshrl.u32 %v772, 7
    %v774 = vsub.s32 %v771, %v773
    %v775 = vrot.slane %v767, %v774
    %v777 = vunpack.c.l.s4 1934713408
    %v778 = vunpack.c.0.s8 %v777
    %v779 = vlaneseq
    %v780 = vshrl.u32 %v779, 7
    %v781 = vsub.s32 %v778, %v780
    %v782 = vrot.slane %v768, %v781
    %v783 = vcombine.low %v727, %v743
    %v784 = vcombine.high %v727, %v743
    %v786 = vunpack.c.l.s4 1934713408
    %v787 = vunpack.c.0.s8 %v786
    %v788 = vlaneseq
    %v789 = vshrl.u32 %v788, 7
    %v790 = vsub.s32 %v787, %v789
    %v791 = vrot.slane %v783, %v790
    %v793 = vunpack.c.l.s4 1934713408
    %v794 = vunpack.c.0.s8 %v793
    %v795 = vlaneseq
    %v796 = vshrl.u32 %v795, 7
    %v797 = vsub.s32 %v794, %v796
    %v798 = vrot.slane %v784, %v797
    %v799 = vcombine.low %v734, %v750
    %v800 = vcombine.high %v734, %v750
    %v802 = vunpack.c.l.s4 1934713408
    %v803 = vunpack.c.0.s8 %v802
    %v804 = vlaneseq
    %v805 = vshrl.u32 %v804, 7
    %v806 = vsub.s32 %v803, %v805
    %v807 = vrot.slane %v799, %v806
    %v809 = vunpack.c.l.s4 1934713408
    %v810 = vunpack.c.0.s8 %v809
    %v811 = vlaneseq
    %v812 = vshrl.u32 %v811, 7
    %v813 = vsub.s32 %v810, %v812
    %v814 = vrot.slane %v800, %v813
    %v815 = vcombine.low %v759, %v791
    %v816 = vcombine.high %v759, %v791
    %v817 = vcombine.low %v766, %v798
    %v818 = vcombine.high %v766, %v798
    %v819 = vcombine.low %v775, %v807
    %v820 = vcombine.high %v775, %v807
    %v821 = vcombine.low %v782, %v814
    %v822 = vcombine.high %v782, %v814
    %v823 = vcombine.low %v605, %v627
    %v824 = vcombine.high %v605, %v627
    %v826 = vunpack.c.l.s4 1983009808
    %v827 = vunpack.c.0.s8 %v826
    %v828 = vlaneseq
    %v829 = vshrl.u32 %v828, 7
    %v830 = vsub.s32 %v827, %v829
    %v831 = vrot.slane %v823, %v830
    %v833 = vunpack.c.l.s4 1983009808
    %v834 = vunpack.c.0.s8 %v833
    %v835 = vlaneseq
    %v836 = vshrl.u32 %v835, 7
    %v837 = vsub.s32 %v834, %v836
    %v838 = vrot.slane %v824, %v837
    %v839 = vcombine.low %v616, %v638
    %v840 = vcombine.high %v616, %v638
    %v842 = vunpack.c.l.s4 1983009808
    %v843 = vunpack.c.0.s8 %v842
    %v844 = vlaneseq
    %v845 = vshrl.u32 %v844, 7
    %v846 = vsub.s32 %v843, %v845
    %v847 = vrot.slane %v839, %v846
    %v849 = vunpack.c.l.s4 1983009808
    %v850 = vunpack.c.0.s8 %v849
    %v851 = vlaneseq
    %v852 = vshrl.u32 %v851, 7
    %v853 = vsub.s32 %v850, %v852
    %v854 = vrot.slane %v840, %v853
    %v855 = vcombine.low %v649, %v671
    %v856 = vcombine.high %v649, %v671
    %v858 = vunpack.c.l.s4 1983009808
    %v859 = vunpack.c.0.s8 %v858
    %v860 = vlaneseq
    %v861 = vshrl.u32 %v860, 7
    %v862 = vsub.s32 %v859, %v861
    %v863 = vrot.slane %v855, %v862
    %v865 = vunpack.c.l.s4 1983009808
    %v866 = vunpack.c.0.s8 %v865
    %v867 = vlaneseq
    %v868 = vshrl.u32 %v867, 7
    %v869 = vsub.s32 %v866, %v868
    %v870 = vrot.slane %v856, %v869
    %v871 = vcombine.low %v660, %v682
    %v872 = vcombine.high %v660, %v682
    %v874 = vunpack.c.l.s4 1983009808
    %v875 = vunpack.c.0.s8 %v874
    %v876 = vlaneseq
    %v877 = vshrl.u32 %v876, 7
    %v878 = vsub.s32 %v875, %v877
    %v879 = vrot.slane %v871, %v878
    %v881 = vunpack.c.l.s4 1983009808
    %v882 = vunpack.c.0.s8 %v881
    %v883 = vlaneseq
    %v884 = vshrl.u32 %v883, 7
    %v885 = vsub.s32 %v882, %v884
    %v886 = vrot.slane %v872, %v885
    %v887 = vcombine.low %v831, %v847
    %v888 = vcombine.high %v831, %v847
    %v890 = vunpack.c.l.s4 1934713408
    %v891 = vunpack.c.0.s8 %v890
    %v892 = vlaneseq
    %v893 = vshrl.u32 %v892, 7
    %v894 = vsub.s32 %v891, %v893
    %v895 = vrot.slane %v887, %v894
    %v897 = vunpack.c.l.s4 1934713408
    %v898 = vunpack.c.0.s8 %v897
    %v899 = vlaneseq
    %v900 = vshrl.u32 %v899, 7
    %v901 = vsub.s32 %v898, %v900
    %v902 = vrot.slane %v888, %v901
    %v903 = vcombine.low %v838, %v854
    %v904 = vcombine.high %v838, %v854
    %v906 = vunpack.c.l.s4 1934713408
    %v907 = vunpack.c.0.s8 %v906
    %v908 = vlaneseq
    %v909 = vshrl.u32 %v908, 7
    %v910 = vsub.s32 %v907, %v909
    %v911 = vrot.slane %v903, %v910
    %v913 = vunpack.c.l.s4 1934713408
    %v914 = vunpack.c.0.s8 %v913
    %v915 = vlaneseq
    %v916 = vshrl.u32 %v915, 7
    %v917 = vsub.s32 %v914, %v916
    %v918 = vrot.slane %v904, %v917
    %v919 = vcombine.low %v863, %v879
    %v920 = vcombine.high %v863, %v879
    %v922 = vunpack.c.l.s4 1934713408
    %v923 = vunpack.c.0.s8 %v922
    %v924 = vlaneseq
    %v925 = vshrl.u32 %v924, 7
    %v926 = vsub.s32 %v923, %v925
    %v927 = vrot.slane %v919, %v926
    %v929 = vunpack.c.l.s4 1934713408
    %v930 = vunpack.c.0.s8 %v929
    %v931 = vlaneseq
    %v932 = vshrl.u32 %v931, 7
    %v933 = vsub.s32 %v930, %v932
    %v934 = vrot.slane %v920, %v933
    %v935 = vcombine.low %v870, %v886
    %v936 = vcombine.high %v870, %v886
    %v938 = vunpack.c.l.s4 1934713408
    %v939 = vunpack.c.0.s8 %v938
    %v940 = vlaneseq
    %v941 = vshrl.u32 %v940, 7
    %v942 = vsub.s32 %v939, %v941
    %v943 = vrot.slane %v935, %v942
    %v945 = vunpack.c.l.s4 1934713408
    %v946 = vunpack.c.0.s8 %v945
    %v947 = vlaneseq
    %v948 = vshrl.u32 %v947, 7
    %v949 = vsub.s32 %v946, %v948
    %v950 = vrot.slane %v936, %v949
    %v951 = vcombine.low %v895, %v927
    %v952 = vcombine.high %v895, %v927
    %v953 = vcombine.low %v902, %v934
    %v954 = vcombine.high %v902, %v934
    %v955 = vcombine.low %v911, %v943
    %v956 = vcombine.high %v911, %v943
    %v957 = vcombine.low %v918, %v950
    %v958 = vcombine.high %v918, %v950
    %v959 = vcombine.low %v521, %v543
    %v960 = vcombine.high %v521, %v543
    %v962 = vunpack.c.l.s4 1983009808
    %v963 = vunpack.c.0.s8 %v962
    %v964 = vlaneseq
    %v965 = vshrl.u32 %v964, 7
    %v966 = vsub.s32 %v963, %v965
    %v967 = vrot.slane %v959, %v966
    %v969 = vunpack.c.l.s4 1983009808
    %v970 = vunpack.c.0.s8 %v969
    %v971 = vlaneseq
    %v972 = vshrl.u32 %v971, 7
    %v973 = vsub.s32 %v970, %v972
    %v974 = vrot.slane %v960, %v973
    %v975 = vcombine.low %v532, %v554
    %v976 = vcombine.high %v532, %v554
    %v978 = vunpack.c.l.s4 1983009808
    %v979 = vunpack.c.0.s8 %v978
    %v980 = vlaneseq
    %v981 = vshrl.u32 %v980, 7
    %v982 = vsub.s32 %v979, %v981
    %v983 = vrot.slane %v975, %v982
    %v985 = vunpack.c.l.s4 1983009808
    %v986 = vunpack.c.0.s8 %v985
    %v987 = vlaneseq
    %v988 = vshrl.u32 %v987, 7
    %v989 = vsub.s32 %v986, %v988
    %v990 = vrot.slane %v976, %v989
    %v991 = vcombine.low %v565, %v587
    %v992 = vcombine.high %v565, %v587
    %v994 = vunpack.c.l.s4 1983009808
    %v995 = vunpack.c.0.s8 %v994
    %v996 = vlaneseq
    %v997 = vshrl.u32 %v996, 7
    %v998 = vsub.s32 %v995, %v997
    %v999 = vrot.slane %v991, %v998
    %v1001 = vunpack.c.l.s4 1983009808
    %v1002 = vunpack.c.0.s8 %v1001
    %v1003 = vlaneseq
    %v1004 = vshrl.u32 %v1003, 7
    %v1005 = vsub.s32 %v1002, %v1004
    %v1006 = vrot.slane %v992, %v1005
    %v1007 = vcombine.low %v576, %v598
    %v1008 = vcombine.high %v576, %v598
    %v1010 = vunpack.c.l.s4 1983009808
    %v1011 = vunpack.c.0.s8 %v1010
    %v1012 = vlaneseq
    %v1013 = vshrl.u32 %v1012, 7
    %v1014 = vsub.s32 %v1011, %v1013
    %v1015 = vrot.slane %v1007, %v1014
    %v1017 = vunpack.c.l.s4 1983009808
    %v1018 = vunpack.c.0.s8 %v1017
    %v1019 = vlaneseq
    %v1020 = vshrl.u32 %v1019, 7
    %v1021 = vsub.s32 %v1018, %v1020
    %v1022 = vrot.slane %v1008, %v1021
    %v1023 = vcombine.low %v967, %v983
    %v1024 = vcombine.high %v967, %v983
    %v1026 = vunpack.c.l.s4 1934713408
    %v1027 = vunpack.c.0.s8 %v1026
    %v1028 = vlaneseq
    %v1029 = vshrl.u32 %v1028, 7
    %v1030 = vsub.s32 %v1027, %v1029
    %v1031 = vrot.slane %v1023, %v1030
    %v1033 = vunpack.c.l.s4 1934713408
    %v1034 = vunpack.c.0.s8 %v1033
    %v1035 = vlaneseq
    %v1036 = vshrl.u32 %v1035, 7
    %v1037 = vsub.s32 %v1034, %v1036
    %v1038 = vrot.slane %v1024, %v1037
    %v1039 = vcombine.low %v974, %v990
    %v1040 = vcombine.high %v974, %v990
    %v1042 = vunpack.c.l.s4 1934713408
    %v1043 = vunpack.c.0.s8 %v1042
    %v1044 = vlaneseq
    %v1045 = vshrl.u32 %v1044, 7
    %v1046 = vsub.s32 %v1043, %v1045
    %v1047 = vrot.slane %v1039, %v1046
    %v1049 = vunpack.c.l.s4 1934713408
    %v1050 = vunpack.c.0.s8 %v1049
    %v1051 = vlaneseq
    %v1052 = vshrl.u32 %v1051, 7
    %v1053 = vsub.s32 %v1050, %v1052
    %v1054 = vrot.slane %v1040, %v1053
    %v1055 = vcombine.low %v999, %v1015
    %v1056 = vcombine.high %v999, %v1015
    %v1058 = vunpack.c.l.s4 1934713408
    %v1059 = vunpack.c.0.s8 %v1058
    %v1060 = vlaneseq
    %v1061 = vshrl.u32 %v1060, 7
    %v1062 = vsub.s32 %v1059, %v1061
    %v1063 = vrot.slane %v1055, %v1062
    %v1065 = vunpack.c.l.s4 1934713408
    %v1066 = vunpack.c.0.s8 %v1065
    %v1067 = vlaneseq
    %v1068 = vshrl.u32 %v1067, 7
    %v1069 = vsub.s32 %v1066, %v1068
    %v1070 = vrot.slane %v1056, %v1069
    %v1071 = vcombine.low %v1006, %v1022
    %v1072 = vcombine.high %v1006, %v1022
    %v1074 = vunpack.c.l.s4 1934713408
    %v1075 = vunpack.c.0.s8 %v1074
    %v1076 = vlaneseq
    %v1077 = vshrl.u32 %v1076, 7
    %v1078 = vsub.s32 %v1075, %v1077
    %v1079 = vrot.slane %v1071, %v1078
    %v1081 = vunpack.c.l.s4 1934713408
    %v1082 = vunpack.c.0.s8 %v1081
    %v1083 = vlaneseq
    %v1084 = vshrl.u32 %v1083, 7
    %v1085 = vsub.s32 %v1082, %v1084
    %v1086 = vrot.slane %v1072, %v1085
    %v1087 = vcombine.low %v1031, %v1063
    %v1088 = vcombine.high %v1031, %v1063
    %v1089 = vcombine.low %v1038, %v1070
    %v1090 = vcombine.high %v1038, %v1070
    %v1091 = vcombine.low %v1047, %v1079
    %v1092 = vcombine.high %v1047, %v1079
    %v1093 = vcombine.low %v1054, %v1086
    %v1094 = vcombine.high %v1054, %v1086
    %v1095 = vcombine.low %v609, %v631
    %v1096 = vcombine.high %v609, %v631
    %v1098 = vunpack.c.l.s4 1983009808
    %v1099 = vunpack.c.0.s8 %v1098
    %v1100 = vlaneseq
    %v1101 = vshrl.u32 %v1100, 7
    %v1102 = vsub.s32 %v1099, %v1101
    %v1103 = vrot.slane %v1095, %v1102
    %v1105 = vunpack.c.l.s4 1983009808
    %v1106 = vunpack.c.0.s8 %v1105
    %v1107 = vlaneseq
    %v1108 = vshrl.u32 %v1107, 7
    %v1109 = vsub.s32 %v1106, %v1108
    %v1110 = vrot.slane %v1096, %v1109
    %v1111 = vcombine.low %v620, %v642
    %v1112 = vcombine.high %v620, %v642
    %v1114 = vunpack.c.l.s4 1983009808
    %v1115 = vunpack.c.0.s8 %v1114
    %v1116 = vlaneseq
    %v1117 = vshrl.u32 %v1116, 7
    %v1118 = vsub.s32 %v1115, %v1117
    %v1119 = vrot.slane %v1111, %v1118
    %v1121 = vunpack.c.l.s4 1983009808
    %v1122 = vunpack.c.0.s8 %v1121
    %v1123 = vlaneseq
    %v1124 = vshrl.u32 %v1123, 7
    %v1125 = vsub.s32 %v1122, %v1124
    %v1126 = vrot.slane %v1112, %v1125
    %v1127 = vcombine.low %v653, %v675
    %v1128 = vcombine.high %v653, %v675
    %v1130 = vunpack.c.l.s4 1983009808
    %v1131 = vunpack.c.0.s8 %v1130
    %v1132 = vlaneseq
    %v1133 = vshrl.u32 %v1132, 7
    %v1134 = vsub.s32 %v1131, %v1133
    %v1135 = vrot.slane %v1127, %v1134
    %v1137 = vunpack.c.l.s4 1983009808
    %v1138 = vunpack.c.0.s8 %v1137
    %v1139 = vlaneseq
    %v1140 = vshrl.u32 %v1139, 7
    %v1141 = vsub.s32 %v1138, %v1140
    %v1142 = vrot.slane %v1128, %v1141
    %v1143 = vcombine.low %v664, %v686
    %v1144 = vcombine.high %v664, %v686
    %v1146 = vunpack.c.l.s4 1983009808
    %v1147 = vunpack.c.0.s8 %v1146
    %v1148 = vlaneseq
    %v1149 = vshrl.u32 %v1148, 7
    %v1150 = vsub.s32 %v1147, %v1149
    %v1151 = vrot.slane %v1143, %v1150
    %v1153 = vunpack.c.l.s4 1983009808
    %v1154 = vunpack.c.0.s8 %v1153
    %v1155 = vlaneseq
    %v1156 = vshrl.u32 %v1155, 7
    %v1157 = vsub.s32 %v1154, %v1156
    %v1158 = vrot.slane %v1144, %v1157
    %v1159 = vcombine.low %v1103, %v1119
    %v1160 = vcombine.high %v1103, %v1119
    %v1162 = vunpack.c.l.s4 1934713408
    %v1163 = vunpack.c.0.s8 %v1162
    %v1164 = vlaneseq
    %v1165 = vshrl.u32 %v1164, 7
    %v1166 = vsub.s32 %v1163, %v1165
    %v1167 = vrot.slane %v1159, %v1166
    %v1169 = vunpack.c.l.s4 1934713408
    %v1170 = vunpack.c.0.s8 %v1169
    %v1171 = vlaneseq
    %v1172 = vshrl.u32 %v1171, 7
    %v1173 = vsub.s32 %v1170, %v1172
    %v1174 = vrot.slane %v1160, %v1173
    %v1175 = vcombine.low %v1110, %v1126
    %v1176 = vcombine.high %v1110, %v1126
    %v1178 = vunpack.c.l.s4 1934713408
    %v1179 = vunpack.c.0.s8 %v1178
    %v1180 = vlaneseq
    %v1181 = vshrl.u32 %v1180, 7
    %v1182 = vsub.s32 %v1179, %v1181
    %v1183 = vrot.slane %v1175, %v1182
    %v1185 = vunpack.c.l.s4 1934713408
    %v1186 = vunpack.c.0.s8 %v1185
    %v1187 = vlaneseq
    %v1188 = vshrl.u32 %v1187, 7
    %v1189 = vsub.s32 %v1186, %v1188
    %v1190 = vrot.slane %v1176, %v1189
    %v1191 = vcombine.low %v1135, %v1151
    %v1192 = vcombine.high %v1135, %v1151
    %v1194 = vunpack.c.l.s4 1934713408
    %v1195 = vunpack.c.0.s8 %v1194
    %v1196 = vlaneseq
    %v1197 = vshrl.u32 %v1196, 7
    %v1198 = vsub.s32 %v1195, %v1197
    %v1199 = vrot.slane %v1191, %v1198
    %v1201 = vunpack.c.l.s4 1934713408
    %v1202 = vunpack.c.0.s8 %v1201
    %v1203 = vlaneseq
    %v1204 = vshrl.u32 %v1203, 7
    %v1205 = vsub.s32 %v1202, %v1204
    %v1206 = vrot.slane %v1192, %v1205
    %v1207 = vcombine.low %v1142, %v1158
    %v1208 = vcombine.high %v1142, %v1158
    %v1210 = vunpack.c.l.s4 1934713408
    %v1211 = vunpack.c.0.s8 %v1210
    %v1212 = vlaneseq
    %v1213 = vshrl.u32 %v1212, 7
    %v1214 = vsub.s32 %v1211, %v1213
    %v1215 = vrot.slane %v1207, %v1214
    %v1217 = vunpack.c.l.s4 1934713408
    %v1218 = vunpack.c.0.s8 %v1217
    %v1219 = vlaneseq
    %v1220 = vshrl.u32 %v1219, 7
    %v1221 = vsub.s32 %v1218, %v1220
    %v1222 = vrot.slane %v1208, %v1221
    %v1223 = vcombine.low %v1167, %v1199
    %v1224 = vcombine.high %v1167, %v1199
    %v1225 = vcombine.low %v1174, %v1206
    %v1226 = vcombine.high %v1174, %v1206
    %v1227 = vcombine.low %v1183, %v1215
    %v1228 = vcombine.high %v1183, %v1215
    %v1229 = vcombine.low %v1190, %v1222
    %v1230 = vcombine.high %v1190, %v1222
    %1233 = vrot.lane.b32.xlu0 %v816, 8
    %v1234 = vpop.permute.xlu0 %1233
    %1235 = vrot.lane.b32.xlu0 %v952, 8
    %v1236 = vpop.permute.xlu0 %1235
    %1241 = vrot.lane.b32.xlu0 %v817, 16
    %v1242 = vpop.permute.xlu0 %1241
    %1243 = vrot.lane.b32.xlu0 %v953, 16
    %v1244 = vpop.permute.xlu0 %1243
    %1249 = vrot.lane.b32.xlu0 %v818, 24
    %v1250 = vpop.permute.xlu0 %1249
    %1251 = vrot.lane.b32.xlu0 %v954, 24
    %v1252 = vpop.permute.xlu0 %1251
    %1257 = vrot.lane.b32.xlu0 %v819, 32
    %v1258 = vpop.permute.xlu0 %1257
    %1259 = vrot.lane.b32.xlu0 %v955, 32
    %v1260 = vpop.permute.xlu0 %1259
    %1265 = vrot.lane.b32.xlu0 %v820, 40
    %v1266 = vpop.permute.xlu0 %1265
    %1267 = vrot.lane.b32.xlu0 %v956, 40
    %v1268 = vpop.permute.xlu0 %1267
    %1273 = vrot.lane.b32.xlu0 %v821, 48
    %v1274 = vpop.permute.xlu0 %1273
    %1275 = vrot.lane.b32.xlu0 %v957, 48
    %v1276 = vpop.permute.xlu0 %1275
    %1281 = vrot.lane.b32.xlu0 %v822, 56
    %v1282 = vpop.permute.xlu0 %1281
    %1283 = vrot.lane.b32.xlu0 %v958, 56
    %v1284 = vpop.permute.xlu0 %1283
    %1289 = vrot.lane.b32.xlu0 %v1087, 64
    %v1290 = vpop.permute.xlu0 %1289
    %1291 = vrot.lane.b32.xlu0 %v1223, 64
    %v1292 = vpop.permute.xlu0 %1291
    %1297 = vrot.lane.b32.xlu0 %v1088, 72
    %v1298 = vpop.permute.xlu0 %1297
    %1299 = vrot.lane.b32.xlu0 %v1224, 72
    %v1300 = vpop.permute.xlu0 %1299
    %1305 = vrot.lane.b32.xlu0 %v1089, 80
    %v1306 = vpop.permute.xlu0 %1305
    %1307 = vrot.lane.b32.xlu0 %v1225, 80
    %v1308 = vpop.permute.xlu0 %1307
    %1313 = vrot.lane.b32.xlu0 %v1090, 88
    %v1314 = vpop.permute.xlu0 %1313
    %1315 = vrot.lane.b32.xlu0 %v1226, 88
    %v1316 = vpop.permute.xlu0 %1315
    %1321 = vrot.lane.b32.xlu0 %v1091, 96
    %v1322 = vpop.permute.xlu0 %1321
    %1323 = vrot.lane.b32.xlu0 %v1227, 96
    %v1324 = vpop.permute.xlu0 %1323
    %1329 = vrot.lane.b32.xlu0 %v1092, 104
    %v1330 = vpop.permute.xlu0 %1329
    %1331 = vrot.lane.b32.xlu0 %v1228, 104
    %v1332 = vpop.permute.xlu0 %1331
    %1337 = vrot.lane.b32.xlu0 %v1093, 112
    %v1338 = vpop.permute.xlu0 %1337
    %1339 = vrot.lane.b32.xlu0 %v1229, 112
    %v1340 = vpop.permute.xlu0 %1339
    %1345 = vrot.lane.b32.xlu0 %v1094, 120
    %v1346 = vpop.permute.xlu0 %1345
    %1347 = vrot.lane.b32.xlu0 %v1230, 120
    %v1348 = vpop.permute.xlu0 %1347
    %vm1351 = vcmask 64512
    %v1352 = vsel %vm1351, %v815, %v1234
    %v1353 = vsel %vm1351, %v951, %v1236
    %v1354 = vsel %vm128, %v1352, %v1242
    %v1355 = vsel %vm128, %v1353, %v1244
    %vm1356 = vcmask 195584
    %v1357 = vsel %vm1356, %v1354, %v1250
    %v1358 = vsel %vm1356, %v1355, %v1252
    %vm1359 = vcmask 261120
    %v1360 = vsel %vm1359, %v1357, %v1258
    %v1361 = vsel %vm1359, %v1358, %v1260
    %vm1362 = vcmask 326656
    %v1363 = vsel %vm1362, %v1360, %v1266
    %v1364 = vsel %vm1362, %v1361, %v1268
    %vm1365 = vcmask 392192
    %v1366 = vsel %vm1365, %v1363, %v1274
    %v1367 = vsel %vm1365, %v1364, %v1276
    %vm1368 = vcmask 457728
    %v1369 = vsel %vm1368, %v1366, %v1282
    %v1370 = vsel %vm1368, %v1367, %v1284
    %vm1371 = vcmask 523264
    %v1372 = vsel %vm1371, %v1369, %v1290
    %v1373 = vsel %vm1371, %v1370, %v1292
    %vm1374 = vcmask 588800
    %v1375 = vsel %vm1374, %v1372, %v1298
    %v1376 = vsel %vm1374, %v1373, %v1300
    %vm1377 = vcmask 654336
    %v1378 = vsel %vm1377, %v1375, %v1306
    %v1379 = vsel %vm1377, %v1376, %v1308
    %vm1380 = vcmask 719872
    %v1381 = vsel %vm1380, %v1378, %v1314
    %v1382 = vsel %vm1380, %v1379, %v1316
    %vm1383 = vcmask 785408
    %v1384 = vsel %vm1383, %v1381, %v1322
    %v1385 = vsel %vm1383, %v1382, %v1324
    %vm1386 = vcmask 850944
    %v1387 = vsel %vm1386, %v1384, %v1330
    %v1388 = vsel %vm1386, %v1385, %v1332
    %vm1389 = vcmask 916480
    %v1390 = vsel %vm1389, %v1387, %v1338
    %v1391 = vsel %vm1389, %v1388, %v1340
    %vm1392 = vcmask 982016
    %v1393 = vsel %vm1392, %v1390, %v1346
    %v1394 = vsel %vm1392, %v1391, %v1348
    %v1396 = vlaneseq
    %v1397 = vshrl.u32 %v1396, 7
    %v1398 = vsub.s32 0, %v1397
    %v1399 = vrot.slane %v104, %v1398
    %v1401 = vmul.f32 %v1393, %v1399
    %v1402 = vmul.f32 %v1394, %v1399
    %v1403 = vadd.f32 %v495, %v1401
    %v1404 = vadd.f32 %v498, %v1402
    %v1405 = vmul.f32 %v1403, %v1393
    %v1406 = vmul.f32 %v1404, %v1394
    %1407 = vst [vmem:[#allocation7] sm:$0xff] %v1405
    %1408 = vst [vmem:[#allocation7 + $0x8] sm:$0xff] %v1406
    %s1409 = scalar_lea.vmem %s3, 16
    %v1410 = vld [vmem:[%s1409] sm:$0xff]
    %v1411 = vld [vmem:[%s1409 + $0x8] sm:$0xff]
    %v1412 = vlaneseq
    %v1413 = vshrl.u32 %v1412, 7
    %v1414 = vsub.s32 0, %v1413
    %v1415 = vrot.slane %v1410, %v1414
    %1417 = vbcast.lane.b32.xlu0 %v1415, 256
    %v1418 = vpop.permute.xlu0 %1417
    %s1420 = sor.u32 256, 8
    %1421 = vbcast.lane.b32.xlu0 %v1415, %s1420
    %v1422 = vpop.permute.xlu0 %1421
    %v1423 = vlaneseq
    %v1424 = vshrl.u32 %v1423, 7
    %v1425 = vsub.s32 1, %v1424
    %v1426 = vrot.slane %v1410, %v1425
    %1428 = vbcast.lane.b32.xlu0 %v1426, 256
    %v1429 = vpop.permute.xlu0 %1428
    %s1431 = sor.u32 256, 8
    %1432 = vbcast.lane.b32.xlu0 %v1426, %s1431
    %v1433 = vpop.permute.xlu0 %1432
    %v1434 = vlaneseq
    %v1435 = vshrl.u32 %v1434, 7
    %v1436 = vsub.s32 2, %v1435
    %v1437 = vrot.slane %v1410, %v1436
    %1439 = vbcast.lane.b32.xlu0 %v1437, 256
    %v1440 = vpop.permute.xlu0 %1439
    %s1442 = sor.u32 256, 8
    %1443 = vbcast.lane.b32.xlu0 %v1437, %s1442
    %v1444 = vpop.permute.xlu0 %1443
    %v1445 = vlaneseq
    %v1446 = vshrl.u32 %v1445, 7
    %v1447 = vsub.s32 3, %v1446
    %v1448 = vrot.slane %v1410, %v1447
    %1450 = vbcast.lane.b32.xlu0 %v1448, 256
    %v1451 = vpop.permute.xlu0 %1450
    %s1453 = sor.u32 256, 8
    %1454 = vbcast.lane.b32.xlu0 %v1448, %s1453
    %v1455 = vpop.permute.xlu0 %1454
    %v1456 = vlaneseq
    %v1457 = vshrl.u32 %v1456, 7
    %v1458 = vsub.s32 4, %v1457
    %v1459 = vrot.slane %v1410, %v1458
    %1461 = vbcast.lane.b32.xlu0 %v1459, 256
    %v1462 = vpop.permute.xlu0 %1461
    %s1464 = sor.u32 256, 8
    %1465 = vbcast.lane.b32.xlu0 %v1459, %s1464
    %v1466 = vpop.permute.xlu0 %1465
    %v1467 = vlaneseq
    %v1468 = vshrl.u32 %v1467, 7
    %v1469 = vsub.s32 5, %v1468
    %v1470 = vrot.slane %v1410, %v1469
    %1472 = vbcast.lane.b32.xlu0 %v1470, 256
    %v1473 = vpop.permute.xlu0 %1472
    %s1475 = sor.u32 256, 8
    %1476 = vbcast.lane.b32.xlu0 %v1470, %s1475
    %v1477 = vpop.permute.xlu0 %1476
    %v1478 = vlaneseq
    %v1479 = vshrl.u32 %v1478, 7
    %v1480 = vsub.s32 6, %v1479
    %v1481 = vrot.slane %v1410, %v1480
    %1483 = vbcast.lane.b32.xlu0 %v1481, 256
    %v1484 = vpop.permute.xlu0 %1483
    %s1486 = sor.u32 256, 8
    %1487 = vbcast.lane.b32.xlu0 %v1481, %s1486
    %v1488 = vpop.permute.xlu0 %1487
    %v1489 = vlaneseq
    %v1490 = vshrl.u32 %v1489, 7
    %v1491 = vsub.s32 7, %v1490
    %v1492 = vrot.slane %v1410, %v1491
    %1494 = vbcast.lane.b32.xlu0 %v1492, 256
    %v1495 = vpop.permute.xlu0 %1494
    %s1497 = sor.u32 256, 8
    %1498 = vbcast.lane.b32.xlu0 %v1492, %s1497
    %v1499 = vpop.permute.xlu0 %1498
    %v1500 = vlaneseq
    %v1501 = vshrl.u32 %v1500, 7
    %v1502 = vsub.s32 0, %v1501
    %v1503 = vrot.slane %v1411, %v1502
    %1505 = vbcast.lane.b32.xlu0 %v1503, 256
    %v1506 = vpop.permute.xlu0 %1505
    %s1508 = sor.u32 256, 8
    %1509 = vbcast.lane.b32.xlu0 %v1503, %s1508
    %v1510 = vpop.permute.xlu0 %1509
    %v1511 = vlaneseq
    %v1512 = vshrl.u32 %v1511, 7
    %v1513 = vsub.s32 1, %v1512
    %v1514 = vrot.slane %v1411, %v1513
    %1516 = vbcast.lane.b32.xlu0 %v1514, 256
    %v1517 = vpop.permute.xlu0 %1516
    %s1519 = sor.u32 256, 8
    %1520 = vbcast.lane.b32.xlu0 %v1514, %s1519
    %v1521 = vpop.permute.xlu0 %1520
    %v1522 = vlaneseq
    %v1523 = vshrl.u32 %v1522, 7
    %v1524 = vsub.s32 2, %v1523
    %v1525 = vrot.slane %v1411, %v1524
    %1527 = vbcast.lane.b32.xlu0 %v1525, 256
    %v1528 = vpop.permute.xlu0 %1527
    %s1530 = sor.u32 256, 8
    %1531 = vbcast.lane.b32.xlu0 %v1525, %s1530
    %v1532 = vpop.permute.xlu0 %1531
    %v1533 = vlaneseq
    %v1534 = vshrl.u32 %v1533, 7
    %v1535 = vsub.s32 3, %v1534
    %v1536 = vrot.slane %v1411, %v1535
    %1538 = vbcast.lane.b32.xlu0 %v1536, 256
    %v1539 = vpop.permute.xlu0 %1538
    %s1541 = sor.u32 256, 8
    %1542 = vbcast.lane.b32.xlu0 %v1536, %s1541
    %v1543 = vpop.permute.xlu0 %1542
    %v1544 = vlaneseq
    %v1545 = vshrl.u32 %v1544, 7
    %v1546 = vsub.s32 4, %v1545
    %v1547 = vrot.slane %v1411, %v1546
    %1549 = vbcast.lane.b32.xlu0 %v1547, 256
    %v1550 = vpop.permute.xlu0 %1549
    %s1552 = sor.u32 256, 8
    %1553 = vbcast.lane.b32.xlu0 %v1547, %s1552
    %v1554 = vpop.permute.xlu0 %1553
    %v1555 = vlaneseq
    %v1556 = vshrl.u32 %v1555, 7
    %v1557 = vsub.s32 5, %v1556
    %v1558 = vrot.slane %v1411, %v1557
    %1560 = vbcast.lane.b32.xlu0 %v1558, 256
    %v1561 = vpop.permute.xlu0 %1560
    %s1563 = sor.u32 256, 8
    %1564 = vbcast.lane.b32.xlu0 %v1558, %s1563
    %v1565 = vpop.permute.xlu0 %1564
    %v1566 = vlaneseq
    %v1567 = vshrl.u32 %v1566, 7
    %v1568 = vsub.s32 6, %v1567
    %v1569 = vrot.slane %v1411, %v1568
    %1571 = vbcast.lane.b32.xlu0 %v1569, 256
    %v1572 = vpop.permute.xlu0 %1571
    %s1574 = sor.u32 256, 8
    %1575 = vbcast.lane.b32.xlu0 %v1569, %s1574
    %v1576 = vpop.permute.xlu0 %1575
    %v1577 = vlaneseq
    %v1578 = vshrl.u32 %v1577, 7
    %v1579 = vsub.s32 7, %v1578
    %v1580 = vrot.slane %v1411, %v1579
    %1582 = vbcast.lane.b32.xlu0 %v1580, 256
    %v1583 = vpop.permute.xlu0 %1582
    %s1585 = sor.u32 256, 8
    %1586 = vbcast.lane.b32.xlu0 %v1580, %s1585
    %v1587 = vpop.permute.xlu0 %1586
    %v1588 = vcombine.low %v1418, %v1440
    %v1589 = vcombine.high %v1418, %v1440
    %v1591 = vunpack.c.l.s4 1983009808
    %v1592 = vunpack.c.0.s8 %v1591
    %v1593 = vlaneseq
    %v1594 = vshrl.u32 %v1593, 7
    %v1595 = vsub.s32 %v1592, %v1594
    %v1596 = vrot.slane %v1588, %v1595
    %v1598 = vunpack.c.l.s4 1983009808
    %v1599 = vunpack.c.0.s8 %v1598
    %v1600 = vlaneseq
    %v1601 = vshrl.u32 %v1600, 7
    %v1602 = vsub.s32 %v1599, %v1601
    %v1603 = vrot.slane %v1589, %v1602
    %v1604 = vcombine.low %v1429, %v1451
    %v1605 = vcombine.high %v1429, %v1451
    %v1607 = vunpack.c.l.s4 1983009808
    %v1608 = vunpack.c.0.s8 %v1607
    %v1609 = vlaneseq
    %v1610 = vshrl.u32 %v1609, 7
    %v1611 = vsub.s32 %v1608, %v1610
    %v1612 = vrot.slane %v1604, %v1611
    %v1614 = vunpack.c.l.s4 1983009808
    %v1615 = vunpack.c.0.s8 %v1614
    %v1616 = vlaneseq
    %v1617 = vshrl.u32 %v1616, 7
    %v1618 = vsub.s32 %v1615, %v1617
    %v1619 = vrot.slane %v1605, %v1618
    %v1620 = vcombine.low %v1462, %v1484
    %v1621 = vcombine.high %v1462, %v1484
    %v1623 = vunpack.c.l.s4 1983009808
    %v1624 = vunpack.c.0.s8 %v1623
    %v1625 = vlaneseq
    %v1626 = vshrl.u32 %v1625, 7
    %v1627 = vsub.s32 %v1624, %v1626
    %v1628 = vrot.slane %v1620, %v1627
    %v1630 = vunpack.c.l.s4 1983009808
    %v1631 = vunpack.c.0.s8 %v1630
    %v1632 = vlaneseq
    %v1633 = vshrl.u32 %v1632, 7
    %v1634 = vsub.s32 %v1631, %v1633
    %v1635 = vrot.slane %v1621, %v1634
    %v1636 = vcombine.low %v1473, %v1495
    %v1637 = vcombine.high %v1473, %v1495
    %v1639 = vunpack.c.l.s4 1983009808
    %v1640 = vunpack.c.0.s8 %v1639
    %v1641 = vlaneseq
    %v1642 = vshrl.u32 %v1641, 7
    %v1643 = vsub.s32 %v1640, %v1642
    %v1644 = vrot.slane %v1636, %v1643
    %v1646 = vunpack.c.l.s4 1983009808
    %v1647 = vunpack.c.0.s8 %v1646
    %v1648 = vlaneseq
    %v1649 = vshrl.u32 %v1648, 7
    %v1650 = vsub.s32 %v1647, %v1649
    %v1651 = vrot.slane %v1637, %v1650
    %v1652 = vcombine.low %v1596, %v1612
    %v1653 = vcombine.high %v1596, %v1612
    %v1655 = vunpack.c.l.s4 1934713408
    %v1656 = vunpack.c.0.s8 %v1655
    %v1657 = vlaneseq
    %v1658 = vshrl.u32 %v1657, 7
    %v1659 = vsub.s32 %v1656, %v1658
    %v1660 = vrot.slane %v1652, %v1659
    %v1662 = vunpack.c.l.s4 1934713408
    %v1663 = vunpack.c.0.s8 %v1662
    %v1664 = vlaneseq
    %v1665 = vshrl.u32 %v1664, 7
    %v1666 = vsub.s32 %v1663, %v1665
    %v1667 = vrot.slane %v1653, %v1666
    %v1668 = vcombine.low %v1603, %v1619
    %v1669 = vcombine.high %v1603, %v1619
    %v1671 = vunpack.c.l.s4 1934713408
    %v1672 = vunpack.c.0.s8 %v1671
    %v1673 = vlaneseq
    %v1674 = vshrl.u32 %v1673, 7
    %v1675 = vsub.s32 %v1672, %v1674
    %v1676 = vrot.slane %v1668, %v1675
    %v1678 = vunpack.c.l.s4 1934713408
    %v1679 = vunpack.c.0.s8 %v1678
    %v1680 = vlaneseq
    %v1681 = vshrl.u32 %v1680, 7
    %v1682 = vsub.s32 %v1679, %v1681
    %v1683 = vrot.slane %v1669, %v1682
    %v1684 = vcombine.low %v1628, %v1644
    %v1685 = vcombine.high %v1628, %v1644
    %v1687 = vunpack.c.l.s4 1934713408
    %v1688 = vunpack.c.0.s8 %v1687
    %v1689 = vlaneseq
    %v1690 = vshrl.u32 %v1689, 7
    %v1691 = vsub.s32 %v1688, %v1690
    %v1692 = vrot.slane %v1684, %v1691
    %v1694 = vunpack.c.l.s4 1934713408
    %v1695 = vunpack.c.0.s8 %v1694
    %v1696 = vlaneseq
    %v1697 = vshrl.u32 %v1696, 7
    %v1698 = vsub.s32 %v1695, %v1697
    %v1699 = vrot.slane %v1685, %v1698
    %v1700 = vcombine.low %v1635, %v1651
    %v1701 = vcombine.high %v1635, %v1651
    %v1703 = vunpack.c.l.s4 1934713408
    %v1704 = vunpack.c.0.s8 %v1703
    %v1705 = vlaneseq
    %v1706 = vshrl.u32 %v1705, 7
    %v1707 = vsub.s32 %v1704, %v1706
    %v1708 = vrot.slane %v1700, %v1707
    %v1710 = vunpack.c.l.s4 1934713408
    %v1711 = vunpack.c.0.s8 %v1710
    %v1712 = vlaneseq
    %v1713 = vshrl.u32 %v1712, 7
    %v1714 = vsub.s32 %v1711, %v1713
    %v1715 = vrot.slane %v1701, %v1714
    %v1716 = vcombine.low %v1660, %v1692
    %v1717 = vcombine.high %v1660, %v1692
    %v1718 = vcombine.low %v1667, %v1699
    %v1719 = vcombine.high %v1667, %v1699
    %v1720 = vcombine.low %v1676, %v1708
    %v1721 = vcombine.high %v1676, %v1708
    %v1722 = vcombine.low %v1683, %v1715
    %v1723 = vcombine.high %v1683, %v1715
    %v1724 = vcombine.low %v1506, %v1528
    %v1725 = vcombine.high %v1506, %v1528
    %v1727 = vunpack.c.l.s4 1983009808
    %v1728 = vunpack.c.0.s8 %v1727
    %v1729 = vlaneseq
    %v1730 = vshrl.u32 %v1729, 7
    %v1731 = vsub.s32 %v1728, %v1730
    %v1732 = vrot.slane %v1724, %v1731
    %v1734 = vunpack.c.l.s4 1983009808
    %v1735 = vunpack.c.0.s8 %v1734
    %v1736 = vlaneseq
    %v1737 = vshrl.u32 %v1736, 7
    %v1738 = vsub.s32 %v1735, %v1737
    %v1739 = vrot.slane %v1725, %v1738
    %v1740 = vcombine.low %v1517, %v1539
    %v1741 = vcombine.high %v1517, %v1539
    %v1743 = vunpack.c.l.s4 1983009808
    %v1744 = vunpack.c.0.s8 %v1743
    %v1745 = vlaneseq
    %v1746 = vshrl.u32 %v1745, 7
    %v1747 = vsub.s32 %v1744, %v1746
    %v1748 = vrot.slane %v1740, %v1747
    %v1750 = vunpack.c.l.s4 1983009808
    %v1751 = vunpack.c.0.s8 %v1750
    %v1752 = vlaneseq
    %v1753 = vshrl.u32 %v1752, 7
    %v1754 = vsub.s32 %v1751, %v1753
    %v1755 = vrot.slane %v1741, %v1754
    %v1756 = vcombine.low %v1550, %v1572
    %v1757 = vcombine.high %v1550, %v1572
    %v1759 = vunpack.c.l.s4 1983009808
    %v1760 = vunpack.c.0.s8 %v1759
    %v1761 = vlaneseq
    %v1762 = vshrl.u32 %v1761, 7
    %v1763 = vsub.s32 %v1760, %v1762
    %v1764 = vrot.slane %v1756, %v1763
    %v1766 = vunpack.c.l.s4 1983009808
    %v1767 = vunpack.c.0.s8 %v1766
    %v1768 = vlaneseq
    %v1769 = vshrl.u32 %v1768, 7
    %v1770 = vsub.s32 %v1767, %v1769
    %v1771 = vrot.slane %v1757, %v1770
    %v1772 = vcombine.low %v1561, %v1583
    %v1773 = vcombine.high %v1561, %v1583
    %v1775 = vunpack.c.l.s4 1983009808
    %v1776 = vunpack.c.0.s8 %v1775
    %v1777 = vlaneseq
    %v1778 = vshrl.u32 %v1777, 7
    %v1779 = vsub.s32 %v1776, %v1778
    %v1780 = vrot.slane %v1772, %v1779
    %v1782 = vunpack.c.l.s4 1983009808
    %v1783 = vunpack.c.0.s8 %v1782
    %v1784 = vlaneseq
    %v1785 = vshrl.u32 %v1784, 7
    %v1786 = vsub.s32 %v1783, %v1785
    %v1787 = vrot.slane %v1773, %v1786
    %v1788 = vcombine.low %v1732, %v1748
    %v1789 = vcombine.high %v1732, %v1748
    %v1791 = vunpack.c.l.s4 1934713408
    %v1792 = vunpack.c.0.s8 %v1791
    %v1793 = vlaneseq
    %v1794 = vshrl.u32 %v1793, 7
    %v1795 = vsub.s32 %v1792, %v1794
    %v1796 = vrot.slane %v1788, %v1795
    %v1798 = vunpack.c.l.s4 1934713408
    %v1799 = vunpack.c.0.s8 %v1798
    %v1800 = vlaneseq
    %v1801 = vshrl.u32 %v1800, 7
    %v1802 = vsub.s32 %v1799, %v1801
    %v1803 = vrot.slane %v1789, %v1802
    %v1804 = vcombine.low %v1739, %v1755
    %v1805 = vcombine.high %v1739, %v1755
    %v1807 = vunpack.c.l.s4 1934713408
    %v1808 = vunpack.c.0.s8 %v1807
    %v1809 = vlaneseq
    %v1810 = vshrl.u32 %v1809, 7
    %v1811 = vsub.s32 %v1808, %v1810
    %v1812 = vrot.slane %v1804, %v1811
    %v1814 = vunpack.c.l.s4 1934713408
    %v1815 = vunpack.c.0.s8 %v1814
    %v1816 = vlaneseq
    %v1817 = vshrl.u32 %v1816, 7
    %v1818 = vsub.s32 %v1815, %v1817
    %v1819 = vrot.slane %v1805, %v1818
    %v1820 = vcombine.low %v1764, %v1780
    %v1821 = vcombine.high %v1764, %v1780
    %v1823 = vunpack.c.l.s4 1934713408
    %v1824 = vunpack.c.0.s8 %v1823
    %v1825 = vlaneseq
    %v1826 = vshrl.u32 %v1825, 7
    %v1827 = vsub.s32 %v1824, %v1826
    %v1828 = vrot.slane %v1820, %v1827
    %v1830 = vunpack.c.l.s4 1934713408
    %v1831 = vunpack.c.0.s8 %v1830
    %v1832 = vlaneseq
    %v1833 = vshrl.u32 %v1832, 7
    %v1834 = vsub.s32 %v1831, %v1833
    %v1835 = vrot.slane %v1821, %v1834
    %v1836 = vcombine.low %v1771, %v1787
    %v1837 = vcombine.high %v1771, %v1787
    %v1839 = vunpack.c.l.s4 1934713408
    %v1840 = vunpack.c.0.s8 %v1839
    %v1841 = vlaneseq
    %v1842 = vshrl.u32 %v1841, 7
    %v1843 = vsub.s32 %v1840, %v1842
    %v1844 = vrot.slane %v1836, %v1843
    %v1846 = vunpack.c.l.s4 1934713408
    %v1847 = vunpack.c.0.s8 %v1846
    %v1848 = vlaneseq
    %v1849 = vshrl.u32 %v1848, 7
    %v1850 = vsub.s32 %v1847, %v1849
    %v1851 = vrot.slane %v1837, %v1850
    %v1852 = vcombine.low %v1796, %v1828
    %v1853 = vcombine.high %v1796, %v1828
    %v1854 = vcombine.low %v1803, %v1835
    %v1855 = vcombine.high %v1803, %v1835
    %v1856 = vcombine.low %v1812, %v1844
    %v1857 = vcombine.high %v1812, %v1844
    %v1858 = vcombine.low %v1819, %v1851
    %v1859 = vcombine.high %v1819, %v1851
    %v1860 = vcombine.low %v1422, %v1444
    %v1861 = vcombine.high %v1422, %v1444
    %v1863 = vunpack.c.l.s4 1983009808
    %v1864 = vunpack.c.0.s8 %v1863
    %v1865 = vlaneseq
    %v1866 = vshrl.u32 %v1865, 7
    %v1867 = vsub.s32 %v1864, %v1866
    %v1868 = vrot.slane %v1860, %v1867
    %v1870 = vunpack.c.l.s4 1983009808
    %v1871 = vunpack.c.0.s8 %v1870
    %v1872 = vlaneseq
    %v1873 = vshrl.u32 %v1872, 7
    %v1874 = vsub.s32 %v1871, %v1873
    %v1875 = vrot.slane %v1861, %v1874
    %v1876 = vcombine.low %v1433, %v1455
    %v1877 = vcombine.high %v1433, %v1455
    %v1879 = vunpack.c.l.s4 1983009808
    %v1880 = vunpack.c.0.s8 %v1879
    %v1881 = vlaneseq
    %v1882 = vshrl.u32 %v1881, 7
    %v1883 = vsub.s32 %v1880, %v1882
    %v1884 = vrot.slane %v1876, %v1883
    %v1886 = vunpack.c.l.s4 1983009808
    %v1887 = vunpack.c.0.s8 %v1886
    %v1888 = vlaneseq
    %v1889 = vshrl.u32 %v1888, 7
    %v1890 = vsub.s32 %v1887, %v1889
    %v1891 = vrot.slane %v1877, %v1890
    %v1892 = vcombine.low %v1466, %v1488
    %v1893 = vcombine.high %v1466, %v1488
    %v1895 = vunpack.c.l.s4 1983009808
    %v1896 = vunpack.c.0.s8 %v1895
    %v1897 = vlaneseq
    %v1898 = vshrl.u32 %v1897, 7
    %v1899 = vsub.s32 %v1896, %v1898
    %v1900 = vrot.slane %v1892, %v1899
    %v1902 = vunpack.c.l.s4 1983009808
    %v1903 = vunpack.c.0.s8 %v1902
    %v1904 = vlaneseq
    %v1905 = vshrl.u32 %v1904, 7
    %v1906 = vsub.s32 %v1903, %v1905
    %v1907 = vrot.slane %v1893, %v1906
    %v1908 = vcombine.low %v1477, %v1499
    %v1909 = vcombine.high %v1477, %v1499
    %v1911 = vunpack.c.l.s4 1983009808
    %v1912 = vunpack.c.0.s8 %v1911
    %v1913 = vlaneseq
    %v1914 = vshrl.u32 %v1913, 7
    %v1915 = vsub.s32 %v1912, %v1914
    %v1916 = vrot.slane %v1908, %v1915
    %v1918 = vunpack.c.l.s4 1983009808
    %v1919 = vunpack.c.0.s8 %v1918
    %v1920 = vlaneseq
    %v1921 = vshrl.u32 %v1920, 7
    %v1922 = vsub.s32 %v1919, %v1921
    %v1923 = vrot.slane %v1909, %v1922
    %v1924 = vcombine.low %v1868, %v1884
    %v1925 = vcombine.high %v1868, %v1884
    %v1927 = vunpack.c.l.s4 1934713408
    %v1928 = vunpack.c.0.s8 %v1927
    %v1929 = vlaneseq
    %v1930 = vshrl.u32 %v1929, 7
    %v1931 = vsub.s32 %v1928, %v1930
    %v1932 = vrot.slane %v1924, %v1931
    %v1934 = vunpack.c.l.s4 1934713408
    %v1935 = vunpack.c.0.s8 %v1934
    %v1936 = vlaneseq
    %v1937 = vshrl.u32 %v1936, 7
    %v1938 = vsub.s32 %v1935, %v1937
    %v1939 = vrot.slane %v1925, %v1938
    %v1940 = vcombine.low %v1875, %v1891
    %v1941 = vcombine.high %v1875, %v1891
    %v1943 = vunpack.c.l.s4 1934713408
    %v1944 = vunpack.c.0.s8 %v1943
    %v1945 = vlaneseq
    %v1946 = vshrl.u32 %v1945, 7
    %v1947 = vsub.s32 %v1944, %v1946
    %v1948 = vrot.slane %v1940, %v1947
    %v1950 = vunpack.c.l.s4 1934713408
    %v1951 = vunpack.c.0.s8 %v1950
    %v1952 = vlaneseq
    %v1953 = vshrl.u32 %v1952, 7
    %v1954 = vsub.s32 %v1951, %v1953
    %v1955 = vrot.slane %v1941, %v1954
    %v1956 = vcombine.low %v1900, %v1916
    %v1957 = vcombine.high %v1900, %v1916
    %v1959 = vunpack.c.l.s4 1934713408
    %v1960 = vunpack.c.0.s8 %v1959
    %v1961 = vlaneseq
    %v1962 = vshrl.u32 %v1961, 7
    %v1963 = vsub.s32 %v1960, %v1962
    %v1964 = vrot.slane %v1956, %v1963
    %v1966 = vunpack.c.l.s4 1934713408
    %v1967 = vunpack.c.0.s8 %v1966
    %v1968 = vlaneseq
    %v1969 = vshrl.u32 %v1968, 7
    %v1970 = vsub.s32 %v1967, %v1969
    %v1971 = vrot.slane %v1957, %v1970
    %v1972 = vcombine.low %v1907, %v1923
    %v1973 = vcombine.high %v1907, %v1923
    %v1975 = vunpack.c.l.s4 1934713408
    %v1976 = vunpack.c.0.s8 %v1975
    %v1977 = vlaneseq
    %v1978 = vshrl.u32 %v1977, 7
    %v1979 = vsub.s32 %v1976, %v1978
    %v1980 = vrot.slane %v1972, %v1979
    %v1982 = vunpack.c.l.s4 1934713408
    %v1983 = vunpack.c.0.s8 %v1982
    %v1984 = vlaneseq
    %v1985 = vshrl.u32 %v1984, 7
    %v1986 = vsub.s32 %v1983, %v1985
    %v1987 = vrot.slane %v1973, %v1986
    %v1988 = vcombine.low %v1932, %v1964
    %v1989 = vcombine.high %v1932, %v1964
    %v1990 = vcombine.low %v1939, %v1971
    %v1991 = vcombine.high %v1939, %v1971
    %v1992 = vcombine.low %v1948, %v1980
    %v1993 = vcombine.high %v1948, %v1980
    %v1994 = vcombine.low %v1955, %v1987
    %v1995 = vcombine.high %v1955, %v1987
    %v1996 = vcombine.low %v1510, %v1532
    %v1997 = vcombine.high %v1510, %v1532
    %v1999 = vunpack.c.l.s4 1983009808
    %v2000 = vunpack.c.0.s8 %v1999
    %v2001 = vlaneseq
    %v2002 = vshrl.u32 %v2001, 7
    %v2003 = vsub.s32 %v2000, %v2002
    %v2004 = vrot.slane %v1996, %v2003
    %v2006 = vunpack.c.l.s4 1983009808
    %v2007 = vunpack.c.0.s8 %v2006
    %v2008 = vlaneseq
    %v2009 = vshrl.u32 %v2008, 7
    %v2010 = vsub.s32 %v2007, %v2009
    %v2011 = vrot.slane %v1997, %v2010
    %v2012 = vcombine.low %v1521, %v1543
    %v2013 = vcombine.high %v1521, %v1543
    %v2015 = vunpack.c.l.s4 1983009808
    %v2016 = vunpack.c.0.s8 %v2015
    %v2017 = vlaneseq
    %v2018 = vshrl.u32 %v2017, 7
    %v2019 = vsub.s32 %v2016, %v2018
    %v2020 = vrot.slane %v2012, %v2019
    %v2022 = vunpack.c.l.s4 1983009808
    %v2023 = vunpack.c.0.s8 %v2022
    %v2024 = vlaneseq
    %v2025 = vshrl.u32 %v2024, 7
    %v2026 = vsub.s32 %v2023, %v2025
    %v2027 = vrot.slane %v2013, %v2026
    %v2028 = vcombine.low %v1554, %v1576
    %v2029 = vcombine.high %v1554, %v1576
    %v2031 = vunpack.c.l.s4 1983009808
    %v2032 = vunpack.c.0.s8 %v2031
    %v2033 = vlaneseq
    %v2034 = vshrl.u32 %v2033, 7
    %v2035 = vsub.s32 %v2032, %v2034
    %v2036 = vrot.slane %v2028, %v2035
    %v2038 = vunpack.c.l.s4 1983009808
    %v2039 = vunpack.c.0.s8 %v2038
    %v2040 = vlaneseq
    %v2041 = vshrl.u32 %v2040, 7
    %v2042 = vsub.s32 %v2039, %v2041
    %v2043 = vrot.slane %v2029, %v2042
    %v2044 = vcombine.low %v1565, %v1587
    %v2045 = vcombine.high %v1565, %v1587
    %v2047 = vunpack.c.l.s4 1983009808
    %v2048 = vunpack.c.0.s8 %v2047
    %v2049 = vlaneseq
    %v2050 = vshrl.u32 %v2049, 7
    %v2051 = vsub.s32 %v2048, %v2050
    %v2052 = vrot.slane %v2044, %v2051
    %v2054 = vunpack.c.l.s4 1983009808
    %v2055 = vunpack.c.0.s8 %v2054
    %v2056 = vlaneseq
    %v2057 = vshrl.u32 %v2056, 7
    %v2058 = vsub.s32 %v2055, %v2057
    %v2059 = vrot.slane %v2045, %v2058
    %v2060 = vcombine.low %v2004, %v2020
    %v2061 = vcombine.high %v2004, %v2020
    %v2063 = vunpack.c.l.s4 1934713408
    %v2064 = vunpack.c.0.s8 %v2063
    %v2065 = vlaneseq
    %v2066 = vshrl.u32 %v2065, 7
    %v2067 = vsub.s32 %v2064, %v2066
    %v2068 = vrot.slane %v2060, %v2067
    %v2070 = vunpack.c.l.s4 1934713408
    %v2071 = vunpack.c.0.s8 %v2070
    %v2072 = vlaneseq
    %v2073 = vshrl.u32 %v2072, 7
    %v2074 = vsub.s32 %v2071, %v2073
    %v2075 = vrot.slane %v2061, %v2074
    %v2076 = vcombine.low %v2011, %v2027
    %v2077 = vcombine.high %v2011, %v2027
    %v2079 = vunpack.c.l.s4 1934713408
    %v2080 = vunpack.c.0.s8 %v2079
    %v2081 = vlaneseq
    %v2082 = vshrl.u32 %v2081, 7
    %v2083 = vsub.s32 %v2080, %v2082
    %v2084 = vrot.slane %v2076, %v2083
    %v2086 = vunpack.c.l.s4 1934713408
    %v2087 = vunpack.c.0.s8 %v2086
    %v2088 = vlaneseq
    %v2089 = vshrl.u32 %v2088, 7
    %v2090 = vsub.s32 %v2087, %v2089
    %v2091 = vrot.slane %v2077, %v2090
    %v2092 = vcombine.low %v2036, %v2052
    %v2093 = vcombine.high %v2036, %v2052
    %v2095 = vunpack.c.l.s4 1934713408
    %v2096 = vunpack.c.0.s8 %v2095
    %v2097 = vlaneseq
    %v2098 = vshrl.u32 %v2097, 7
    %v2099 = vsub.s32 %v2096, %v2098
    %v2100 = vrot.slane %v2092, %v2099
    %v2102 = vunpack.c.l.s4 1934713408
    %v2103 = vunpack.c.0.s8 %v2102
    %v2104 = vlaneseq
    %v2105 = vshrl.u32 %v2104, 7
    %v2106 = vsub.s32 %v2103, %v2105
    %v2107 = vrot.slane %v2093, %v2106
    %v2108 = vcombine.low %v2043, %v2059
    %v2109 = vcombine.high %v2043, %v2059
    %v2111 = vunpack.c.l.s4 1934713408
    %v2112 = vunpack.c.0.s8 %v2111
    %v2113 = vlaneseq
    %v2114 = vshrl.u32 %v2113, 7
    %v2115 = vsub.s32 %v2112, %v2114
    %v2116 = vrot.slane %v2108, %v2115
    %v2118 = vunpack.c.l.s4 1934713408
    %v2119 = vunpack.c.0.s8 %v2118
    %v2120 = vlaneseq
    %v2121 = vshrl.u32 %v2120, 7
    %v2122 = vsub.s32 %v2119, %v2121
    %v2123 = vrot.slane %v2109, %v2122
    %v2124 = vcombine.low %v2068, %v2100
    %v2125 = vcombine.high %v2068, %v2100
    %v2126 = vcombine.low %v2075, %v2107
    %v2127 = vcombine.high %v2075, %v2107
    %v2128 = vcombine.low %v2084, %v2116
    %v2129 = vcombine.high %v2084, %v2116
    %v2130 = vcombine.low %v2091, %v2123
    %v2131 = vcombine.high %v2091, %v2123
    %2134 = vrot.lane.b32.xlu0 %v1717, 8
    %v2135 = vpop.permute.xlu0 %2134
    %2136 = vrot.lane.b32.xlu0 %v1853, 8
    %v2137 = vpop.permute.xlu0 %2136
    %2142 = vrot.lane.b32.xlu0 %v1718, 16
    %v2143 = vpop.permute.xlu0 %2142
    %2144 = vrot.lane.b32.xlu0 %v1854, 16
    %v2145 = vpop.permute.xlu0 %2144
    %2150 = vrot.lane.b32.xlu0 %v1719, 24
    %v2151 = vpop.permute.xlu0 %2150
    %2152 = vrot.lane.b32.xlu0 %v1855, 24
    %v2153 = vpop.permute.xlu0 %2152
    %2158 = vrot.lane.b32.xlu0 %v1720, 32
    %v2159 = vpop.permute.xlu0 %2158
    %2160 = vrot.lane.b32.xlu0 %v1856, 32
    %v2161 = vpop.permute.xlu0 %2160
    %2166 = vrot.lane.b32.xlu0 %v1721, 40
    %v2167 = vpop.permute.xlu0 %2166
    %2168 = vrot.lane.b32.xlu0 %v1857, 40
    %v2169 = vpop.permute.xlu0 %2168
    %2174 = vrot.lane.b32.xlu0 %v1722, 48
    %v2175 = vpop.permute.xlu0 %2174
    %2176 = vrot.lane.b32.xlu0 %v1858, 48
    %v2177 = vpop.permute.xlu0 %2176
    %2182 = vrot.lane.b32.xlu0 %v1723, 56
    %v2183 = vpop.permute.xlu0 %2182
    %2184 = vrot.lane.b32.xlu0 %v1859, 56
    %v2185 = vpop.permute.xlu0 %2184
    %2190 = vrot.lane.b32.xlu0 %v1988, 64
    %v2191 = vpop.permute.xlu0 %2190
    %2192 = vrot.lane.b32.xlu0 %v2124, 64
    %v2193 = vpop.permute.xlu0 %2192
    %2198 = vrot.lane.b32.xlu0 %v1989, 72
    %v2199 = vpop.permute.xlu0 %2198
    %2200 = vrot.lane.b32.xlu0 %v2125, 72
    %v2201 = vpop.permute.xlu0 %2200
    %2206 = vrot.lane.b32.xlu0 %v1990, 80
    %v2207 = vpop.permute.xlu0 %2206
    %2208 = vrot.lane.b32.xlu0 %v2126, 80
    %v2209 = vpop.permute.xlu0 %2208
    %2214 = vrot.lane.b32.xlu0 %v1991, 88
    %v2215 = vpop.permute.xlu0 %2214
    %2216 = vrot.lane.b32.xlu0 %v2127, 88
    %v2217 = vpop.permute.xlu0 %2216
    %2222 = vrot.lane.b32.xlu0 %v1992, 96
    %v2223 = vpop.permute.xlu0 %2222
    %2224 = vrot.lane.b32.xlu0 %v2128, 96
    %v2225 = vpop.permute.xlu0 %2224
    %2230 = vrot.lane.b32.xlu0 %v1993, 104
    %v2231 = vpop.permute.xlu0 %2230
    %2232 = vrot.lane.b32.xlu0 %v2129, 104
    %v2233 = vpop.permute.xlu0 %2232
    %2238 = vrot.lane.b32.xlu0 %v1994, 112
    %v2239 = vpop.permute.xlu0 %2238
    %2240 = vrot.lane.b32.xlu0 %v2130, 112
    %v2241 = vpop.permute.xlu0 %2240
    %2246 = vrot.lane.b32.xlu0 %v1995, 120
    %v2247 = vpop.permute.xlu0 %2246
    %2248 = vrot.lane.b32.xlu0 %v2131, 120
    %v2249 = vpop.permute.xlu0 %2248
    %v2252 = vsel %vm1351, %v1716, %v2135
    %v2253 = vsel %vm1351, %v1852, %v2137
    %v2254 = vsel %vm128, %v2252, %v2143
    %v2255 = vsel %vm128, %v2253, %v2145
    %v2256 = vsel %vm1356, %v2254, %v2151
    %v2257 = vsel %vm1356, %v2255, %v2153
    %v2258 = vsel %vm1359, %v2256, %v2159
    %v2259 = vsel %vm1359, %v2257, %v2161
    %v2260 = vsel %vm1362, %v2258, %v2167
    %v2261 = vsel %vm1362, %v2259, %v2169
    %v2262 = vsel %vm1365, %v2260, %v2175
    %v2263 = vsel %vm1365, %v2261, %v2177
    %v2264 = vsel %vm1368, %v2262, %v2183
    %v2265 = vsel %vm1368, %v2263, %v2185
    %v2266 = vsel %vm1371, %v2264, %v2191
    %v2267 = vsel %vm1371, %v2265, %v2193
    %v2268 = vsel %vm1374, %v2266, %v2199
    %v2269 = vsel %vm1374, %v2267, %v2201
    %v2270 = vsel %vm1377, %v2268, %v2207
    %v2271 = vsel %vm1377, %v2269, %v2209
    %v2272 = vsel %vm1380, %v2270, %v2215
    %v2273 = vsel %vm1380, %v2271, %v2217
    %v2274 = vsel %vm1383, %v2272, %v2223
    %v2275 = vsel %vm1383, %v2273, %v2225
    %v2276 = vsel %vm1386, %v2274, %v2231
    %v2277 = vsel %vm1386, %v2275, %v2233
    %v2278 = vsel %vm1389, %v2276, %v2239
    %v2279 = vsel %vm1389, %v2277, %v2241
    %v2280 = vsel %vm1392, %v2278, %v2247
    %v2281 = vsel %vm1392, %v2279, %v2249
    %v2282 = vmul.f32 %v2280, %v1399
    %v2283 = vmul.f32 %v2281, %v1399
    %v2284 = vadd.f32 %v503, %v2282
    %v2285 = vadd.f32 %v506, %v2283
    %v2286 = vmul.f32 %v2284, %v2280
    %v2287 = vmul.f32 %v2285, %v2281
    %s2288 = scalar_lea.vmem [#allocation7], 16
    %2289 = vst [vmem:[%s2288] sm:$0xff] %v2286
    %2290 = vst [vmem:[%s2288 + $0x8] sm:$0xff] %v2287
    // Predicated region
    $region30: #{tpu_custom_call.1} parent=1 // pred_check
      _
    $region31: #{tpu_custom_call.1} parent=1 // pred_check_branch
      %2292 = sbr.rel (0) target = $region33
    $region32: #{tpu_custom_call.1} parent=1 // pred_region
      %s2294 = ssub.s32 512, 512
      %2295 = vsyncadd [#allocation4], %s2294
      %s2296 = sshll.u32 [#allocation7], 4
      %s2297 = int_to_ptr.vmem [resolvable:$true] %s2296
      %2302 = dma.vmem_to_hbm [thread:$0]  %s2297, 512, %s5, [#allocation4], 128, 128, 8
    $region33: #{tpu_custom_call.1} parent=1 // pred_fallthru
      _
    // Predicated region
    $region34: #{tpu_custom_call.1} parent=1 // pred_check
      _
    $region35: #{tpu_custom_call.1} parent=1 // pred_check_branch
      %2304 = sbr.rel (0) target = $region37
    $region36: #{tpu_custom_call.1} parent=1 // pred_region
      %2305 = dma.done [#allocation4], 512
    $region37: #{tpu_custom_call.1} parent=1 // pred_fallthru
      _
    %2306 = vsyncpa [#allocation3], 1
    %2307 = vsyncpa [#allocation6], 1
    %2308 = vsyncpa [#allocation4], 1

// kernel: tpu_custom_call.1
$region0: #{tpu_custom_call.1}
  #allocation0 [shape = 'u32[]', space=smem, size = 0x4, offset = 0x4, fixed_abs, tag = 'smem constant byte address 0x4 - core index']
  #allocation1 [shape = 'u32[144,128]{1,0:T(1,128)}', space=vmem, size = 0x12000, scoped, tag = 'internal scratch']
  %s0 = inlined_call_operand.hbm [shape: bf16[2,16,128], index: 0, kind: input, shape index: {}]
  %s1 = inlined_call_operand.vmem [shape: bf16[48,16], index: 1, kind: input, shape index: {}]
  %s2 = inlined_call_operand.hbm [shape: bf16[384,128], index: 2, kind: input, shape index: {}]
  %s3 = inlined_call_operand.vmem [shape: f32[2,1,16,16], index: 3, kind: input, shape index: {}]
  %s4 = inlined_call_operand.vmem [shape: f32[1,128], index: 4, kind: input, shape index: {}]
  %s5 = inlined_call_operand.hbm [shape: f32[2,16,128], index: 5, kind: output, shape index: {}]
  %s6 = sld [smem:[#allocation0]]
  $region38: #{tpu_custom_call.1} parent=0
    _
  %s8 = ssub.s32 1, %s6
  %s9 = scalar_select 0, %s8, %s6
  $region1: #{tpu_custom_call.1} parent=0
    #allocation2 [shape = 'u8[8192]{0}', space=vmem, size = 0x2000, scoped, tag = 'input window, operand 0, single buffered']
    #allocation3 [shape = 's32[1]{0}', space=sflag, size = 0x4, scoped, tag = 'scoped memory for tpu_custom_call.1']
    #allocation4 [shape = 's32[1]{0}', space=sflag, size = 0x4, scoped, tag = 'scoped memory for tpu_custom_call.1']
    #allocation5 [shape = 'u8[98304]{0}', space=vmem, size = 0x18000, scoped, tag = 'input window, operand 2, single buffered']
    #allocation6 [shape = 's32[1]{0}', space=sflag, size = 0x4, scoped, tag = 'scoped memory for tpu_custom_call.1']
    #allocation7 [shape = 'u8[16384]{0}', space=vmem, size = 0x4000, scoped, tag = 'output window, operand 0, single buffered']
    %10 = vsyncpa [#allocation3], 0
    %11 = vsyncpa [#allocation6], 0
    %12 = vsyncpa [#allocation4], 0
    // Predicated region
    $region2: #{tpu_custom_call.1} parent=1 // pred_check
      _
    $region3: #{tpu_custom_call.1} parent=1 // pred_check_branch
      %14 = sbr.rel (0) target = $region5
    $region4: #{tpu_custom_call.1} parent=1 // pred_region
      %s16 = ssub.s32 256, 256
      %17 = vsyncadd [#allocation3], %s16
      %s18 = sshll.u32 [#allocation2], 4
      %s19 = int_to_ptr.vmem [resolvable:$true] %s18
      %24 = dma.hbm_to_vmem [thread:$0]  %s0, 256, %s19, [#allocation3], 64, 64, 4
    $region5: #{tpu_custom_call.1} parent=1 // pred_fallthru
      _
    // Predicated region
    $region6: #{tpu_custom_call.1} parent=1 // pred_check
      _
    $region7: #{tpu_custom_call.1} parent=1 // pred_check_branch
      %26 = sbr.rel (0) target = $region9
    $region8: #{tpu_custom_call.1} parent=1 // pred_region
      _
    $region9: #{tpu_custom_call.1} parent=1 // pred_fallthru
      _
    // Predicated region
    $region10: #{tpu_custom_call.1} parent=1 // pred_check
      _
    $region11: #{tpu_custom_call.1} parent=1 // pred_check_branch
      %28 = sbr.rel (0) target = $region13
    $region12: #{tpu_custom_call.1} parent=1 // pred_region
      %s30 = ssub.s32 3072, 3072
      %31 = vsyncadd [#allocation6], %s30
      %s32 = sshll.u32 [#allocation5], 4
      %s33 = int_to_ptr.vmem [resolvable:$true] %s32
      %38 = dma.hbm_to_vmem [thread:$0]  %s2, 3072, %s33, [#allocation6], 64, 64, 4
    $region13: #{tpu_custom_call.1} parent=1 // pred_fallthru
      _
    // Predicated region
    $region14: #{tpu_custom_call.1} parent=1 // pred_check
      _
    $region15: #{tpu_custom_call.1} parent=1 // pred_check_branch
      %40 = sbr.rel (0) target = $region17
    $region16: #{tpu_custom_call.1} parent=1 // pred_region
      _
    $region17: #{tpu_custom_call.1} parent=1 // pred_fallthru
      _
    // Predicated region
    $region18: #{tpu_custom_call.1} parent=1 // pred_check
      _
    $region19: #{tpu_custom_call.1} parent=1 // pred_check_branch
      %42 = sbr.rel (0) target = $region21
    $region20: #{tpu_custom_call.1} parent=1 // pred_region
      _
    $region21: #{tpu_custom_call.1} parent=1 // pred_fallthru
      _
    // Predicated region
    $region22: #{tpu_custom_call.1} parent=1 // pred_check
      _
    $region23: #{tpu_custom_call.1} parent=1 // pred_check_branch
      %44 = sbr.rel (0) target = $region25
    $region24: #{tpu_custom_call.1} parent=1 // pred_region
      %45 = dma.done [#allocation3], 256
    $region25: #{tpu_custom_call.1} parent=1 // pred_fallthru
      _
    // Predicated region
    $region26: #{tpu_custom_call.1} parent=1 // pred_check
      _
    $region27: #{tpu_custom_call.1} parent=1 // pred_check_branch
      %47 = sbr.rel (0) target = $region29
    $region28: #{tpu_custom_call.1} parent=1 // pred_region
      %48 = dma.done [#allocation6], 3072
    $region29: #{tpu_custom_call.1} parent=1 // pred_fallthru
      _
    %v50 = vld [vmem:[%s1] sm:$0xf]
    %v51 = vld [vmem:[%s1 + $0x4] sm:$0xf]
    %v52 = vld [vmem:[%s1 + $0x8] sm:$0xf]
    %v53 = vld [vmem:[%s1 + $0xc] sm:$0xf]
    %v54 = vld [vmem:[%s1 + $0x10] sm:$0xf]
    %v55 = vld [vmem:[%s1 + $0x14] sm:$0xf]
    %v56 = vld [vmem:[#allocation5] sm:$0xf]
    %v57 = vld [vmem:[#allocation5 + $0x4] sm:$0xf]
    %v58 = vld [vmem:[#allocation5 + $0x8] sm:$0xf]
    %v59 = vld [vmem:[#allocation5 + $0xc] sm:$0xf]
    %v60 = vld [vmem:[#allocation5 + $0x10] sm:$0xf]
    %v61 = vld [vmem:[#allocation5 + $0x14] sm:$0xf]
    %v62 = vld [vmem:[#allocation5 + $0x18] sm:$0xf]
    %v63 = vld [vmem:[#allocation5 + $0x1c] sm:$0xf]
    %v64 = vld [vmem:[#allocation5 + $0x20] sm:$0xf]
    %v65 = vld [vmem:[#allocation5 + $0x24] sm:$0xf]
    %v66 = vld [vmem:[#allocation5 + $0x28] sm:$0xf]
    %v67 = vld [vmem:[#allocation5 + $0x2c] sm:$0xf]
    %v68 = vld [vmem:[#allocation5 + $0x30] sm:$0xf]
    %v69 = vld [vmem:[#allocation5 + $0x34] sm:$0xf]
    %v70 = vld [vmem:[#allocation5 + $0x38] sm:$0xf]
    %v71 = vld [vmem:[#allocation5 + $0x3c] sm:$0xf]
    %v72 = vld [vmem:[#allocation5 + $0x40] sm:$0xf]
    %v73 = vld [vmem:[#allocation5 + $0x44] sm:$0xf]
    %v74 = vld [vmem:[#allocation5 + $0x48] sm:$0xf]
    %v75 = vld [vmem:[#allocation5 + $0x4c] sm:$0xf]
    %v76 = vld [vmem:[#allocation5 + $0x50] sm:$0xf]
    %v77 = vld [vmem:[#allocation5 + $0x54] sm:$0xf]
    %v78 = vld [vmem:[#allocation5 + $0x58] sm:$0xf]
    %v79 = vld [vmem:[#allocation5 + $0x5c] sm:$0xf]
    %v80 = vld [vmem:[#allocation5 + $0x60] sm:$0xf]
    %v81 = vld [vmem:[#allocation5 + $0x64] sm:$0xf]
    %v82 = vld [vmem:[#allocation5 + $0x68] sm:$0xf]
    %v83 = vld [vmem:[#allocation5 + $0x6c] sm:$0xf]
    %v84 = vld [vmem:[#allocation5 + $0x70] sm:$0xf]
    %v85 = vld [vmem:[#allocation5 + $0x74] sm:$0xf]
    %v86 = vld [vmem:[#allocation5 + $0x78] sm:$0xf]
    %v87 = vld [vmem:[#allocation5 + $0x7c] sm:$0xf]
    %v88 = vld [vmem:[#allocation5 + $0x80] sm:$0xf]
    %v89 = vld [vmem:[#allocation5 + $0x84] sm:$0xf]
    %v90 = vld [vmem:[#allocation5 + $0x88] sm:$0xf]
    %v91 = vld [vmem:[#allocation5 + $0x8c] sm:$0xf]
    %v92 = vld [vmem:[#allocation5 + $0x90] sm:$0xf]
    %v93 = vld [vmem:[#allocation5 + $0x94] sm:$0xf]
    %v94 = vld [vmem:[#allocation5 + $0x98] sm:$0xf]
    %v95 = vld [vmem:[#allocation5 + $0x9c] sm:$0xf]
    %v96 = vld [vmem:[#allocation5 + $0xa0] sm:$0xf]
    %v97 = vld [vmem:[#allocation5 + $0xa4] sm:$0xf]
    %v98 = vld [vmem:[#allocation5 + $0xa8] sm:$0xf]
    %v99 = vld [vmem:[#allocation5 + $0xac] sm:$0xf]
    %v100 = vld [vmem:[#allocation5 + $0xb0] sm:$0xf]
    %v101 = vld [vmem:[#allocation5 + $0xb4] sm:$0xf]
    %v102 = vld [vmem:[#allocation5 + $0xb8] sm:$0xf]
    %v103 = vld [vmem:[#allocation5 + $0xbc] sm:$0xf]
    %v104 = vld [vmem:[%s4] sm:$0x1]
    %v105 = vld [vmem:[#allocation2] sm:$0xf]
    %v106 = vld [vmem:[#allocation2 + $0x4] sm:$0xf]
    %v113 = vunpack.c.l.b16 %v50
    %v114 = vunpack.c.l.b16 %v51
    %v115 = vunpack.c.l.b16 %v52
    %v116 = vunpack.c.l.b16 %v53
    %v117 = vunpack.c.l.b16 %v54
    %v118 = vunpack.c.l.b16 %v55
    %v119 = vpack.c.b16 %v114, %v113
    %v120 = vpack.c.b16 %v116, %v115
    %v121 = vpack.c.b16 %v118, %v117
    %v124 = vunpack.c.l.b16 %v105
    %v125 = vunpack.c.l.b16 %v106
    %v126 = vpack.c.b16 %v125, %v124
    %vm128 = vcmask 130048
    %v130 = vsel %vm128, %v119, 0
    %v133 = vsel %vm128, %v120, 0
    %v136 = vsel %vm128, %v121, 0
    %138 = vmatprep.subr.bf16.mxu0 0
    %139 = vmatpush1.bf16.msra.mxu0 %v126
    %140 = vmatprep.subr.bf16.mxu0 0
    %141 = vmatpush1.bf16.msra.mxu0 0
    %142 = vmatprep.subr.bf16.mxu0 0
    %143 = vmatpush1.bf16.msra.mxu0 0
    %144 = vmatprep.subr.bf16.mxu0 0
    %145 = vmatpush1.bf16.msra.mxu0 0
    %146 = vmatprep.subr.bf16.mxu0 0
    %147 = vmatpush1.bf16.msra.mxu0 0
    %148 = vmatprep.subr.bf16.mxu0 0
    %149 = vmatpush1.bf16.msra.mxu0 0
    %150 = vmatprep.subr.bf16.mxu0 0
    %151 = vmatpush1.bf16.msra.mxu0 0
    %152 = vmatprep.subr.bf16.mxu0 0
    %153 = vmatpush1.bf16.msra.mxu0 0
    %154 = vmatprep.subr.bf16.mxu0 0
    %155 = vmatpush1.bf16.msra.mxu0 0
    %156 = vmatprep.subr.bf16.mxu0 0
    %157 = vmatpush1.bf16.msra.mxu0 0
    %158 = vmatprep.subr.bf16.mxu0 0
    %159 = vmatpush1.bf16.msra.mxu0 0
    %160 = vmatprep.subr.bf16.mxu0 0
    %161 = vmatpush1.bf16.msra.mxu0 0
    %162 = vmatprep.subr.bf16.mxu0 0
    %163 = vmatpush1.bf16.msra.mxu0 0
    %164 = vmatprep.subr.bf16.mxu0 0
    %165 = vmatpush1.bf16.msra.mxu0 0
    %166 = vmatprep.subr.bf16.mxu0 0
    %167 = vmatpush1.bf16.msra.mxu0 0
    %168 = vmatprep.subr.bf16.mxu0 0
    %169 = vmatpush1.bf16.msra.mxu0 0
    %170 = vmatprep.mubr.bf16.mxu0 0
    %171 = vmatmul.mubr.bf16.gmra.mrb[0].mxu0 %v130
    %v172 = vpop.f32.mrb[0].mxu0
    %v173 = vadd.f32 0.0, %v172
    %v174 = vpop.f32.mrb[0].mxu0
    %v175 = vpop.f32.mrb[0].mxu0
    %v176 = vadd.f32 0.0, %v175
    %v177 = vpop.f32.mrb[0].mxu0
    %178 = vmatprep.mubr.bf16.mxu0 0
    %179 = vmatmul.mubr.bf16.gmra.mrb[0].mxu0 %v133
    %v180 = vpop.f32.mrb[0].mxu0
    %v181 = vadd.f32 0.0, %v180
    %v182 = vpop.f32.mrb[0].mxu0
    %v183 = vpop.f32.mrb[0].mxu0
    %v184 = vadd.f32 0.0, %v183
    %v185 = vpop.f32.mrb[0].mxu0
    %186 = vmatprep.mubr.bf16.mxu0 0
    %187 = vmatmul.mubr.bf16.gmra.mrb[0].mxu0 %v136
    %v188 = vpop.f32.mrb[0].mxu0
    %v189 = vadd.f32 0.0, %v188
    %v190 = vpop.f32.mrb[0].mxu0
    %v191 = vpop.f32.mrb[0].mxu0
    %v192 = vadd.f32 0.0, %v191
    %v193 = vpop.f32.mrb[0].mxu0
    %194 = vdwg.mxu0
    %v195 = vpack.c.bf16 %v176, %v173
    %v196 = vpack.c.bf16 %v184, %v181
    %v197 = vpack.c.bf16 %v192, %v189
    %s198 = scalar_lea.vmem [#allocation2], 8
    %v199 = vld [vmem:[%s198] sm:$0xf]
    %v200 = vld [vmem:[%s198 + $0x4] sm:$0xf]
    %v203 = vunpack.c.l.b16 %v199
    %v204 = vunpack.c.l.b16 %v200
    %v205 = vpack.c.b16 %v204, %v203
    %207 = vmatprep.subr.bf16.mxu0 0
    %208 = vmatpush1.bf16.msra.mxu0 %v205
    %209 = vmatprep.subr.bf16.mxu0 0
    %210 = vmatpush1.bf16.msra.mxu0 0
    %211 = vmatprep.subr.bf16.mxu0 0
    %212 = vmatpush1.bf16.msra.mxu0 0
    %213 = vmatprep.subr.bf16.mxu0 0
    %214 = vmatpush1.bf16.msra.mxu0 0
    %215 = vmatprep.subr.bf16.mxu0 0
    %216 = vmatpush1.bf16.msra.mxu0 0
    %217 = vmatprep.subr.bf16.mxu0 0
    %218 = vmatpush1.bf16.msra.mxu0 0
    %219 = vmatprep.subr.bf16.mxu0 0
    %220 = vmatpush1.bf16.msra.mxu0 0
    %221 = vmatprep.subr.bf16.mxu0 0
    %222 = vmatpush1.bf16.msra.mxu0 0
    %223 = vmatprep.subr.bf16.mxu0 0
    %224 = vmatpush1.bf16.msra.mxu0 0
    %225 = vmatprep.subr.bf16.mxu0 0
    %226 = vmatpush1.bf16.msra.mxu0 0
    %227 = vmatprep.subr.bf16.mxu0 0
    %228 = vmatpush1.bf16.msra.mxu0 0
    %229 = vmatprep.subr.bf16.mxu0 0
    %230 = vmatpush1.bf16.msra.mxu0 0
    %231 = vmatprep.subr.bf16.mxu0 0
    %232 = vmatpush1.bf16.msra.mxu0 0
    %233 = vmatprep.subr.bf16.mxu0 0
    %234 = vmatpush1.bf16.msra.mxu0 0
    %235 = vmatprep.subr.bf16.mxu0 0
    %236 = vmatpush1.bf16.msra.mxu0 0
    %237 = vmatprep.subr.bf16.mxu0 0
    %238 = vmatpush1.bf16.msra.mxu0 0
    %239 = vmatprep.mubr.bf16.mxu0 0
    %240 = vmatmul.mubr.bf16.gmra.mrb[0].mxu0 %v130
    %v241 = vpop.f32.mrb[0].mxu0
    %v242 = vadd.f32 0.0, %v241
    %v243 = vpop.f32.mrb[0].mxu0
    %v244 = vpop.f32.mrb[0].mxu0
    %v245 = vadd.f32 0.0, %v244
    %v246 = vpop.f32.mrb[0].mxu0
    %247 = vmatprep.mubr.bf16.mxu0 0
    %248 = vmatmul.mubr.bf16.gmra.mrb[0].mxu0 %v133
    %v249 = vpop.f32.mrb[0].mxu0
    %v250 = vadd.f32 0.0, %v249
    %v251 = vpop.f32.mrb[0].mxu0
    %v252 = vpop.f32.mrb[0].mxu0
    %v253 = vadd.f32 0.0, %v252
    %v254 = vpop.f32.mrb[0].mxu0
    %255 = vmatprep.mubr.bf16.mxu0 0
    %256 = vmatmul.mubr.bf16.gmra.mrb[0].mxu0 %v136
    %v257 = vpop.f32.mrb[0].mxu0
    %v258 = vadd.f32 0.0, %v257
    %v259 = vpop.f32.mrb[0].mxu0
    %v260 = vpop.f32.mrb[0].mxu0
    %v261 = vadd.f32 0.0, %v260
    %v262 = vpop.f32.mrb[0].mxu0
    %263 = vdwg.mxu0
    %v264 = vpack.c.bf16 %v245, %v242
    %v265 = vpack.c.bf16 %v253, %v250
    %v266 = vpack.c.bf16 %v261, %v258
    %v315 = vunpack.c.l.b16 %v56
    %v316 = vunpack.c.l.b16 %v57
    %v317 = vunpack.c.l.b16 %v58
    %v318 = vunpack.c.l.b16 %v59
    %v319 = vunpack.c.l.b16 %v60
    %v320 = vunpack.c.l.b16 %v61
    %v321 = vunpack.c.l.b16 %v62
    %v322 = vunpack.c.l.b16 %v63
    %v323 = vunpack.c.l.b16 %v64
    %v324 = vunpack.c.l.b16 %v65
    %v325 = vunpack.c.l.b16 %v66
    %v326 = vunpack.c.l.b16 %v67
    %v327 = vunpack.c.l.b16 %v68
    %v328 = vunpack.c.l.b16 %v69
    %v329 = vunpack.c.l.b16 %v70
    %v330 = vunpack.c.l.b16 %v71
    %v331 = vunpack.c.l.b16 %v72
    %v332 = vunpack.c.l.b16 %v73
    %v333 = vunpack.c.l.b16 %v74
    %v334 = vunpack.c.l.b16 %v75
    %v335 = vunpack.c.l.b16 %v76
    %v336 = vunpack.c.l.b16 %v77
    %v337 = vunpack.c.l.b16 %v78
    %v338 = vunpack.c.l.b16 %v79
    %v339 = vunpack.c.l.b16 %v80
    %v340 = vunpack.c.l.b16 %v81
    %v341 = vunpack.c.l.b16 %v82
    %v342 = vunpack.c.l.b16 %v83
    %v343 = vunpack.c.l.b16 %v84
    %v344 = vunpack.c.l.b16 %v85
    %v345 = vunpack.c.l.b16 %v86
    %v346 = vunpack.c.l.b16 %v87
    %v347 = vunpack.c.l.b16 %v88
    %v348 = vunpack.c.l.b16 %v89
    %v349 = vunpack.c.l.b16 %v90
    %v350 = vunpack.c.l.b16 %v91
    %v351 = vunpack.c.l.b16 %v92
    %v352 = vunpack.c.l.b16 %v93
    %v353 = vunpack.c.l.b16 %v94
    %v354 = vunpack.c.l.b16 %v95
    %v355 = vunpack.c.l.b16 %v96
    %v356 = vunpack.c.l.b16 %v97
    %v357 = vunpack.c.l.b16 %v98
    %v358 = vunpack.c.l.b16 %v99
    %v359 = vunpack.c.l.b16 %v100
    %v360 = vunpack.c.l.b16 %v101
    %v361 = vunpack.c.l.b16 %v102
    %v362 = vunpack.c.l.b16 %v103
    %v363 = vpack.c.b16 %v316, %v315
    %v364 = vpack.c.b16 %v318, %v317
    %v365 = vpack.c.b16 %v320, %v319
    %v366 = vpack.c.b16 %v322, %v321
    %v367 = vpack.c.b16 %v324, %v323
    %v368 = vpack.c.b16 %v326, %v325
    %v369 = vpack.c.b16 %v328, %v327
    %v370 = vpack.c.b16 %v330, %v329
    %v371 = vpack.c.b16 %v332, %v331
    %v372 = vpack.c.b16 %v334, %v333
    %v373 = vpack.c.b16 %v336, %v335
    %v374 = vpack.c.b16 %v338, %v337
    %v375 = vpack.c.b16 %v340, %v339
    %v376 = vpack.c.b16 %v342, %v341
    %v377 = vpack.c.b16 %v344, %v343
    %v378 = vpack.c.b16 %v346, %v345
    %v379 = vpack.c.b16 %v348, %v347
    %v380 = vpack.c.b16 %v350, %v349
    %v381 = vpack.c.b16 %v352, %v351
    %v382 = vpack.c.b16 %v354, %v353
    %v383 = vpack.c.b16 %v356, %v355
    %v384 = vpack.c.b16 %v358, %v357
    %v385 = vpack.c.b16 %v360, %v359
    %v386 = vpack.c.b16 %v362, %v361
    %411 = vmatprep.subr.bf16.mxu0 0
    %412 = vmatpush1.bf16.msra.mxu0 %v363
    %413 = vmatprep.subr.bf16.mxu0 0
    %414 = vmatpush1.bf16.msra.mxu0 %v364
    %415 = vmatprep.subr.bf16.mxu0 0
    %416 = vmatpush1.bf16.msra.mxu0 %v365
    %417 = vmatprep.subr.bf16.mxu0 0
    %418 = vmatpush1.bf16.msra.mxu0 %v366
    %419 = vmatprep.subr.bf16.mxu0 0
    %420 = vmatpush1.bf16.msra.mxu0 %v367
    %421 = vmatprep.subr.bf16.mxu0 0
    %422 = vmatpush1.bf16.msra.mxu0 %v368
    %423 = vmatprep.subr.bf16.mxu0 0
    %424 = vmatpush1.bf16.msra.mxu0 %v369
    %425 = vmatprep.subr.bf16.mxu0 0
    %426 = vmatpush1.bf16.msra.mxu0 %v370
    %427 = vmatprep.subr.bf16.mxu0 0
    %428 = vmatpush1.bf16.msra.mxu0 %v371
    %429 = vmatprep.subr.bf16.mxu0 0
    %430 = vmatpush1.bf16.msra.mxu0 %v372
    %431 = vmatprep.subr.bf16.mxu0 0
    %432 = vmatpush1.bf16.msra.mxu0 %v373
    %433 = vmatprep.subr.bf16.mxu0 0
    %434 = vmatpush1.bf16.msra.mxu0 %v374
    %435 = vmatprep.subr.bf16.mxu0 0
    %436 = vmatpush1.bf16.msra.mxu0 %v375
    %437 = vmatprep.subr.bf16.mxu0 0
    %438 = vmatpush1.bf16.msra.mxu0 %v376
    %439 = vmatprep.subr.bf16.mxu0 0
    %440 = vmatpush1.bf16.msra.mxu0 %v377
    %441 = vmatprep.subr.bf16.mxu0 0
    %442 = vmatpush1.bf16.msra.mxu0 %v378
    %443 = vmatprep.mubr.bf16.mxu0 %v196
    %444 = vmatmul.mubr.bf16.gmra.mrb[0].mxu0 %v195
    %v445 = vpop.f32.mrb[0].mxu0
    %v446 = vadd.f32 0.0, %v445
    %v447 = vpop.f32.mrb[0].mxu0
    %v448 = vpop.f32.mrb[0].mxu0
    %v449 = vadd.f32 0.0, %v448
    %v450 = vpop.f32.mrb[0].mxu0
    %451 = vmatprep.mubr.bf16.mxu0 %v265
    %452 = vmatmul.mubr.bf16.gmra.mrb[0].mxu0 %v264
    %v453 = vpop.f32.mrb[0].mxu0
    %v454 = vadd.f32 0.0, %v453
    %v455 = vpop.f32.mrb[0].mxu0
    %v456 = vpop.f32.mrb[0].mxu0
    %v457 = vadd.f32 0.0, %v456
    %v458 = vpop.f32.mrb[0].mxu0
    %459 = vdwg.mxu0
    %460 = vmatprep.subr.bf16.mxu0 0
    %461 = vmatpush1.bf16.msra.mxu0 %v379
    %462 = vmatprep.subr.bf16.mxu0 0
    %463 = vmatpush1.bf16.msra.mxu0 %v380
    %464 = vmatprep.subr.bf16.mxu0 0
    %465 = vmatpush1.bf16.msra.mxu0 %v381
    %466 = vmatprep.subr.bf16.mxu0 0
    %467 = vmatpush1.bf16.msra.mxu0 %v382
    %468 = vmatprep.subr.bf16.mxu0 0
    %469 = vmatpush1.bf16.msra.mxu0 %v383
    %470 = vmatprep.subr.bf16.mxu0 0
    %471 = vmatpush1.bf16.msra.mxu0 %v384
    %472 = vmatprep.subr.bf16.mxu0 0
    %473 = vmatpush1.bf16.msra.mxu0 %v385
    %474 = vmatprep.subr.bf16.mxu0 0
    %475 = vmatpush1.bf16.msra.mxu0 %v386
    %476 = vmatprep.subr.bf16.mxu0 0
    %477 = vmatpush1.bf16.msra.mxu0 0
    %478 = vmatprep.subr.bf16.mxu0 0
    %479 = vmatpush1.bf16.msra.mxu0 0
    %480 = vmatprep.subr.bf16.mxu0 0
    %481 = vmatpush1.bf16.msra.mxu0 0
    %482 = vmatprep.subr.bf16.mxu0 0
    %483 = vmatpush1.bf16.msra.mxu0 0
    %484 = vmatprep.subr.bf16.mxu0 0
    %485 = vmatpush1.bf16.msra.mxu0 0
    %486 = vmatprep.subr.bf16.mxu0 0
    %487 = vmatpush1.bf16.msra.mxu0 0
    %488 = vmatprep.subr.bf16.mxu0 0
    %489 = vmatpush1.bf16.msra.mxu0 0
    %490 = vmatprep.subr.bf16.mxu0 0
    %491 = vmatpush1.bf16.msra.mxu0 0
    %492 = vmatprep.mubr.bf16.mxu0 0
    %493 = vmatmul.mubr.bf16.gmra.mrb[0].mxu0 %v197
    %v494 = vpop.f32.mrb[0].mxu0
    %v495 = vadd.f32 %v446, %v494
    %v496 = vpop.f32.mrb[0].mxu0
    %v497 = vpop.f32.mrb[0].mxu0
    %v498 = vadd.f32 %v449, %v497
    %v499 = vpop.f32.mrb[0].mxu0
    %500 = vmatprep.mubr.bf16.mxu0 0
    %501 = vmatmul.mubr.bf16.gmra.mrb[0].mxu0 %v266
    %v502 = vpop.f32.mrb[0].mxu0
    %v503 = vadd.f32 %v454, %v502
    %v504 = vpop.f32.mrb[0].mxu0
    %v505 = vpop.f32.mrb[0].mxu0
    %v506 = vadd.f32 %v457, %v505
    %v507 = vpop.f32.mrb[0].mxu0
    %508 = vdwg.mxu0
    %v509 = vld [vmem:[%s3] sm:$0xff]
    %v510 = vld [vmem:[%s3 + $0x8] sm:$0xff]
    %v511 = vlaneseq
    %v512 = vshrl.u32 %v511, 7
    %v513 = vsub.s32 0, %v512
    %v514 = vrot.slane %v509, %v513
    %516 = vbcast.lane.b32.xlu0 %v514, 256
    %v517 = vpop.permute.xlu0 %516
    %s519 = sor.u32 256, 8
    %520 = vbcast.lane.b32.xlu0 %v514, %s519
    %v521 = vpop.permute.xlu0 %520
    %v522 = vlaneseq
    %v523 = vshrl.u32 %v522, 7
    %v524 = vsub.s32 1, %v523
    %v525 = vrot.slane %v509, %v524
    %527 = vbcast.lane.b32.xlu0 %v525, 256
    %v528 = vpop.permute.xlu0 %527
    %s530 = sor.u32 256, 8
    %531 = vbcast.lane.b32.xlu0 %v525, %s530
    %v532 = vpop.permute.xlu0 %531
    %v533 = vlaneseq
    %v534 = vshrl.u32 %v533, 7
    %v535 = vsub.s32 2, %v534
    %v536 = vrot.slane %v509, %v535
    %538 = vbcast.lane.b32.xlu0 %v536, 256
    %v539 = vpop.permute.xlu0 %538
    %s541 = sor.u32 256, 8
    %542 = vbcast.lane.b32.xlu0 %v536, %s541
    %v543 = vpop.permute.xlu0 %542
    %v544 = vlaneseq
    %v545 = vshrl.u32 %v544, 7
    %v546 = vsub.s32 3, %v545
    %v547 = vrot.slane %v509, %v546
    %549 = vbcast.lane.b32.xlu0 %v547, 256
    %v550 = vpop.permute.xlu0 %549
    %s552 = sor.u32 256, 8
    %553 = vbcast.lane.b32.xlu0 %v547, %s552
    %v554 = vpop.permute.xlu0 %553
    %v555 = vlaneseq
    %v556 = vshrl.u32 %v555, 7
    %v557 = vsub.s32 4, %v556
    %v558 = vrot.slane %v509, %v557
    %560 = vbcast.lane.b32.xlu0 %v558, 256
    %v561 = vpop.permute.xlu0 %560
    %s563 = sor.u32 256, 8
    %564 = vbcast.lane.b32.xlu0 %v558, %s563
    %v565 = vpop.permute.xlu0 %564
    %v566 = vlaneseq
    %v567 = vshrl.u32 %v566, 7
    %v568 = vsub.s32 5, %v567
    %v569 = vrot.slane %v509, %v568
    %571 = vbcast.lane.b32.xlu0 %v569, 256
    %v572 = vpop.permute.xlu0 %571
    %s574 = sor.u32 256, 8
    %575 = vbcast.lane.b32.xlu0 %v569, %s574
    %v576 = vpop.permute.xlu0 %575
    %v577 = vlaneseq
    %v578 = vshrl.u32 %v577, 7
    %v579 = vsub.s32 6, %v578
    %v580 = vrot.slane %v509, %v579
    %582 = vbcast.lane.b32.xlu0 %v580, 256
    %v583 = vpop.permute.xlu0 %582
    %s585 = sor.u32 256, 8
    %586 = vbcast.lane.b32.xlu0 %v580, %s585
    %v587 = vpop.permute.xlu0 %586
    %v588 = vlaneseq
    %v589 = vshrl.u32 %v588, 7
    %v590 = vsub.s32 7, %v589
    %v591 = vrot.slane %v509, %v590
    %593 = vbcast.lane.b32.xlu0 %v591, 256
    %v594 = vpop.permute.xlu0 %593
    %s596 = sor.u32 256, 8
    %597 = vbcast.lane.b32.xlu0 %v591, %s596
    %v598 = vpop.permute.xlu0 %597
    %v599 = vlaneseq
    %v600 = vshrl.u32 %v599, 7
    %v601 = vsub.s32 0, %v600
    %v602 = vrot.slane %v510, %v601
    %604 = vbcast.lane.b32.xlu0 %v602, 256
    %v605 = vpop.permute.xlu0 %604
    %s607 = sor.u32 256, 8
    %608 = vbcast.lane.b32.xlu0 %v602, %s607
    %v609 = vpop.permute.xlu0 %608
    %v610 = vlaneseq
    %v611 = vshrl.u32 %v610, 7
    %v612 = vsub.s32 1, %v611
    %v613 = vrot.slane %v510, %v612
    %615 = vbcast.lane.b32.xlu0 %v613, 256
    %v616 = vpop.permute.xlu0 %615
    %s618 = sor.u32 256, 8
    %619 = vbcast.lane.b32.xlu0 %v613, %s618
    %v620 = vpop.permute.xlu0 %619
    %v621 = vlaneseq
    %v622 = vshrl.u32 %v621, 7
    %v623 = vsub.s32 2, %v622
    %v624 = vrot.slane %v510, %v623
    %626 = vbcast.lane.b32.xlu0 %v624, 256
    %v627 = vpop.permute.xlu0 %626
    %s629 = sor.u32 256, 8
    %630 = vbcast.lane.b32.xlu0 %v624, %s629
    %v631 = vpop.permute.xlu0 %630
    %v632 = vlaneseq
    %v633 = vshrl.u32 %v632, 7
    %v634 = vsub.s32 3, %v633
    %v635 = vrot.slane %v510, %v634
    %637 = vbcast.lane.b32.xlu0 %v635, 256
    %v638 = vpop.permute.xlu0 %637
    %s640 = sor.u32 256, 8
    %641 = vbcast.lane.b32.xlu0 %v635, %s640
    %v642 = vpop.permute.xlu0 %641
    %v643 = vlaneseq
    %v644 = vshrl.u32 %v643, 7
    %v645 = vsub.s32 4, %v644
    %v646 = vrot.slane %v510, %v645
    %648 = vbcast.lane.b32.xlu0 %v646, 256
    %v649 = vpop.permute.xlu0 %648
    %s651 = sor.u32 256, 8
    %652 = vbcast.lane.b32.xlu0 %v646, %s651
    %v653 = vpop.permute.xlu0 %652
    %v654 = vlaneseq
    %v655 = vshrl.u32 %v654, 7
    %v656 = vsub.s32 5, %v655
    %v657 = vrot.slane %v510, %v656
    %659 = vbcast.lane.b32.xlu0 %v657, 256
    %v660 = vpop.permute.xlu0 %659
    %s662 = sor.u32 256, 8
    %663 = vbcast.lane.b32.xlu0 %v657, %s662
    %v664 = vpop.permute.xlu0 %663
    %v665 = vlaneseq
    %v666 = vshrl.u32 %v665, 7
    %v667 = vsub.s32 6, %v666
    %v668 = vrot.slane %v510, %v667
    %670 = vbcast.lane.b32.xlu0 %v668, 256
    %v671 = vpop.permute.xlu0 %670
    %s673 = sor.u32 256, 8
    %674 = vbcast.lane.b32.xlu0 %v668, %s673
    %v675 = vpop.permute.xlu0 %674
    %v676 = vlaneseq
    %v677 = vshrl.u32 %v676, 7
    %v678 = vsub.s32 7, %v677
    %v679 = vrot.slane %v510, %v678
    %681 = vbcast.lane.b32.xlu0 %v679, 256
    %v682 = vpop.permute.xlu0 %681
    %s684 = sor.u32 256, 8
    %685 = vbcast.lane.b32.xlu0 %v679, %s684
    %v686 = vpop.permute.xlu0 %685
    %v687 = vcombine.low %v517, %v539
    %v688 = vcombine.high %v517, %v539
    %v690 = vunpack.c.l.s4 1983009808
    %v691 = vunpack.c.0.s8 %v690
    %v692 = vlaneseq
    %v693 = vshrl.u32 %v692, 7
    %v694 = vsub.s32 %v691, %v693
    %v695 = vrot.slane %v687, %v694
    %v697 = vunpack.c.l.s4 1983009808
    %v698 = vunpack.c.0.s8 %v697
    %v699 = vlaneseq
    %v700 = vshrl.u32 %v699, 7
    %v701 = vsub.s32 %v698, %v700
    %v702 = vrot.slane %v688, %v701
    %v703 = vcombine.low %v528, %v550
    %v704 = vcombine.high %v528, %v550
    %v706 = vunpack.c.l.s4 1983009808
    %v707 = vunpack.c.0.s8 %v706
    %v708 = vlaneseq
    %v709 = vshrl.u32 %v708, 7
    %v710 = vsub.s32 %v707, %v709
    %v711 = vrot.slane %v703, %v710
    %v713 = vunpack.c.l.s4 1983009808
    %v714 = vunpack.c.0.s8 %v713
    %v715 = vlaneseq
    %v716 = vshrl.u32 %v715, 7
    %v717 = vsub.s32 %v714, %v716
    %v718 = vrot.slane %v704, %v717
    %v719 = vcombine.low %v561, %v583
    %v720 = vcombine.high %v561, %v583
    %v722 = vunpack.c.l.s4 1983009808
    %v723 = vunpack.c.0.s8 %v722
    %v724 = vlaneseq
    %v725 = vshrl.u32 %v724, 7
    %v726 = vsub.s32 %v723, %v725
    %v727 = vrot.slane %v719, %v726
    %v729 = vunpack.c.l.s4 1983009808
    %v730 = vunpack.c.0.s8 %v729
    %v731 = vlaneseq
    %v732 = vshrl.u32 %v731, 7
    %v733 = vsub.s32 %v730, %v732
    %v734 = vrot.slane %v720, %v733
    %v735 = vcombine.low %v572, %v594
    %v736 = vcombine.high %v572, %v594
    %v738 = vunpack.c.l.s4 1983009808
    %v739 = vunpack.c.0.s8 %v738
    %v740 = vlaneseq
    %v741 = vshrl.u32 %v740, 7
    %v742 = vsub.s32 %v739, %v741
    %v743 = vrot.slane %v735, %v742
    %v745 = vunpack.c.l.s4 1983009808
    %v746 = vunpack.c.0.s8 %v745
    %v747 = vlaneseq
    %v748 = vshrl.u32 %v747, 7
    %v749 = vsub.s32 %v746, %v748
    %v750 = vrot.slane %v736, %v749
    %v751 = vcombine.low %v695, %v711
    %v752 = vcombine.high %v695, %v711
    %v754 = vunpack.c.l.s4 1934713408
    %v755 = vunpack.c.0.s8 %v754
    %v756 = vlaneseq
    %v757 = vshrl.u32 %v756, 7
    %v758 = vsub.s32 %v755, %v757
    %v759 = vrot.slane %v751, %v758
    %v761 = vunpack.c.l.s4 1934713408
    %v762 = vunpack.c.0.s8 %v761
    %v763 = vlaneseq
    %v764 = vshrl.u32 %v763, 7
    %v765 = vsub.s32 %v762, %v764
    %v766 = vrot.slane %v752, %v765
    %v767 = vcombine.low %v702, %v718
    %v768 = vcombine.high %v702, %v718
    %v770 = vunpack.c.l.s4 1934713408
    %v771 = vunpack.c.0.s8 %v770
    %v772 = vlaneseq
    %v773 = vshrl.u32 %v772, 7
    %v774 = vsub.s32 %v771, %v773
    %v775 = vrot.slane %v767, %v774
    %v777 = vunpack.c.l.s4 1934713408
    %v778 = vunpack.c.0.s8 %v777
    %v779 = vlaneseq
    %v780 = vshrl.u32 %v779, 7
    %v781 = vsub.s32 %v778, %v780
    %v782 = vrot.slane %v768, %v781
    %v783 = vcombine.low %v727, %v743
    %v784 = vcombine.high %v727, %v743
    %v786 = vunpack.c.l.s4 1934713408
    %v787 = vunpack.c.0.s8 %v786
    %v788 = vlaneseq
    %v789 = vshrl.u32 %v788, 7
    %v790 = vsub.s32 %v787, %v789
    %v791 = vrot.slane %v783, %v790
    %v793 = vunpack.c.l.s4 1934713408
    %v794 = vunpack.c.0.s8 %v793
    %v795 = vlaneseq
    %v796 = vshrl.u32 %v795, 7
    %v797 = vsub.s32 %v794, %v796
    %v798 = vrot.slane %v784, %v797
    %v799 = vcombine.low %v734, %v750
    %v800 = vcombine.high %v734, %v750
    %v802 = vunpack.c.l.s4 1934713408
    %v803 = vunpack.c.0.s8 %v802
    %v804 = vlaneseq
    %v805 = vshrl.u32 %v804, 7
    %v806 = vsub.s32 %v803, %v805
    %v807 = vrot.slane %v799, %v806
    %v809 = vunpack.c.l.s4 1934713408
    %v810 = vunpack.c.0.s8 %v809
    %v811 = vlaneseq
    %v812 = vshrl.u32 %v811, 7
    %v813 = vsub.s32 %v810, %v812
    %v814 = vrot.slane %v800, %v813
    %v815 = vcombine.low %v759, %v791
    %v816 = vcombine.high %v759, %v791
    %v817 = vcombine.low %v766, %v798
    %v818 = vcombine.high %v766, %v798
    %v819 = vcombine.low %v775, %v807
    %v820 = vcombine.high %v775, %v807
    %v821 = vcombine.low %v782, %v814
    %v822 = vcombine.high %v782, %v814
    %v823 = vcombine.low %v605, %v627
    %v824 = vcombine.high %v605, %v627
    %v826 = vunpack.c.l.s4 1983009808
    %v827 = vunpack.c.0.s8 %v826
    %v828 = vlaneseq
    %v829 = vshrl.u32 %v828, 7
    %v830 = vsub.s32 %v827, %v829
    %v831 = vrot.slane %v823, %v830
    %v833 = vunpack.c.l.s4 1983009808
    %v834 = vunpack.c.0.s8 %v833
    %v835 = vlaneseq
    %v836 = vshrl.u32 %v835, 7
    %v837 = vsub.s32 %v834, %v836
    %v838 = vrot.slane %v824, %v837
    %v839 = vcombine.low %v616, %v638
    %v840 = vcombine.high %v616, %v638
    %v842 = vunpack.c.l.s4 1983009808
    %v843 = vunpack.c.0.s8 %v842
    %v844 = vlaneseq
    %v845 = vshrl.u32 %v844, 7
    %v846 = vsub.s32 %v843, %v845
    %v847 = vrot.slane %v839, %v846
    %v849 = vunpack.c.l.s4 1983009808
    %v850 = vunpack.c.0.s8 %v849
    %v851 = vlaneseq
    %v852 = vshrl.u32 %v851, 7
    %v853 = vsub.s32 %v850, %v852
    %v854 = vrot.slane %v840, %v853
    %v855 = vcombine.low %v649, %v671
    %v856 = vcombine.high %v649, %v671
    %v858 = vunpack.c.l.s4 1983009808
    %v859 = vunpack.c.0.s8 %v858
    %v860 = vlaneseq
    %v861 = vshrl.u32 %v860, 7
    %v862 = vsub.s32 %v859, %v861
    %v863 = vrot.slane %v855, %v862
    %v865 = vunpack.c.l.s4 1983009808
    %v866 = vunpack.c.0.s8 %v865
    %v867 = vlaneseq
    %v868 = vshrl.u32 %v867, 7
    %v869 = vsub.s32 %v866, %v868
    %v870 = vrot.slane %v856, %v869
    %v871 = vcombine.low %v660, %v682
    %v872 = vcombine.high %v660, %v682
    %v874 = vunpack.c.l.s4 1983009808
    %v875 = vunpack.c.0.s8 %v874
    %v876 = vlaneseq
    %v877 = vshrl.u32 %v876, 7
    %v878 = vsub.s32 %v875, %v877
    %v879 = vrot.slane %v871, %v878
    %v881 = vunpack.c.l.s4 1983009808
    %v882 = vunpack.c.0.s8 %v881
    %v883 = vlaneseq
    %v884 = vshrl.u32 %v883, 7
    %v885 = vsub.s32 %v882, %v884
    %v886 = vrot.slane %v872, %v885
    %v887 = vcombine.low %v831, %v847
    %v888 = vcombine.high %v831, %v847
    %v890 = vunpack.c.l.s4 1934713408
    %v891 = vunpack.c.0.s8 %v890
    %v892 = vlaneseq
    %v893 = vshrl.u32 %v892, 7
    %v894 = vsub.s32 %v891, %v893
    %v895 = vrot.slane %v887, %v894
    %v897 = vunpack.c.l.s4 1934713408
    %v898 = vunpack.c.0.s8 %v897
    %v899 = vlaneseq
    %v900 = vshrl.u32 %v899, 7
    %v901 = vsub.s32 %v898, %v900
    %v902 = vrot.slane %v888, %v901
    %v903 = vcombine.low %v838, %v854
    %v904 = vcombine.high %v838, %v854
    %v906 = vunpack.c.l.s4 1934713408
    %v907 = vunpack.c.0.s8 %v906
    %v908 = vlaneseq
    %v909 = vshrl.u32 %v908, 7
    %v910 = vsub.s32 %v907, %v909
    %v911 = vrot.slane %v903, %v910
    %v913 = vunpack.c.l.s4 1934713408
    %v914 = vunpack.c.0.s8 %v913
    %v915 = vlaneseq
    %v916 = vshrl.u32 %v915, 7
    %v917 = vsub.s32 %v914, %v916
    %v918 = vrot.slane %v904, %v917
    %v919 = vcombine.low %v863, %v879
    %v920 = vcombine.high %v863, %v879
    %v922 = vunpack.c.l.s4 1934713408
    %v923 = vunpack.c.0.s8 %v922
    %v924 = vlaneseq
    %v925 = vshrl.u32 %v924, 7
    %v926 = vsub.s32 %v923, %v925
    %v927 = vrot.slane %v919, %v926
    %v929 = vunpack.c.l.s4 1934713408
    %v930 = vunpack.c.0.s8 %v929
    %v931 = vlaneseq
    %v932 = vshrl.u32 %v931, 7
    %v933 = vsub.s32 %v930, %v932
    %v934 = vrot.slane %v920, %v933
    %v935 = vcombine.low %v870, %v886
    %v936 = vcombine.high %v870, %v886
    %v938 = vunpack.c.l.s4 1934713408
    %v939 = vunpack.c.0.s8 %v938
    %v940 = vlaneseq
    %v941 = vshrl.u32 %v940, 7
    %v942 = vsub.s32 %v939, %v941
    %v943 = vrot.slane %v935, %v942
    %v945 = vunpack.c.l.s4 1934713408
    %v946 = vunpack.c.0.s8 %v945
    %v947 = vlaneseq
    %v948 = vshrl.u32 %v947, 7
    %v949 = vsub.s32 %v946, %v948
    %v950 = vrot.slane %v936, %v949
    %v951 = vcombine.low %v895, %v927
    %v952 = vcombine.high %v895, %v927
    %v953 = vcombine.low %v902, %v934
    %v954 = vcombine.high %v902, %v934
    %v955 = vcombine.low %v911, %v943
    %v956 = vcombine.high %v911, %v943
    %v957 = vcombine.low %v918, %v950
    %v958 = vcombine.high %v918, %v950
    %v959 = vcombine.low %v521, %v543
    %v960 = vcombine.high %v521, %v543
    %v962 = vunpack.c.l.s4 1983009808
    %v963 = vunpack.c.0.s8 %v962
    %v964 = vlaneseq
    %v965 = vshrl.u32 %v964, 7
    %v966 = vsub.s32 %v963, %v965
    %v967 = vrot.slane %v959, %v966
    %v969 = vunpack.c.l.s4 1983009808
    %v970 = vunpack.c.0.s8 %v969
    %v971 = vlaneseq
    %v972 = vshrl.u32 %v971, 7
    %v973 = vsub.s32 %v970, %v972
    %v974 = vrot.slane %v960, %v973
    %v975 = vcombine.low %v532, %v554
    %v976 = vcombine.high %v532, %v554
    %v978 = vunpack.c.l.s4 1983009808
    %v979 = vunpack.c.0.s8 %v978
    %v980 = vlaneseq
    %v981 = vshrl.u32 %v980, 7
    %v982 = vsub.s32 %v979, %v981
    %v983 = vrot.slane %v975, %v982
    %v985 = vunpack.c.l.s4 1983009808
    %v986 = vunpack.c.0.s8 %v985
    %v987 = vlaneseq
    %v988 = vshrl.u32 %v987, 7
    %v989 = vsub.s32 %v986, %v988
    %v990 = vrot.slane %v976, %v989
    %v991 = vcombine.low %v565, %v587
    %v992 = vcombine.high %v565, %v587
    %v994 = vunpack.c.l.s4 1983009808
    %v995 = vunpack.c.0.s8 %v994
    %v996 = vlaneseq
    %v997 = vshrl.u32 %v996, 7
    %v998 = vsub.s32 %v995, %v997
    %v999 = vrot.slane %v991, %v998
    %v1001 = vunpack.c.l.s4 1983009808
    %v1002 = vunpack.c.0.s8 %v1001
    %v1003 = vlaneseq
    %v1004 = vshrl.u32 %v1003, 7
    %v1005 = vsub.s32 %v1002, %v1004
    %v1006 = vrot.slane %v992, %v1005
    %v1007 = vcombine.low %v576, %v598
    %v1008 = vcombine.high %v576, %v598
    %v1010 = vunpack.c.l.s4 1983009808
    %v1011 = vunpack.c.0.s8 %v1010
    %v1012 = vlaneseq
    %v1013 = vshrl.u32 %v1012, 7
    %v1014 = vsub.s32 %v1011, %v1013
    %v1015 = vrot.slane %v1007, %v1014
    %v1017 = vunpack.c.l.s4 1983009808
    %v1018 = vunpack.c.0.s8 %v1017
    %v1019 = vlaneseq
    %v1020 = vshrl.u32 %v1019, 7
    %v1021 = vsub.s32 %v1018, %v1020
    %v1022 = vrot.slane %v1008, %v1021
    %v1023 = vcombine.low %v967, %v983
    %v1024 = vcombine.high %v967, %v983
    %v1026 = vunpack.c.l.s4 1934713408
    %v1027 = vunpack.c.0.s8 %v1026
    %v1028 = vlaneseq
    %v1029 = vshrl.u32 %v1028, 7
    %v1030 = vsub.s32 %v1027, %v1029
    %v1031 = vrot.slane %v1023, %v1030
    %v1033 = vunpack.c.l.s4 1934713408
    %v1034 = vunpack.c.0.s8 %v1033
    %v1035 = vlaneseq
    %v1036 = vshrl.u32 %v1035, 7
    %v1037 = vsub.s32 %v1034, %v1036
    %v1038 = vrot.slane %v1024, %v1037
    %v1039 = vcombine.low %v974, %v990
    %v1040 = vcombine.high %v974, %v990
    %v1042 = vunpack.c.l.s4 1934713408
    %v1043 = vunpack.c.0.s8 %v1042
    %v1044 = vlaneseq
    %v1045 = vshrl.u32 %v1044, 7
    %v1046 = vsub.s32 %v1043, %v1045
    %v1047 = vrot.slane %v1039, %v1046
    %v1049 = vunpack.c.l.s4 1934713408
    %v1050 = vunpack.c.0.s8 %v1049
    %v1051 = vlaneseq
    %v1052 = vshrl.u32 %v1051, 7
    %v1053 = vsub.s32 %v1050, %v1052
    %v1054 = vrot.slane %v1040, %v1053
    %v1055 = vcombine.low %v999, %v1015
    %v1056 = vcombine.high %v999, %v1015
    %v1058 = vunpack.c.l.s4 1934713408
    %v1059 = vunpack.c.0.s8 %v1058
    %v1060 = vlaneseq
    %v1061 = vshrl.u32 %v1060, 7
    %v1062 = vsub.s32 %v1059, %v1061
    %v1063 = vrot.slane %v1055, %v1062
    %v1065 = vunpack.c.l.s4 1934713408
    %v1066 = vunpack.c.0.s8 %v1065
    %v1067 = vlaneseq
    %v1068 = vshrl.u32 %v1067, 7
    %v1069 = vsub.s32 %v1066, %v1068
    %v1070 = vrot.slane %v1056, %v1069
    %v1071 = vcombine.low %v1006, %v1022
    %v1072 = vcombine.high %v1006, %v1022
    %v1074 = vunpack.c.l.s4 1934713408
    %v1075 = vunpack.c.0.s8 %v1074
    %v1076 = vlaneseq
    %v1077 = vshrl.u32 %v1076, 7
    %v1078 = vsub.s32 %v1075, %v1077
    %v1079 = vrot.slane %v1071, %v1078
    %v1081 = vunpack.c.l.s4 1934713408
    %v1082 = vunpack.c.0.s8 %v1081
    %v1083 = vlaneseq
    %v1084 = vshrl.u32 %v1083, 7
    %v1085 = vsub.s32 %v1082, %v1084
    %v1086 = vrot.slane %v1072, %v1085
    %v1087 = vcombine.low %v1031, %v1063
    %v1088 = vcombine.high %v1031, %v1063
    %v1089 = vcombine.low %v1038, %v1070
    %v1090 = vcombine.high %v1038, %v1070
    %v1091 = vcombine.low %v1047, %v1079
    %v1092 = vcombine.high %v1047, %v1079
    %v1093 = vcombine.low %v1054, %v1086
    %v1094 = vcombine.high %v1054, %v1086
    %v1095 = vcombine.low %v609, %v631
    %v1096 = vcombine.high %v609, %v631
    %v1098 = vunpack.c.l.s4 1983009808
    %v1099 = vunpack.c.0.s8 %v1098
    %v1100 = vlaneseq
    %v1101 = vshrl.u32 %v1100, 7
    %v1102 = vsub.s32 %v1099, %v1101
    %v1103 = vrot.slane %v1095, %v1102
    %v1105 = vunpack.c.l.s4 1983009808
    %v1106 = vunpack.c.0.s8 %v1105
    %v1107 = vlaneseq
    %v1108 = vshrl.u32 %v1107, 7
    %v1109 = vsub.s32 %v1106, %v1108
    %v1110 = vrot.slane %v1096, %v1109
    %v1111 = vcombine.low %v620, %v642
    %v1112 = vcombine.high %v620, %v642
    %v1114 = vunpack.c.l.s4 1983009808
    %v1115 = vunpack.c.0.s8 %v1114
    %v1116 = vlaneseq
    %v1117 = vshrl.u32 %v1116, 7
    %v1118 = vsub.s32 %v1115, %v1117
    %v1119 = vrot.slane %v1111, %v1118
    %v1121 = vunpack.c.l.s4 1983009808
    %v1122 = vunpack.c.0.s8 %v1121
    %v1123 = vlaneseq
    %v1124 = vshrl.u32 %v1123, 7
    %v1125 = vsub.s32 %v1122, %v1124
    %v1126 = vrot.slane %v1112, %v1125
    %v1127 = vcombine.low %v653, %v675
    %v1128 = vcombine.high %v653, %v675
    %v1130 = vunpack.c.l.s4 1983009808
    %v1131 = vunpack.c.0.s8 %v1130
    %v1132 = vlaneseq
    %v1133 = vshrl.u32 %v1132, 7
    %v1134 = vsub.s32 %v1131, %v1133
    %v1135 = vrot.slane %v1127, %v1134
    %v1137 = vunpack.c.l.s4 1983009808
    %v1138 = vunpack.c.0.s8 %v1137
    %v1139 = vlaneseq
    %v1140 = vshrl.u32 %v1139, 7
    %v1141 = vsub.s32 %v1138, %v1140
    %v1142 = vrot.slane %v1128, %v1141
    %v1143 = vcombine.low %v664, %v686
    %v1144 = vcombine.high %v664, %v686
    %v1146 = vunpack.c.l.s4 1983009808
    %v1147 = vunpack.c.0.s8 %v1146
    %v1148 = vlaneseq
    %v1149 = vshrl.u32 %v1148, 7
    %v1150 = vsub.s32 %v1147, %v1149
    %v1151 = vrot.slane %v1143, %v1150
    %v1153 = vunpack.c.l.s4 1983009808
    %v1154 = vunpack.c.0.s8 %v1153
    %v1155 = vlaneseq
    %v1156 = vshrl.u32 %v1155, 7
    %v1157 = vsub.s32 %v1154, %v1156
    %v1158 = vrot.slane %v1144, %v1157
    %v1159 = vcombine.low %v1103, %v1119
    %v1160 = vcombine.high %v1103, %v1119
    %v1162 = vunpack.c.l.s4 1934713408
    %v1163 = vunpack.c.0.s8 %v1162
    %v1164 = vlaneseq
    %v1165 = vshrl.u32 %v1164, 7
    %v1166 = vsub.s32 %v1163, %v1165
    %v1167 = vrot.slane %v1159, %v1166
    %v1169 = vunpack.c.l.s4 1934713408
    %v1170 = vunpack.c.0.s8 %v1169
    %v1171 = vlaneseq
    %v1172 = vshrl.u32 %v1171, 7
    %v1173 = vsub.s32 %v1170, %v1172
    %v1174 = vrot.slane %v1160, %v1173
    %v1175 = vcombine.low %v1110, %v1126
    %v1176 = vcombine.high %v1110, %v1126
    %v1178 = vunpack.c.l.s4 1934713408
    %v1179 = vunpack.c.0.s8 %v1178
    %v1180 = vlaneseq
    %v1181 = vshrl.u32 %v1180, 7
    %v1182 = vsub.s32 %v1179, %v1181
    %v1183 = vrot.slane %v1175, %v1182
    %v1185 = vunpack.c.l.s4 1934713408
    %v1186 = vunpack.c.0.s8 %v1185
    %v1187 = vlaneseq
    %v1188 = vshrl.u32 %v1187, 7
    %v1189 = vsub.s32 %v1186, %v1188
    %v1190 = vrot.slane %v1176, %v1189
    %v1191 = vcombine.low %v1135, %v1151
    %v1192 = vcombine.high %v1135, %v1151
    %v1194 = vunpack.c.l.s4 1934713408
    %v1195 = vunpack.c.0.s8 %v1194
    %v1196 = vlaneseq
    %v1197 = vshrl.u32 %v1196, 7
    %v1198 = vsub.s32 %v1195, %v1197
    %v1199 = vrot.slane %v1191, %v1198
    %v1201 = vunpack.c.l.s4 1934713408
    %v1202 = vunpack.c.0.s8 %v1201
    %v1203 = vlaneseq
    %v1204 = vshrl.u32 %v1203, 7
    %v1205 = vsub.s32 %v1202, %v1204
    %v1206 = vrot.slane %v1192, %v1205
    %v1207 = vcombine.low %v1142, %v1158
    %v1208 = vcombine.high %v1142, %v1158
    %v1210 = vunpack.c.l.s4 1934713408
    %v1211 = vunpack.c.0.s8 %v1210
    %v1212 = vlaneseq
    %v1213 = vshrl.u32 %v1212, 7
    %v1214 = vsub.s32 %v1211, %v1213
    %v1215 = vrot.slane %v1207, %v1214
    %v1217 = vunpack.c.l.s4 1934713408
    %v1218 = vunpack.c.0.s8 %v1217
    %v1219 = vlaneseq
    %v1220 = vshrl.u32 %v1219, 7
    %v1221 = vsub.s32 %v1218, %v1220
    %v1222 = vrot.slane %v1208, %v1221
    %v1223 = vcombine.low %v1167, %v1199
    %v1224 = vcombine.high %v1167, %v1199
    %v1225 = vcombine.low %v1174, %v1206
    %v1226 = vcombine.high %v1174, %v1206
    %v1227 = vcombine.low %v1183, %v1215
    %v1228 = vcombine.high %v1183, %v1215
    %v1229 = vcombine.low %v1190, %v1222
    %v1230 = vcombine.high %v1190, %v1222
    %1233 = vrot.lane.b32.xlu0 %v816, 8
    %v1234 = vpop.permute.xlu0 %1233
    %1235 = vrot.lane.b32.xlu0 %v952, 8
    %v1236 = vpop.permute.xlu0 %1235
    %1241 = vrot.lane.b32.xlu0 %v817, 16
    %v1242 = vpop.permute.xlu0 %1241
    %1243 = vrot.lane.b32.xlu0 %v953, 16
    %v1244 = vpop.permute.xlu0 %1243
    %1249 = vrot.lane.b32.xlu0 %v818, 24
    %v1250 = vpop.permute.xlu0 %1249
    %1251 = vrot.lane.b32.xlu0 %v954, 24
    %v1252 = vpop.permute.xlu0 %1251
    %1257 = vrot.lane.b32.xlu0 %v819, 32
    %v1258 = vpop.permute.xlu0 %1257
    %1259 = vrot.lane.b32.xlu0 %v955, 32
    %v1260 = vpop.permute.xlu0 %1259
    %1265 = vrot.lane.b32.xlu0 %v820, 40
    %v1266 = vpop.permute.xlu0 %1265
    %1267 = vrot.lane.b32.xlu0 %v956, 40
    %v1268 = vpop.permute.xlu0 %1267
    %1273 = vrot.lane.b32.xlu0 %v821, 48
    %v1274 = vpop.permute.xlu0 %1273
    %1275 = vrot.lane.b32.xlu0 %v957, 48
    %v1276 = vpop.permute.xlu0 %1275
    %1281 = vrot.lane.b32.xlu0 %v822, 56
    %v1282 = vpop.permute.xlu0 %1281
    %1283 = vrot.lane.b32.xlu0 %v958, 56
    %v1284 = vpop.permute.xlu0 %1283
    %1289 = vrot.lane.b32.xlu0 %v1087, 64
    %v1290 = vpop.permute.xlu0 %1289
    %1291 = vrot.lane.b32.xlu0 %v1223, 64
    %v1292 = vpop.permute.xlu0 %1291
    %1297 = vrot.lane.b32.xlu0 %v1088, 72
    %v1298 = vpop.permute.xlu0 %1297
    %1299 = vrot.lane.b32.xlu0 %v1224, 72
    %v1300 = vpop.permute.xlu0 %1299
    %1305 = vrot.lane.b32.xlu0 %v1089, 80
    %v1306 = vpop.permute.xlu0 %1305
    %1307 = vrot.lane.b32.xlu0 %v1225, 80
    %v1308 = vpop.permute.xlu0 %1307
    %1313 = vrot.lane.b32.xlu0 %v1090, 88
    %v1314 = vpop.permute.xlu0 %1313
    %1315 = vrot.lane.b32.xlu0 %v1226, 88
    %v1316 = vpop.permute.xlu0 %1315
    %1321 = vrot.lane.b32.xlu0 %v1091, 96
    %v1322 = vpop.permute.xlu0 %1321
    %1323 = vrot.lane.b32.xlu0 %v1227, 96
    %v1324 = vpop.permute.xlu0 %1323
    %1329 = vrot.lane.b32.xlu0 %v1092, 104
    %v1330 = vpop.permute.xlu0 %1329
    %1331 = vrot.lane.b32.xlu0 %v1228, 104
    %v1332 = vpop.permute.xlu0 %1331
    %1337 = vrot.lane.b32.xlu0 %v1093, 112
    %v1338 = vpop.permute.xlu0 %1337
    %1339 = vrot.lane.b32.xlu0 %v1229, 112
    %v1340 = vpop.permute.xlu0 %1339
    %1345 = vrot.lane.b32.xlu0 %v1094, 120
    %v1346 = vpop.permute.xlu0 %1345
    %1347 = vrot.lane.b32.xlu0 %v1230, 120
    %v1348 = vpop.permute.xlu0 %1347
    %vm1351 = vcmask 64512
    %v1352 = vsel %vm1351, %v815, %v1234
    %v1353 = vsel %vm1351, %v951, %v1236
    %v1354 = vsel %vm128, %v1352, %v1242
    %v1355 = vsel %vm128, %v1353, %v1244
    %vm1356 = vcmask 195584
    %v1357 = vsel %vm1356, %v1354, %v1250
    %v1358 = vsel %vm1356, %v1355, %v1252
    %vm1359 = vcmask 261120
    %v1360 = vsel %vm1359, %v1357, %v1258
    %v1361 = vsel %vm1359, %v1358, %v1260
    %vm1362 = vcmask 326656
    %v1363 = vsel %vm1362, %v1360, %v1266
    %v1364 = vsel %vm1362, %v1361, %v1268
    %vm1365 = vcmask 392192
    %v1366 = vsel %vm1365, %v1363, %v1274
    %v1367 = vsel %vm1365, %v1364, %v1276
    %vm1368 = vcmask 457728
    %v1369 = vsel %vm1368, %v1366, %v1282
    %v1370 = vsel %vm1368, %v1367, %v1284
    %vm1371 = vcmask 523264
    %v1372 = vsel %vm1371, %v1369, %v1290
    %v1373 = vsel %vm1371, %v1370, %v1292
    %vm1374 = vcmask 588800
    %v1375 = vsel %vm1374, %v1372, %v1298
    %v1376 = vsel %vm1374, %v1373, %v1300
    %vm1377 = vcmask 654336
    %v1378 = vsel %vm1377, %v1375, %v1306
    %v1379 = vsel %vm1377, %v1376, %v1308
    %vm1380 = vcmask 719872
    %v1381 = vsel %vm1380, %v1378, %v1314
    %v1382 = vsel %vm1380, %v1379, %v1316
    %vm1383 = vcmask 785408
    %v1384 = vsel %vm1383, %v1381, %v1322
    %v1385 = vsel %vm1383, %v1382, %v1324
    %vm1386 = vcmask 850944
    %v1387 = vsel %vm1386, %v1384, %v1330
    %v1388 = vsel %vm1386, %v1385, %v1332
    %vm1389 = vcmask 916480
    %v1390 = vsel %vm1389, %v1387, %v1338
    %v1391 = vsel %vm1389, %v1388, %v1340
    %vm1392 = vcmask 982016
    %v1393 = vsel %vm1392, %v1390, %v1346
    %v1394 = vsel %vm1392, %v1391, %v1348
    %v1396 = vlaneseq
    %v1397 = vshrl.u32 %v1396, 7
    %v1398 = vsub.s32 0, %v1397
    %v1399 = vrot.slane %v104, %v1398
    %v1401 = vmul.f32 %v1393, %v1399
    %v1402 = vmul.f32 %v1394, %v1399
    %v1403 = vadd.f32 %v495, %v1401
    %v1404 = vadd.f32 %v498, %v1402
    %v1405 = vmul.f32 %v1403, %v1393
    %v1406 = vmul.f32 %v1404, %v1394
    %1407 = vst [vmem:[#allocation7] sm:$0xff] %v1405
    %1408 = vst [vmem:[#allocation7 + $0x8] sm:$0xff] %v1406
    %s1409 = scalar_lea.vmem %s3, 16
    %v1410 = vld [vmem:[%s1409] sm:$0xff]
    %v1411 = vld [vmem:[%s1409 + $0x8] sm:$0xff]
    %v1412 = vlaneseq
    %v1413 = vshrl.u32 %v1412, 7
    %v1414 = vsub.s32 0, %v1413
    %v1415 = vrot.slane %v1410, %v1414
    %1417 = vbcast.lane.b32.xlu0 %v1415, 256
    %v1418 = vpop.permute.xlu0 %1417
    %s1420 = sor.u32 256, 8
    %1421 = vbcast.lane.b32.xlu0 %v1415, %s1420
    %v1422 = vpop.permute.xlu0 %1421
    %v1423 = vlaneseq
    %v1424 = vshrl.u32 %v1423, 7
    %v1425 = vsub.s32 1, %v1424
    %v1426 = vrot.slane %v1410, %v1425
    %1428 = vbcast.lane.b32.xlu0 %v1426, 256
    %v1429 = vpop.permute.xlu0 %1428
    %s1431 = sor.u32 256, 8
    %1432 = vbcast.lane.b32.xlu0 %v1426, %s1431
    %v1433 = vpop.permute.xlu0 %1432
    %v1434 = vlaneseq
    %v1435 = vshrl.u32 %v1434, 7
    %v1436 = vsub.s32 2, %v1435
    %v1437 = vrot.slane %v1410, %v1436
    %1439 = vbcast.lane.b32.xlu0 %v1437, 256
    %v1440 = vpop.permute.xlu0 %1439
    %s1442 = sor.u32 256, 8
    %1443 = vbcast.lane.b32.xlu0 %v1437, %s1442
    %v1444 = vpop.permute.xlu0 %1443
    %v1445 = vlaneseq
    %v1446 = vshrl.u32 %v1445, 7
    %v1447 = vsub.s32 3, %v1446
    %v1448 = vrot.slane %v1410, %v1447
    %1450 = vbcast.lane.b32.xlu0 %v1448, 256
    %v1451 = vpop.permute.xlu0 %1450
    %s1453 = sor.u32 256, 8
    %1454 = vbcast.lane.b32.xlu0 %v1448, %s1453
    %v1455 = vpop.permute.xlu0 %1454
    %v1456 = vlaneseq
    %v1457 = vshrl.u32 %v1456, 7
    %v1458 = vsub.s32 4, %v1457
    %v1459 = vrot.slane %v1410, %v1458
    %1461 = vbcast.lane.b32.xlu0 %v1459, 256
    %v1462 = vpop.permute.xlu0 %1461
    %s1464 = sor.u32 256, 8
    %1465 = vbcast.lane.b32.xlu0 %v1459, %s1464
    %v1466 = vpop.permute.xlu0 %1465
    %v1467 = vlaneseq
    %v1468 = vshrl.u32 %v1467, 7
    %v1469 = vsub.s32 5, %v1468
    %v1470 = vrot.slane %v1410, %v1469
    %1472 = vbcast.lane.b32.xlu0 %v1470, 256
    %v1473 = vpop.permute.xlu0 %1472
    %s1475 = sor.u32 256, 8
    %1476 = vbcast.lane.b32.xlu0 %v1470, %s1475
    %v1477 = vpop.permute.xlu0 %1476
    %v1478 = vlaneseq
    %v1479 = vshrl.u32 %v1478, 7
    %v1480 = vsub.s32 6, %v1479
    %v1481 = vrot.slane %v1410, %v1480
    %1483 = vbcast.lane.b32.xlu0 %v1481, 256
    %v1484 = vpop.permute.xlu0 %1483
    %s1486 = sor.u32 256, 8
    %1487 = vbcast.lane.b32.xlu0 %v1481, %s1486
    %v1488 = vpop.permute.xlu0 %1487
    %v1489 = vlaneseq
    %v1490 = vshrl.u32 %v1489, 7
    %v1491 = vsub.s32 7, %v1490
    %v1492 = vrot.slane %v1410, %v1491
    %1494 = vbcast.lane.b32.xlu0 %v1492, 256
    %v1495 = vpop.permute.xlu0 %1494
    %s1497 = sor.u32 256, 8
    %1498 = vbcast.lane.b32.xlu0 %v1492, %s1497
    %v1499 = vpop.permute.xlu0 %1498
    %v1500 = vlaneseq
    %v1501 = vshrl.u32 %v1500, 7
    %v1502 = vsub.s32 0, %v1501
    %v1503 = vrot.slane %v1411, %v1502
    %1505 = vbcast.lane.b32.xlu0 %v1503, 256
    %v1506 = vpop.permute.xlu0 %1505
    %s1508 = sor.u32 256, 8
    %1509 = vbcast.lane.b32.xlu0 %v1503, %s1508
    %v1510 = vpop.permute.xlu0 %1509
    %v1511 = vlaneseq
    %v1512 = vshrl.u32 %v1511, 7
    %v1513 = vsub.s32 1, %v1512
    %v1514 = vrot.slane %v1411, %v1513
    %1516 = vbcast.lane.b32.xlu0 %v1514, 256
    %v1517 = vpop.permute.xlu0 %1516
    %s1519 = sor.u32 256, 8
    %1520 = vbcast.lane.b32.xlu0 %v1514, %s1519
    %v1521 = vpop.permute.xlu0 %1520
    %v1522 = vlaneseq
    %v1523 = vshrl.u32 %v1522, 7
    %v1524 = vsub.s32 2, %v1523
    %v1525 = vrot.slane %v1411, %v1524
    %1527 = vbcast.lane.b32.xlu0 %v1525, 256
    %v1528 = vpop.permute.xlu0 %1527
    %s1530 = sor.u32 256, 8
    %1531 = vbcast.lane.b32.xlu0 %v1525, %s1530
    %v1532 = vpop.permute.xlu0 %1531
    %v1533 = vlaneseq
    %v1534 = vshrl.u32 %v1533, 7
    %v1535 = vsub.s32 3, %v1534
    %v1536 = vrot.slane %v1411, %v1535
    %1538 = vbcast.lane.b32.xlu0 %v1536, 256
    %v1539 = vpop.permute.xlu0 %1538
    %s1541 = sor.u32 256, 8
    %1542 = vbcast.lane.b32.xlu0 %v1536, %s1541
    %v1543 = vpop.permute.xlu0 %1542
    %v1544 = vlaneseq
    %v1545 = vshrl.u32 %v1544, 7
    %v1546 = vsub.s32 4, %v1545
    %v1547 = vrot.slane %v1411, %v1546
    %1549 = vbcast.lane.b32.xlu0 %v1547, 256
    %v1550 = vpop.permute.xlu0 %1549
    %s1552 = sor.u32 256, 8
    %1553 = vbcast.lane.b32.xlu0 %v1547, %s1552
    %v1554 = vpop.permute.xlu0 %1553
    %v1555 = vlaneseq
    %v1556 = vshrl.u32 %v1555, 7
    %v1557 = vsub.s32 5, %v1556
    %v1558 = vrot.slane %v1411, %v1557
    %1560 = vbcast.lane.b32.xlu0 %v1558, 256
    %v1561 = vpop.permute.xlu0 %1560
    %s1563 = sor.u32 256, 8
    %1564 = vbcast.lane.b32.xlu0 %v1558, %s1563
    %v1565 = vpop.permute.xlu0 %1564
    %v1566 = vlaneseq
    %v1567 = vshrl.u32 %v1566, 7
    %v1568 = vsub.s32 6, %v1567
    %v1569 = vrot.slane %v1411, %v1568
    %1571 = vbcast.lane.b32.xlu0 %v1569, 256
    %v1572 = vpop.permute.xlu0 %1571
    %s1574 = sor.u32 256, 8
    %1575 = vbcast.lane.b32.xlu0 %v1569, %s1574
    %v1576 = vpop.permute.xlu0 %1575
    %v1577 = vlaneseq
    %v1578 = vshrl.u32 %v1577, 7
    %v1579 = vsub.s32 7, %v1578
    %v1580 = vrot.slane %v1411, %v1579
    %1582 = vbcast.lane.b32.xlu0 %v1580, 256
    %v1583 = vpop.permute.xlu0 %1582
    %s1585 = sor.u32 256, 8
    %1586 = vbcast.lane.b32.xlu0 %v1580, %s1585
    %v1587 = vpop.permute.xlu0 %1586
    %v1588 = vcombine.low %v1418, %v1440
    %v1589 = vcombine.high %v1418, %v1440
    %v1591 = vunpack.c.l.s4 1983009808
    %v1592 = vunpack.c.0.s8 %v1591
    %v1593 = vlaneseq
    %v1594 = vshrl.u32 %v1593, 7
    %v1595 = vsub.s32 %v1592, %v1594
    %v1596 = vrot.slane %v1588, %v1595
    %v1598 = vunpack.c.l.s4 1983009808
    %v1599 = vunpack.c.0.s8 %v1598
    %v1600 = vlaneseq
    %v1601 = vshrl.u32 %v1600, 7
    %v1602 = vsub.s32 %v1599, %v1601
    %v1603 = vrot.slane %v1589, %v1602
    %v1604 = vcombine.low %v1429, %v1451
    %v1605 = vcombine.high %v1429, %v1451
    %v1607 = vunpack.c.l.s4 1983009808
    %v1608 = vunpack.c.0.s8 %v1607
    %v1609 = vlaneseq
    %v1610 = vshrl.u32 %v1609, 7
    %v1611 = vsub.s32 %v1608, %v1610
    %v1612 = vrot.slane %v1604, %v1611
    %v1614 = vunpack.c.l.s4 1983009808
    %v1615 = vunpack.c.0.s8 %v1614
    %v1616 = vlaneseq
    %v1617 = vshrl.u32 %v1616, 7
    %v1618 = vsub.s32 %v1615, %v1617
    %v1619 = vrot.slane %v1605, %v1618
    %v1620 = vcombine.low %v1462, %v1484
    %v1621 = vcombine.high %v1462, %v1484
    %v1623 = vunpack.c.l.s4 1983009808
    %v1624 = vunpack.c.0.s8 %v1623
    %v1625 = vlaneseq
    %v1626 = vshrl.u32 %v1625, 7
    %v1627 = vsub.s32 %v1624, %v1626
    %v1628 = vrot.slane %v1620, %v1627
    %v1630 = vunpack.c.l.s4 1983009808
    %v1631 = vunpack.c.0.s8 %v1630
    %v1632 = vlaneseq
    %v1633 = vshrl.u32 %v1632, 7
    %v1634 = vsub.s32 %v1631, %v1633
    %v1635 = vrot.slane %v1621, %v1634
    %v1636 = vcombine.low %v1473, %v1495
    %v1637 = vcombine.high %v1473, %v1495
    %v1639 = vunpack.c.l.s4 1983009808
    %v1640 = vunpack.c.0.s8 %v1639
    %v1641 = vlaneseq
    %v1642 = vshrl.u32 %v1641, 7
    %v1643 = vsub.s32 %v1640, %v1642
    %v1644 = vrot.slane %v1636, %v1643
    %v1646 = vunpack.c.l.s4 1983009808
    %v1647 = vunpack.c.0.s8 %v1646
    %v1648 = vlaneseq
    %v1649 = vshrl.u32 %v1648, 7
    %v1650 = vsub.s32 %v1647, %v1649
    %v1651 = vrot.slane %v1637, %v1650
    %v1652 = vcombine.low %v1596, %v1612
    %v1653 = vcombine.high %v1596, %v1612
    %v1655 = vunpack.c.l.s4 1934713408
    %v1656 = vunpack.c.0.s8 %v1655
    %v1657 = vlaneseq
    %v1658 = vshrl.u32 %v1657, 7
    %v1659 = vsub.s32 %v1656, %v1658
    %v1660 = vrot.slane %v1652, %v1659
    %v1662 = vunpack.c.l.s4 1934713408
    %v1663 = vunpack.c.0.s8 %v1662
    %v1664 = vlaneseq
    %v1665 = vshrl.u32 %v1664, 7
    %v1666 = vsub.s32 %v1663, %v1665
    %v1667 = vrot.slane %v1653, %v1666
    %v1668 = vcombine.low %v1603, %v1619
    %v1669 = vcombine.high %v1603, %v1619
    %v1671 = vunpack.c.l.s4 1934713408
    %v1672 = vunpack.c.0.s8 %v1671
    %v1673 = vlaneseq
    %v1674 = vshrl.u32 %v1673, 7
    %v1675 = vsub.s32 %v1672, %v1674
    %v1676 = vrot.slane %v1668, %v1675
    %v1678 = vunpack.c.l.s4 1934713408
    %v1679 = vunpack.c.0.s8 %v1678
    %v1680 = vlaneseq
    %v1681 = vshrl.u32 %v1680, 7
    %v1682 = vsub.s32 %v1679, %v1681
    %v1683 = vrot.slane %v1669, %v1682
    %v1684 = vcombine.low %v1628, %v1644
    %v1685 = vcombine.high %v1628, %v1644
    %v1687 = vunpack.c.l.s4 1934713408
    %v1688 = vunpack.c.0.s8 %v1687
    %v1689 = vlaneseq
    %v1690 = vshrl.u32 %v1689, 7
    %v1691 = vsub.s32 %v1688, %v1690
    %v1692 = vrot.slane %v1684, %v1691
    %v1694 = vunpack.c.l.s4 1934713408
    %v1695 = vunpack.c.0.s8 %v1694
    %v1696 = vlaneseq
    %v1697 = vshrl.u32 %v1696, 7
    %v1698 = vsub.s32 %v1695, %v1697
    %v1699 = vrot.slane %v1685, %v1698
    %v1700 = vcombine.low %v1635, %v1651
    %v1701 = vcombine.high %v1635, %v1651
    %v1703 = vunpack.c.l.s4 1934713408
    %v1704 = vunpack.c.0.s8 %v1703
    %v1705 = vlaneseq
    %v1706 = vshrl.u32 %v1705, 7
    %v1707 = vsub.s32 %v1704, %v1706
    %v1708 = vrot.slane %v1700, %v1707
    %v1710 = vunpack.c.l.s4 1934713408
    %v1711 = vunpack.c.0.s8 %v1710
    %v1712 = vlaneseq
    %v1713 = vshrl.u32 %v1712, 7
    %v1714 = vsub.s32 %v1711, %v1713
    %v1715 = vrot.slane %v1701, %v1714
    %v1716 = vcombine.low %v1660, %v1692
    %v1717 = vcombine.high %v1660, %v1692
    %v1718 = vcombine.low %v1667, %v1699
    %v1719 = vcombine.high %v1667, %v1699
    %v1720 = vcombine.low %v1676, %v1708
    %v1721 = vcombine.high %v1676, %v1708
    %v1722 = vcombine.low %v1683, %v1715
    %v1723 = vcombine.high %v1683, %v1715
    %v1724 = vcombine.low %v1506, %v1528
    %v1725 = vcombine.high %v1506, %v1528
    %v1727 = vunpack.c.l.s4 1983009808
    %v1728 = vunpack.c.0.s8 %v1727
    %v1729 = vlaneseq
    %v1730 = vshrl.u32 %v1729, 7
    %v1731 = vsub.s32 %v1728, %v1730
    %v1732 = vrot.slane %v1724, %v1731
    %v1734 = vunpack.c.l.s4 1983009808
    %v1735 = vunpack.c.0.s8 %v1734
    %v1736 = vlaneseq
    %v1737 = vshrl.u32 %v1736, 7
    %v1738 = vsub.s32 %v1735, %v1737
    %v1739 = vrot.slane %v1725, %v1738
    %v1740 = vcombine.low %v1517, %v1539
    %v1741 = vcombine.high %v1517, %v1539
    %v1743 = vunpack.c.l.s4 1983009808
    %v1744 = vunpack.c.0.s8 %v1743
    %v1745 = vlaneseq
    %v1746 = vshrl.u32 %v1745, 7
    %v1747 = vsub.s32 %v1744, %v1746
    %v1748 = vrot.slane %v1740, %v1747
    %v1750 = vunpack.c.l.s4 1983009808
    %v1751 = vunpack.c.0.s8 %v1750
    %v1752 = vlaneseq
    %v1753 = vshrl.u32 %v1752, 7
    %v1754 = vsub.s32 %v1751, %v1753
    %v1755 = vrot.slane %v1741, %v1754
    %v1756 = vcombine.low %v1550, %v1572
    %v1757 = vcombine.high %v1550, %v1572
    %v1759 = vunpack.c.l.s4 1983009808
    %v1760 = vunpack.c.0.s8 %v1759
    %v1761 = vlaneseq
    %v1762 = vshrl.u32 %v1761, 7
    %v1763 = vsub.s32 %v1760, %v1762
    %v1764 = vrot.slane %v1756, %v1763
    %v1766 = vunpack.c.l.s4 1983009808
    %v1767 = vunpack.c.0.s8 %v1766
    %v1768 = vlaneseq
    %v1769 = vshrl.u32 %v1768, 7
    %v1770 = vsub.s32 %v1767, %v1769
    %v1771 = vrot.slane %v1757, %v1770
    %v1772 = vcombine.low %v1561, %v1583
    %v1773 = vcombine.high %v1561, %v1583
    %v1775 = vunpack.c.l.s4 1983009808
    %v1776 = vunpack.c.0.s8 %v1775
    %v1777 = vlaneseq
    %v1778 = vshrl.u32 %v1777, 7
    %v1779 = vsub.s32 %v1776, %v1778
    %v1780 = vrot.slane %v1772, %v1779
    %v1782 = vunpack.c.l.s4 1983009808
    %v1783 = vunpack.c.0.s8 %v1782
    %v1784 = vlaneseq
    %v1785 = vshrl.u32 %v1784, 7
    %v1786 = vsub.s32 %v1783, %v1785
    %v1787 = vrot.slane %v1773, %v1786
    %v1788 = vcombine.low %v1732, %v1748
    %v1789 = vcombine.high %v1732, %v1748
    %v1791 = vunpack.c.l.s4 1934713408
    %v1792 = vunpack.c.0.s8 %v1791
    %v1793 = vlaneseq
    %v1794 = vshrl.u32 %v1793, 7
    %v1795 = vsub.s32 %v1792, %v1794
    %v1796 = vrot.slane %v1788, %v1795
    %v1798 = vunpack.c.l.s4 1934713408
    %v1799 = vunpack.c.0.s8 %v1798
    %v1800 = vlaneseq
    %v1801 = vshrl.u32 %v1800, 7
    %v1802 = vsub.s32 %v1799, %v1801
    %v1803 = vrot.slane %v1789, %v1802
    %v1804 = vcombine.low %v1739, %v1755
    %v1805 = vcombine.high %v1739, %v1755
    %v1807 = vunpack.c.l.s4 1934713408
    %v1808 = vunpack.c.0.s8 %v1807
    %v1809 = vlaneseq
    %v1810 = vshrl.u32 %v1809, 7
    %v1811 = vsub.s32 %v1808, %v1810
    %v1812 = vrot.slane %v1804, %v1811
    %v1814 = vunpack.c.l.s4 1934713408
    %v1815 = vunpack.c.0.s8 %v1814
    %v1816 = vlaneseq
    %v1817 = vshrl.u32 %v1816, 7
    %v1818 = vsub.s32 %v1815, %v1817
    %v1819 = vrot.slane %v1805, %v1818
    %v1820 = vcombine.low %v1764, %v1780
    %v1821 = vcombine.high %v1764, %v1780
    %v1823 = vunpack.c.l.s4 1934713408
    %v1824 = vunpack.c.0.s8 %v1823
    %v1825 = vlaneseq
    %v1826 = vshrl.u32 %v1825, 7
    %v1827 = vsub.s32 %v1824, %v1826
    %v1828 = vrot.slane %v1820, %v1827
    %v1830 = vunpack.c.l.s4 1934713408
    %v1831 = vunpack.c.0.s8 %v1830
    %v1832 = vlaneseq
    %v1833 = vshrl.u32 %v1832, 7
    %v1834 = vsub.s32 %v1831, %v1833
    %v1835 = vrot.slane %v1821, %v1834
    %v1836 = vcombine.low %v1771, %v1787
    %v1837 = vcombine.high %v1771, %v1787
    %v1839 = vunpack.c.l.s4 1934713408
    %v1840 = vunpack.c.0.s8 %v1839
    %v1841 = vlaneseq
    %v1842 = vshrl.u32 %v1841, 7
    %v1843 = vsub.s32 %v1840, %v1842
    %v1844 = vrot.slane %v1836, %v1843
    %v1846 = vunpack.c.l.s4 1934713408
    %v1847 = vunpack.c.0.s8 %v1846
    %v1848 = vlaneseq
    %v1849 = vshrl.u32 %v1848, 7
    %v1850 = vsub.s32 %v1847, %v1849
    %v1851 = vrot.slane %v1837, %v1850
    %v1852 = vcombine.low %v1796, %v1828
    %v1853 = vcombine.high %v1796, %v1828
    %v1854 = vcombine.low %v1803, %v1835
    %v1855 = vcombine.high %v1803, %v1835
    %v1856 = vcombine.low %v1812, %v1844
    %v1857 = vcombine.high %v1812, %v1844
    %v1858 = vcombine.low %v1819, %v1851
    %v1859 = vcombine.high %v1819, %v1851
    %v1860 = vcombine.low %v1422, %v1444
    %v1861 = vcombine.high %v1422, %v1444
    %v1863 = vunpack.c.l.s4 1983009808
    %v1864 = vunpack.c.0.s8 %v1863
    %v1865 = vlaneseq
    %v1866 = vshrl.u32 %v1865, 7
    %v1867 = vsub.s32 %v1864, %v1866
    %v1868 = vrot.slane %v1860, %v1867
    %v1870 = vunpack.c.l.s4 1983009808
    %v1871 = vunpack.c.0.s8 %v1870
    %v1872 = vlaneseq
    %v1873 = vshrl.u32 %v1872, 7
    %v1874 = vsub.s32 %v1871, %v1873
    %v1875 = vrot.slane %v1861, %v1874
    %v1876 = vcombine.low %v1433, %v1455
    %v1877 = vcombine.high %v1433, %v1455
    %v1879 = vunpack.c.l.s4 1983009808
    %v1880 = vunpack.c.0.s8 %v1879
    %v1881 = vlaneseq
    %v1882 = vshrl.u32 %v1881, 7
    %v1883 = vsub.s32 %v1880, %v1882
    %v1884 = vrot.slane %v1876, %v1883
    %v1886 = vunpack.c.l.s4 1983009808
    %v1887 = vunpack.c.0.s8 %v1886
    %v1888 = vlaneseq
    %v1889 = vshrl.u32 %v1888, 7
    %v1890 = vsub.s32 %v1887, %v1889
    %v1891 = vrot.slane %v1877, %v1890
    %v1892 = vcombine.low %v1466, %v1488
    %v1893 = vcombine.high %v1466, %v1488
    %v1895 = vunpack.c.l.s4 1983009808
    %v1896 = vunpack.c.0.s8 %v1895
    %v1897 = vlaneseq
    %v1898 = vshrl.u32 %v1897, 7
    %v1899 = vsub.s32 %v1896, %v1898
    %v1900 = vrot.slane %v1892, %v1899
    %v1902 = vunpack.c.l.s4 1983009808
    %v1903 = vunpack.c.0.s8 %v1902
    %v1904 = vlaneseq
    %v1905 = vshrl.u32 %v1904, 7
    %v1906 = vsub.s32 %v1903, %v1905
    %v1907 = vrot.slane %v1893, %v1906
    %v1908 = vcombine.low %v1477, %v1499
    %v1909 = vcombine.high %v1477, %v1499
    %v1911 = vunpack.c.l.s4 1983009808
    %v1912 = vunpack.c.0.s8 %v1911
    %v1913 = vlaneseq
    %v1914 = vshrl.u32 %v1913, 7
    %v1915 = vsub.s32 %v1912, %v1914
    %v1916 = vrot.slane %v1908, %v1915
    %v1918 = vunpack.c.l.s4 1983009808
    %v1919 = vunpack.c.0.s8 %v1918
    %v1920 = vlaneseq
    %v1921 = vshrl.u32 %v1920, 7
    %v1922 = vsub.s32 %v1919, %v1921
    %v1923 = vrot.slane %v1909, %v1922
    %v1924 = vcombine.low %v1868, %v1884
    %v1925 = vcombine.high %v1868, %v1884
    %v1927 = vunpack.c.l.s4 1934713408
    %v1928 = vunpack.c.0.s8 %v1927
    %v1929 = vlaneseq
    %v1930 = vshrl.u32 %v1929, 7
    %v1931 = vsub.s32 %v1928, %v1930
    %v1932 = vrot.slane %v1924, %v1931
    %v1934 = vunpack.c.l.s4 1934713408
    %v1935 = vunpack.c.0.s8 %v1934
    %v1936 = vlaneseq
    %v1937 = vshrl.u32 %v1936, 7
    %v1938 = vsub.s32 %v1935, %v1937
    %v1939 = vrot.slane %v1925, %v1938
    %v1940 = vcombine.low %v1875, %v1891
    %v1941 = vcombine.high %v1875, %v1891
    %v1943 = vunpack.c.l.s4 1934713408
    %v1944 = vunpack.c.0.s8 %v1943
    %v1945 = vlaneseq
    %v1946 = vshrl.u32 %v1945, 7
    %v1947 = vsub.s32 %v1944, %v1946
    %v1948 = vrot.slane %v1940, %v1947
    %v1950 = vunpack.c.l.s4 1934713408
    %v1951 = vunpack.c.0.s8 %v1950
    %v1952 = vlaneseq
    %v1953 = vshrl.u32 %v1952, 7
    %v1954 = vsub.s32 %v1951, %v1953
    %v1955 = vrot.slane %v1941, %v1954
    %v1956 = vcombine.low %v1900, %v1916
    %v1957 = vcombine.high %v1900, %v1916
    %v1959 = vunpack.c.l.s4 1934713408
    %v1960 = vunpack.c.0.s8 %v1959
    %v1961 = vlaneseq
    %v1962 = vshrl.u32 %v1961, 7
    %v1963 = vsub.s32 %v1960, %v1962
    %v1964 = vrot.slane %v1956, %v1963
    %v1966 = vunpack.c.l.s4 1934713408
    %v1967 = vunpack.c.0.s8 %v1966
    %v1968 = vlaneseq
    %v1969 = vshrl.u32 %v1968, 7
    %v1970 = vsub.s32 %v1967, %v1969
    %v1971 = vrot.slane %v1957, %v1970
    %v1972 = vcombine.low %v1907, %v1923
    %v1973 = vcombine.high %v1907, %v1923
    %v1975 = vunpack.c.l.s4 1934713408
    %v1976 = vunpack.c.0.s8 %v1975
    %v1977 = vlaneseq
    %v1978 = vshrl.u32 %v1977, 7
    %v1979 = vsub.s32 %v1976, %v1978
    %v1980 = vrot.slane %v1972, %v1979
    %v1982 = vunpack.c.l.s4 1934713408
    %v1983 = vunpack.c.0.s8 %v1982
    %v1984 = vlaneseq
    %v1985 = vshrl.u32 %v1984, 7
    %v1986 = vsub.s32 %v1983, %v1985
    %v1987 = vrot.slane %v1973, %v1986
    %v1988 = vcombine.low %v1932, %v1964
    %v1989 = vcombine.high %v1932, %v1964
    %v1990 = vcombine.low %v1939, %v1971
    %v1991 = vcombine.high %v1939, %v1971
    %v1992 = vcombine.low %v1948, %v1980
    %v1993 = vcombine.high %v1948, %v1980
    %v1994 = vcombine.low %v1955, %v1987
    %v1995 = vcombine.high %v1955, %v1987
    %v1996 = vcombine.low %v1510, %v1532
    %v1997 = vcombine.high %v1510, %v1532
    %v1999 = vunpack.c.l.s4 1983009808
    %v2000 = vunpack.c.0.s8 %v1999
    %v2001 = vlaneseq
    %v2002 = vshrl.u32 %v2001, 7
    %v2003 = vsub.s32 %v2000, %v2002
    %v2004 = vrot.slane %v1996, %v2003
    %v2006 = vunpack.c.l.s4 1983009808
    %v2007 = vunpack.c.0.s8 %v2006
    %v2008 = vlaneseq
    %v2009 = vshrl.u32 %v2008, 7
    %v2010 = vsub.s32 %v2007, %v2009
    %v2011 = vrot.slane %v1997, %v2010
    %v2012 = vcombine.low %v1521, %v1543
    %v2013 = vcombine.high %v1521, %v1543
    %v2015 = vunpack.c.l.s4 1983009808
    %v2016 = vunpack.c.0.s8 %v2015
    %v2017 = vlaneseq
    %v2018 = vshrl.u32 %v2017, 7
    %v2019 = vsub.s32 %v2016, %v2018
    %v2020 = vrot.slane %v2012, %v2019
    %v2022 = vunpack.c.l.s4 1983009808
    %v2023 = vunpack.c.0.s8 %v2022
    %v2024 = vlaneseq
    %v2025 = vshrl.u32 %v2024, 7
    %v2026 = vsub.s32 %v2023, %v2025
    %v2027 = vrot.slane %v2013, %v2026
    %v2028 = vcombine.low %v1554, %v1576
    %v2029 = vcombine.high %v1554, %v1576
    %v2031 = vunpack.c.l.s4 1983009808
    %v2032 = vunpack.c.0.s8 %v2031
    %v2033 = vlaneseq
    %v2034 = vshrl.u32 %v2033, 7
    %v2035 = vsub.s32 %v2032, %v2034
    %v2036 = vrot.slane %v2028, %v2035
    %v2038 = vunpack.c.l.s4 1983009808
    %v2039 = vunpack.c.0.s8 %v2038
    %v2040 = vlaneseq
    %v2041 = vshrl.u32 %v2040, 7
    %v2042 = vsub.s32 %v2039, %v2041
    %v2043 = vrot.slane %v2029, %v2042
    %v2044 = vcombine.low %v1565, %v1587
    %v2045 = vcombine.high %v1565, %v1587
    %v2047 = vunpack.c.l.s4 1983009808
    %v2048 = vunpack.c.0.s8 %v2047
    %v2049 = vlaneseq
    %v2050 = vshrl.u32 %v2049, 7
    %v2051 = vsub.s32 %v2048, %v2050
    %v2052 = vrot.slane %v2044, %v2051
    %v2054 = vunpack.c.l.s4 1983009808
    %v2055 = vunpack.c.0.s8 %v2054
    %v2056 = vlaneseq
    %v2057 = vshrl.u32 %v2056, 7
    %v2058 = vsub.s32 %v2055, %v2057
    %v2059 = vrot.slane %v2045, %v2058
    %v2060 = vcombine.low %v2004, %v2020
    %v2061 = vcombine.high %v2004, %v2020
    %v2063 = vunpack.c.l.s4 1934713408
    %v2064 = vunpack.c.0.s8 %v2063
    %v2065 = vlaneseq
    %v2066 = vshrl.u32 %v2065, 7
    %v2067 = vsub.s32 %v2064, %v2066
    %v2068 = vrot.slane %v2060, %v2067
    %v2070 = vunpack.c.l.s4 1934713408
    %v2071 = vunpack.c.0.s8 %v2070
    %v2072 = vlaneseq
    %v2073 = vshrl.u32 %v2072, 7
    %v2074 = vsub.s32 %v2071, %v2073
    %v2075 = vrot.slane %v2061, %v2074
    %v2076 = vcombine.low %v2011, %v2027
    %v2077 = vcombine.high %v2011, %v2027
    %v2079 = vunpack.c.l.s4 1934713408
    %v2080 = vunpack.c.0.s8 %v2079
    %v2081 = vlaneseq
    %v2082 = vshrl.u32 %v2081, 7
    %v2083 = vsub.s32 %v2080, %v2082
    %v2084 = vrot.slane %v2076, %v2083
    %v2086 = vunpack.c.l.s4 1934713408
    %v2087 = vunpack.c.0.s8 %v2086
    %v2088 = vlaneseq
    %v2089 = vshrl.u32 %v2088, 7
    %v2090 = vsub.s32 %v2087, %v2089
    %v2091 = vrot.slane %v2077, %v2090
    %v2092 = vcombine.low %v2036, %v2052
    %v2093 = vcombine.high %v2036, %v2052
    %v2095 = vunpack.c.l.s4 1934713408
    %v2096 = vunpack.c.0.s8 %v2095
    %v2097 = vlaneseq
    %v2098 = vshrl.u32 %v2097, 7
    %v2099 = vsub.s32 %v2096, %v2098
    %v2100 = vrot.slane %v2092, %v2099
    %v2102 = vunpack.c.l.s4 1934713408
    %v2103 = vunpack.c.0.s8 %v2102
    %v2104 = vlaneseq
    %v2105 = vshrl.u32 %v2104, 7
    %v2106 = vsub.s32 %v2103, %v2105
    %v2107 = vrot.slane %v2093, %v2106
    %v2108 = vcombine.low %v2043, %v2059
    %v2109 = vcombine.high %v2043, %v2059
    %v2111 = vunpack.c.l.s4 1934713408
    %v2112 = vunpack.c.0.s8 %v2111
    %v2113 = vlaneseq
    %v2114 = vshrl.u32 %v2113, 7
    %v2115 = vsub.s32 %v2112, %v2114
    %v2116 = vrot.slane %v2108, %v2115
    %v2118 = vunpack.c.l.s4 1934713408
    %v2119 = vunpack.c.0.s8 %v2118
    %v2120 = vlaneseq
    %v2121 = vshrl.u32 %v2120, 7
    %v2122 = vsub.s32 %v2119, %v2121
    %v2123 = vrot.slane %v2109, %v2122
    %v2124 = vcombine.low %v2068, %v2100
    %v2125 = vcombine.high %v2068, %v2100
    %v2126 = vcombine.low %v2075, %v2107
    %v2127 = vcombine.high %v2075, %v2107
    %v2128 = vcombine.low %v2084, %v2116
    %v2129 = vcombine.high %v2084, %v2116
    %v2130 = vcombine.low %v2091, %v2123
    %v2131 = vcombine.high %v2091, %v2123
    %2134 = vrot.lane.b32.xlu0 %v1717, 8
    %v2135 = vpop.permute.xlu0 %2134
    %2136 = vrot.lane.b32.xlu0 %v1853, 8
    %v2137 = vpop.permute.xlu0 %2136
    %2142 = vrot.lane.b32.xlu0 %v1718, 16
    %v2143 = vpop.permute.xlu0 %2142
    %2144 = vrot.lane.b32.xlu0 %v1854, 16
    %v2145 = vpop.permute.xlu0 %2144
    %2150 = vrot.lane.b32.xlu0 %v1719, 24
    %v2151 = vpop.permute.xlu0 %2150
    %2152 = vrot.lane.b32.xlu0 %v1855, 24
    %v2153 = vpop.permute.xlu0 %2152
    %2158 = vrot.lane.b32.xlu0 %v1720, 32
    %v2159 = vpop.permute.xlu0 %2158
    %2160 = vrot.lane.b32.xlu0 %v1856, 32
    %v2161 = vpop.permute.xlu0 %2160
    %2166 = vrot.lane.b32.xlu0 %v1721, 40
    %v2167 = vpop.permute.xlu0 %2166
    %2168 = vrot.lane.b32.xlu0 %v1857, 40
    %v2169 = vpop.permute.xlu0 %2168
    %2174 = vrot.lane.b32.xlu0 %v1722, 48
    %v2175 = vpop.permute.xlu0 %2174
    %2176 = vrot.lane.b32.xlu0 %v1858, 48
    %v2177 = vpop.permute.xlu0 %2176
    %2182 = vrot.lane.b32.xlu0 %v1723, 56
    %v2183 = vpop.permute.xlu0 %2182
    %2184 = vrot.lane.b32.xlu0 %v1859, 56
    %v2185 = vpop.permute.xlu0 %2184
    %2190 = vrot.lane.b32.xlu0 %v1988, 64
    %v2191 = vpop.permute.xlu0 %2190
    %2192 = vrot.lane.b32.xlu0 %v2124, 64
    %v2193 = vpop.permute.xlu0 %2192
    %2198 = vrot.lane.b32.xlu0 %v1989, 72
    %v2199 = vpop.permute.xlu0 %2198
    %2200 = vrot.lane.b32.xlu0 %v2125, 72
    %v2201 = vpop.permute.xlu0 %2200
    %2206 = vrot.lane.b32.xlu0 %v1990, 80
    %v2207 = vpop.permute.xlu0 %2206
    %2208 = vrot.lane.b32.xlu0 %v2126, 80
    %v2209 = vpop.permute.xlu0 %2208
    %2214 = vrot.lane.b32.xlu0 %v1991, 88
    %v2215 = vpop.permute.xlu0 %2214
    %2216 = vrot.lane.b32.xlu0 %v2127, 88
    %v2217 = vpop.permute.xlu0 %2216
    %2222 = vrot.lane.b32.xlu0 %v1992, 96
    %v2223 = vpop.permute.xlu0 %2222
    %2224 = vrot.lane.b32.xlu0 %v2128, 96
    %v2225 = vpop.permute.xlu0 %2224
    %2230 = vrot.lane.b32.xlu0 %v1993, 104
    %v2231 = vpop.permute.xlu0 %2230
    %2232 = vrot.lane.b32.xlu0 %v2129, 104
    %v2233 = vpop.permute.xlu0 %2232
    %2238 = vrot.lane.b32.xlu0 %v1994, 112
    %v2239 = vpop.permute.xlu0 %2238
    %2240 = vrot.lane.b32.xlu0 %v2130, 112
    %v2241 = vpop.permute.xlu0 %2240
    %2246 = vrot.lane.b32.xlu0 %v1995, 120
    %v2247 = vpop.permute.xlu0 %2246
    %2248 = vrot.lane.b32.xlu0 %v2131, 120
    %v2249 = vpop.permute.xlu0 %2248
    %v2252 = vsel %vm1351, %v1716, %v2135
    %v2253 = vsel %vm1351, %v1852, %v2137
    %v2254 = vsel %vm128, %v2252, %v2143
    %v2255 = vsel %vm128, %v2253, %v2145
    %v2256 = vsel %vm1356, %v2254, %v2151
    %v2257 = vsel %vm1356, %v2255, %v2153
    %v2258 = vsel %vm1359, %v2256, %v2159
    %v2259 = vsel %vm1359, %v2257, %v2161
    %v2260 = vsel %vm1362, %v2258, %v2167
    %v2261 = vsel %vm1362, %v2259, %v2169
    %v2262 = vsel %vm1365, %v2260, %v2175
    %v2263 = vsel %vm1365, %v2261, %v2177
    %v2264 = vsel %vm1368, %v2262, %v2183
    %v2265 = vsel %vm1368, %v2263, %v2185
    %v2266 = vsel %vm1371, %v2264, %v2191
    %v2267 = vsel %vm1371, %v2265, %v2193
    %v2268 = vsel %vm1374, %v2266, %v2199
    %v2269 = vsel %vm1374, %v2267, %v2201
    %v2270 = vsel %vm1377, %v2268, %v2207
    %v2271 = vsel %vm1377, %v2269, %v2209
    %v2272 = vsel %vm1380, %v2270, %v2215
    %v2273 = vsel %vm1380, %v2271, %v2217
    %v2274 = vsel %vm1383, %v2272, %v2223
    %v2275 = vsel %vm1383, %v2273, %v2225
    %v2276 = vsel %vm1386, %v2274, %v2231
    %v2277 = vsel %vm1386, %v2275, %v2233
    %v2278 = vsel %vm1389, %v2276, %v2239
    %v2279 = vsel %vm1389, %v2277, %v2241
    %v2280 = vsel %vm1392, %v2278, %v2247
    %v2281 = vsel %vm1392, %v2279, %v2249
    %v2282 = vmul.f32 %v2280, %v1399
    %v2283 = vmul.f32 %v2281, %v1399
    %v2284 = vadd.f32 %v503, %v2282
    %v2285 = vadd.f32 %v506, %v2283
    %v2286 = vmul.f32 %v2284, %v2280
    %v2287 = vmul.f32 %v2285, %v2281
    %s2288 = scalar_lea.vmem [#allocation7], 16
    %2289 = vst [vmem:[%s2288] sm:$0xff] %v2286
    %2290 = vst [vmem:[%s2288 + $0x8] sm:$0xff] %v2287
    // Predicated region
    $region30: #{tpu_custom_call.1} parent=1 // pred_check
      _
    $region31: #{tpu_custom_call.1} parent=1 // pred_check_branch
      %2292 = sbr.rel (0) target = $region33
    $region32: #{tpu_custom_call.1} parent=1 // pred_region
      %s2294 = ssub.s32 512, 512
      %2295 = vsyncadd [#allocation4], %s2294
      %s2296 = sshll.u32 [#allocation7], 4
      %s2297 = int_to_ptr.vmem [resolvable:$true] %s2296
      %2302 = dma.vmem_to_hbm [thread:$0]  %s2297, 512, %s5, [#allocation4], 128, 128, 8
    $region33: #{tpu_custom_call.1} parent=1 // pred_fallthru
      _
    // Predicated region
    $region34: #{tpu_custom_call.1} parent=1 // pred_check
      _
    $region35: #{tpu_custom_call.1} parent=1 // pred_check_branch
      %2304 = sbr.rel (0) target = $region37
    $region36: #{tpu_custom_call.1} parent=1 // pred_region
      %2305 = dma.done [#allocation4], 512
    $region37: #{tpu_custom_call.1} parent=1 // pred_fallthru
      _
    %2306 = vsyncpa [#allocation3], 1
    %2307 = vsyncpa [#allocation6], 1
    %2308 = vsyncpa [#allocation4], 1

</llo_original>
